<compile_context>
chip_gen: v6e
topology: v6e:2x2x1
jax: 0.10.0
libtpu: 0.0.40
codegen_flags: <defaults>
</compile_context>

<pallas_src>
import functools
import math

import jax
import jax.numpy as jnp
from jax import lax
from jax.experimental import pallas as pl
from jax.experimental.pallas import tpu as pltpu


CFG = dict(
    batch=2, seq_len=64, n_channels=4,
    seg_len=8,                 # tokenizer patch / conv stride -> emb_len = 8
    d_model=32, n_heads=4, d_ff=64,
    enc_blocks=2, dec_blocks=1,
    mask_ratio=0.5, rgs_loss_scale=1.0,
)


# ------------------------------------------------------------------ kernel

def _layernorm(x, g, b, eps=1e-5):
    mu = jnp.mean(x, axis=-1, keepdims=True)
    var = jnp.mean(jnp.square(x - mu), axis=-1, keepdims=True)
    return (x - mu) * lax.rsqrt(var + eps) * g + b


def _forward_kernel(patches_ref, mask_ref, tok_w_ref, tok_b_ref, mask_emb_ref,
                    pos_emb_ref,
                    wqkv_ref, bqkv_ref, wo_ref, bo_ref,
                    w1_ref, b1_ref, w2_ref, b2_ref,
                    ln1g_ref, ln1b_ref, ln2g_ref, ln2b_ref,
                    rgs_w_ref, rgs_b_ref,
                    y_ref, sse_ref,
                    *, n_heads, n_enc_blocks, n_blocks):
    """Whole neurobert_mae forward for one batch item, all activations in VMEM."""
    f32 = jnp.float32
    L = patches_ref.shape[1]
    D = tok_w_ref.shape[1]
    Dh = D // n_heads

    p_in = patches_ref[0]                                        # (L, P)

    # --- ConvTokenizer (patchified) + mask blend + encoder TimeEmbedding -----
    t = jnp.dot(p_in, tok_w_ref[...], preferred_element_type=f32) + tok_b_ref[...]
    m = mask_ref[0]                                               # (L, 1) in {0,1}
    pos = pos_emb_ref[...]                                        # (L, D)
    x = t + m * (mask_emb_ref[...] - t) + pos                     # masked + pos-emb

    # --- transformer blocks: encoder stack, then decoder stack ---------------
    for bi in range(n_blocks):
        if bi == n_enc_blocks:
            x = x + pos                                           # decoder TimeEmbedding

        # fused QKV projection (1/sqrt(Dh) pre-folded into the Q columns)
        qkv = jnp.dot(x, wqkv_ref[bi], preferred_element_type=f32) + bqkv_ref[bi]

        # per-head scores, stacked along sublanes so softmax runs ONCE for all heads
        s_parts = []
        v_parts = []
        for h in range(n_heads):
            qh = qkv[:, h * Dh:(h + 1) * Dh]
            kh = qkv[:, D + h * Dh:D + (h + 1) * Dh]
            v_parts.append(qkv[:, 2 * D + h * Dh:2 * D + (h + 1) * Dh])
            s_parts.append(lax.dot_general(qh, kh, (((1,), (1,)), ((), ())),
                                           preferred_element_type=f32))   # (L, L)
        s = jnp.concatenate(s_parts, axis=0)                      # (H*L, L)
        s = s - jnp.max(s, axis=-1, keepdims=True)
        p = jnp.exp(s)
        p = p * pl.reciprocal(jnp.sum(p, axis=-1, keepdims=True), approx=True)

        # per-head PV, re-assembled into (L, D) for ONE output projection
        o_parts = [jnp.dot(p[h * L:(h + 1) * L, :], v_parts[h],
                           preferred_element_type=f32) for h in range(n_heads)]
        attn = jnp.concatenate(o_parts, axis=-1)                  # (L, D)
        attn = jnp.dot(attn, wo_ref[bi], preferred_element_type=f32) + bo_ref[bi]

        # residual + LN1, FFN (GELU), residual + LN2 (post-LN block)
        h1 = _layernorm(x + attn, ln1g_ref[bi], ln1b_ref[bi])
        f = jnp.dot(h1, w1_ref[bi], preferred_element_type=f32) + b1_ref[bi]
        # TODO(synk): PyTorch nn.GELU default is exact erf; tanh approximation used
        # here (erf lowering not guaranteed in Mosaic) -- tiny numerical difference.
        f = jax.nn.gelu(f)
        f = jnp.dot(f, w2_ref[bi], preferred_element_type=f32) + b2_ref[bi]
        x = _layernorm(h1 + f, ln2g_ref[bi], ln2b_ref[bi])

    # --- TimeRGSHead reconstruction + per-row SSE (for the loss) -------------
    y = jnp.dot(x, rgs_w_ref[...], preferred_element_type=f32) + rgs_b_ref[...]
    y_ref[0] = y
    d = y - p_in
    sse_ref[0] = jnp.sum(d * d, axis=-1, keepdims=True)           # (L, 1)


def pallas_forward(prep, patches, mask, cfg):
    B, L, P = patches.shape
    H = cfg["n_heads"]
    NB = cfg["enc_blocks"] + cfg["dec_blocks"]

    def full_spec(a):
        # whole array in VMEM, same block every grid step (no re-DMA between steps)
        return pl.BlockSpec(a.shape, lambda i: (0,) * a.ndim)

    def batch_spec(a):
        return pl.BlockSpec((1,) + a.shape[1:], lambda i: (i,) + (0,) * (a.ndim - 1))

    kern = functools.partial(_forward_kernel, n_heads=H,
                             n_enc_blocks=cfg["enc_blocks"], n_blocks=NB)

    args = (patches, mask, prep["tok_w"], prep["tok_b"], prep["mask_emb"],
            prep["pos_emb"], prep["wqkv"], prep["bqkv"], prep["wo"], prep["bo"],
            prep["w1"], prep["b1"], prep["w2"], prep["b2"],
            prep["ln1_g"], prep["ln1_b"], prep["ln2_g"], prep["ln2_b"],
            prep["rgs_w"], prep["rgs_b"])

    in_specs = [batch_spec(patches), batch_spec(mask)] + [full_spec(a) for a in args[2:]]

    y, rowsse = pl.pallas_call(
        kern,
        grid=(B,),
        in_specs=in_specs,
        out_specs=(pl.BlockSpec((1, L, P), lambda i: (i, 0, 0)),
                   pl.BlockSpec((1, L, 1), lambda i: (i, 0, 0))),
        out_shape=(jax.ShapeDtypeStruct((B, L, P), jnp.float32),
                   jax.ShapeDtypeStruct((B, L, 1), jnp.float32)),
        compiler_params=pltpu.CompilerParams(dimension_semantics=("parallel",)),
    )(*args)
    return y, rowsse


# ------------------------------------------------------------------ params / glue

def sincos_pos_emb(max_len, d_model):
    pos = jnp.arange(max_len, dtype=jnp.float32)[:, None]
    i = jnp.arange(d_model // 2, dtype=jnp.float32)[None, :]
    div = jnp.exp(-math.log(10000.0) * (2.0 * i) / d_model)
    pe = jnp.zeros((max_len, d_model), jnp.float32)
    pe = pe.at[:, 0::2].set(jnp.sin(pos * div))
    pe = pe.at[:, 1::2].set(jnp.cos(pos * div))
    return pe


def gen_mask(key, batch_size, emb_len, mask_ratio):
    # mirrors neurobert_mae.gen_mask (torch.rand -> argsort -> argsort -> gather)
    # TODO(synk): argsort-based shuffling has no Pallas TPU primitive; kept as JAX glue.
    keep_len = int(emb_len * (1.0 - mask_ratio))
    noise = jax.random.uniform(key, (batch_size, emb_len), dtype=jnp.float32)
    shuffle_idxs = jnp.argsort(noise, axis=-1)
    restore_idxs = jnp.argsort(shuffle_idxs, axis=-1)
    mask = jnp.ones((batch_size, emb_len), dtype=bool)
    mask = mask.at[:, :keep_len].set(False)
    mask = jnp.take_along_axis(mask, restore_idxs, axis=-1)
    return mask


def _init_linear(key, fan_in, fan_out):
    w = jax.random.normal(key, (fan_in, fan_out), jnp.float32) * 0.02
    b = jnp.zeros((fan_out,), jnp.float32)
    return w, b


def _init_block(key, d_model, d_ff):
    ks = jax.random.split(key, 6)
    p = {}
    p["wq"], p["bq"] = _init_linear(ks[0], d_model, d_model)
    p["wk"], p["bk"] = _init_linear(ks[1], d_model, d_model)
    p["wv"], p["bv"] = _init_linear(ks[2], d_model, d_model)
    p["wo"], p["bo"] = _init_linear(ks[3], d_model, d_model)
    p["w1"], p["b1"] = _init_linear(ks[4], d_model, d_ff)
    p["w2"], p["b2"] = _init_linear(ks[5], d_ff, d_model)
    p["ln1_g"] = jnp.ones((d_model,), jnp.float32)
    p["ln1_b"] = jnp.zeros((d_model,), jnp.float32)
    p["ln2_g"] = jnp.ones((d_model,), jnp.float32)
    p["ln2_b"] = jnp.zeros((d_model,), jnp.float32)
    return p


def init_params(key, cfg):
    D, seg, C, ff = cfg["d_model"], cfg["seg_len"], cfg["n_channels"], cfg["d_ff"]
    emb_len = cfg["seq_len"] // seg
    ks = jax.random.split(key, 4 + cfg["enc_blocks"] + cfg["dec_blocks"])
    params = {}
    # mask_emb ~ trunc_normal(std=0.02)
    params["mask_emb"] = jax.random.truncated_normal(ks[0], -2.0, 2.0, (D,), jnp.float32) * 0.02
    params["tok_w"], params["tok_b"] = _init_linear(ks[1], seg * C, D)     # ConvTokenizer
    params["rgs_w"], params["rgs_b"] = _init_linear(ks[2], D, seg * C)     # TimeRGSHead
    params["pos_emb"] = sincos_pos_emb(emb_len, D)                         # TimeEmbedding('sincos')
    params["enc_blocks"] = [_init_block(ks[4 + i], D, ff) for i in range(cfg["enc_blocks"])]
    params["dec_blocks"] = [_init_block(ks[4 + cfg["enc_blocks"] + i], D, ff)
                            for i in range(cfg["dec_blocks"])]
    return params


def prepare_params(params, cfg):
    """One-time (outside jit) re-layout: fused QKV slabs, stacked per-block params."""
    D, H = cfg["d_model"], cfg["n_heads"]
    Dh = D // H
    scale = 1.0 / math.sqrt(Dh)
    blocks = params["enc_blocks"] + params["dec_blocks"]

    def stack(fn):
        return jnp.stack([fn(p) for p in blocks], axis=0)

    return {
        "tok_w": params["tok_w"], "tok_b": params["tok_b"].reshape(1, -1),
        "rgs_w": params["rgs_w"], "rgs_b": params["rgs_b"].reshape(1, -1),
        "mask_emb": params["mask_emb"].reshape(1, -1),
        "pos_emb": params["pos_emb"],
        # fused QKV: (NB, D, 3D), 1/sqrt(Dh) folded into the Q columns / bias
        "wqkv": stack(lambda p: jnp.concatenate([p["wq"] * scale, p["wk"], p["wv"]], axis=1)),
        "bqkv": stack(lambda p: jnp.concatenate([p["bq"] * scale, p["bk"], p["bv"]]).reshape(1, -1)),
        "wo": stack(lambda p: p["wo"]),
        "bo": stack(lambda p: p["bo"].reshape(1, -1)),
        "w1": stack(lambda p: p["w1"]),
        "b1": stack(lambda p: p["b1"].reshape(1, -1)),
        "w2": stack(lambda p: p["w2"]),
        "b2": stack(lambda p: p["b2"].reshape(1, -1)),
        "ln1_g": stack(lambda p: p["ln1_g"].reshape(1, -1)),
        "ln1_b": stack(lambda p: p["ln1_b"].reshape(1, -1)),
        "ln2_g": stack(lambda p: p["ln2_g"].reshape(1, -1)),
        "ln2_b": stack(lambda p: p["ln2_b"].reshape(1, -1)),
    }


# ------------------------------------------------------------------ forward

def neurobert_mae_forward(prep, X, mask_key, cfg):
    B, S, C = X.shape
    seg = cfg["seg_len"]
    L = S // seg

    # patchify (ConvTokenizer with kernel=stride=seg_len) -- a free reshape
    patches = X.reshape(B, L, seg * C)

    # random masking (JAX glue)
    mask = gen_mask(mask_key, B, L, cfg["mask_ratio"]).astype(jnp.float32)[..., None]

    # single fused Pallas kernel: tokenizer -> encoder -> decoder -> RGS head + SSE
    Y, rowsse = pallas_forward(prep, patches, mask, cfg)

    X_reconstr = Y.reshape(B, S, C)
    # matches _loss_rgs with weight=None (mean over all B*S*C elements)
    loss_rgs = jnp.sum(rowsse) / float(B * S * C)
    loss_total = cfg["rgs_loss_scale"] * loss_rgs
    return X_reconstr, {"total": loss_total, "rgs": loss_rgs}


# ------------------------------------------------------------------ main

if __name__ == "__main__":
    key = jax.random.PRNGKey(0)
    k_param, k_data, k_mask = jax.random.split(key, 3)

    cfg = CFG
    params = init_params(k_param, cfg)
    prep = prepare_params(params, cfg)
    X = jax.random.normal(k_data, (cfg["batch"], cfg["seq_len"], cfg["n_channels"]),
                          jnp.float32)

    forward = jax.jit(functools.partial(neurobert_mae_forward, cfg=cfg))
    X_reconstr, loss = forward(prep, X, k_mask)
    X_reconstr = jax.block_until_ready(X_reconstr)
    loss_total = jax.block_until_ready(loss["total"])

    assert X_reconstr.shape == X.shape
    assert bool(jnp.isfinite(loss_total))
    print("KERNEL_OK")
</pallas_src>

<mosaic_0001>
module attributes {stable_mosaic.version = 11 : i64} {
  func.func @_forward_kernel(%arg0: i32, %arg1: memref<1x8x32xf32, #tpu.memory_space<vmem>>, %arg2: memref<1x8x1xf32, #tpu.memory_space<vmem>>, %arg3: memref<32x32xf32, #tpu.memory_space<vmem>>, %arg4: memref<1x32xf32, #tpu.memory_space<vmem>>, %arg5: memref<1x32xf32, #tpu.memory_space<vmem>>, %arg6: memref<8x32xf32, #tpu.memory_space<vmem>>, %arg7: memref<3x32x96xf32, #tpu.memory_space<vmem>>, %arg8: memref<3x1x96xf32, #tpu.memory_space<vmem>>, %arg9: memref<3x32x32xf32, #tpu.memory_space<vmem>>, %arg10: memref<3x1x32xf32, #tpu.memory_space<vmem>>, %arg11: memref<3x32x64xf32, #tpu.memory_space<vmem>>, %arg12: memref<3x1x64xf32, #tpu.memory_space<vmem>>, %arg13: memref<3x64x32xf32, #tpu.memory_space<vmem>>, %arg14: memref<3x1x32xf32, #tpu.memory_space<vmem>>, %arg15: memref<3x1x32xf32, #tpu.memory_space<vmem>>, %arg16: memref<3x1x32xf32, #tpu.memory_space<vmem>>, %arg17: memref<3x1x32xf32, #tpu.memory_space<vmem>>, %arg18: memref<3x1x32xf32, #tpu.memory_space<vmem>>, %arg19: memref<32x32xf32, #tpu.memory_space<vmem>>, %arg20: memref<1x32xf32, #tpu.memory_space<vmem>>, %arg21: memref<1x8x32xf32, #tpu.memory_space<vmem>>, %arg22: memref<1x8x1xf32, #tpu.memory_space<vmem>>) attributes {dimension_semantics = [#tpu.dimension_semantics<parallel>], iteration_bounds = array<i64: 2>, scalar_prefetch = 0 : i64, scratch_operands = 0 : i64, tpu.core_type = #tpu.core_type<tc>, window_params = [{transform_indices = @transform_0, window_bounds = array<i64: 1, 8, 32>}, {transform_indices = @transform_1, window_bounds = array<i64: 1, 8, 1>}, {pipeline_mode = #tpu.pipeline_mode<synchronous>, transform_indices = @transform_2, window_bounds = array<i64: 32, 32>}, {pipeline_mode = #tpu.pipeline_mode<synchronous>, transform_indices = @transform_3, window_bounds = array<i64: 1, 32>}, {pipeline_mode = #tpu.pipeline_mode<synchronous>, transform_indices = @transform_4, window_bounds = array<i64: 1, 32>}, {pipeline_mode = #tpu.pipeline_mode<synchronous>, transform_indices = @transform_5, window_bounds = array<i64: 8, 32>}, {pipeline_mode = #tpu.pipeline_mode<synchronous>, transform_indices = @transform_6, window_bounds = array<i64: 3, 32, 96>}, {pipeline_mode = #tpu.pipeline_mode<synchronous>, transform_indices = @transform_7, window_bounds = array<i64: 3, 1, 96>}, {pipeline_mode = #tpu.pipeline_mode<synchronous>, transform_indices = @transform_8, window_bounds = array<i64: 3, 32, 32>}, {pipeline_mode = #tpu.pipeline_mode<synchronous>, transform_indices = @transform_9, window_bounds = array<i64: 3, 1, 32>}, {pipeline_mode = #tpu.pipeline_mode<synchronous>, transform_indices = @transform_10, window_bounds = array<i64: 3, 32, 64>}, {pipeline_mode = #tpu.pipeline_mode<synchronous>, transform_indices = @transform_11, window_bounds = array<i64: 3, 1, 64>}, {pipeline_mode = #tpu.pipeline_mode<synchronous>, transform_indices = @transform_12, window_bounds = array<i64: 3, 64, 32>}, {pipeline_mode = #tpu.pipeline_mode<synchronous>, transform_indices = @transform_13, window_bounds = array<i64: 3, 1, 32>}, {pipeline_mode = #tpu.pipeline_mode<synchronous>, transform_indices = @transform_14, window_bounds = array<i64: 3, 1, 32>}, {pipeline_mode = #tpu.pipeline_mode<synchronous>, transform_indices = @transform_15, window_bounds = array<i64: 3, 1, 32>}, {pipeline_mode = #tpu.pipeline_mode<synchronous>, transform_indices = @transform_16, window_bounds = array<i64: 3, 1, 32>}, {pipeline_mode = #tpu.pipeline_mode<synchronous>, transform_indices = @transform_17, window_bounds = array<i64: 3, 1, 32>}, {pipeline_mode = #tpu.pipeline_mode<synchronous>, transform_indices = @transform_18, window_bounds = array<i64: 32, 32>}, {pipeline_mode = #tpu.pipeline_mode<synchronous>, transform_indices = @transform_19, window_bounds = array<i64: 1, 32>}, {transform_indices = @transform_20, window_bounds = array<i64: 1, 8, 32>}, {transform_indices = @transform_21, window_bounds = array<i64: 1, 8, 1>}]} {
    %c0 = arith.constant 0 : index
    %c0_0 = arith.constant 0 : index
    %c0_1 = arith.constant 0 : index
    %0 = vector.load %arg1[%c0, %c0_0, %c0_1] : memref<1x8x32xf32, #tpu.memory_space<vmem>>, vector<1x8x32xf32>
    %1 = vector.shape_cast %0 : vector<1x8x32xf32> to vector<8x32xf32>
    %c0_2 = arith.constant 0 : index
    %c0_3 = arith.constant 0 : index
    %2 = vector.load %arg3[%c0_2, %c0_3] : memref<32x32xf32, #tpu.memory_space<vmem>>, vector<32x32xf32>
    %cst = arith.constant dense<0.000000e+00> : vector<8x32xf32>
    %3 = tpu.matmul %1, %2, %cst {dimension_numbers = #tpu.dot_dimension_numbers<[1], [0], [0], [1], [0, 0, 1, 1], [], []>} : vector<8x32xf32>, vector<32x32xf32>, vector<8x32xf32> -> vector<8x32xf32>
    %c0_4 = arith.constant 0 : index
    %c0_5 = arith.constant 0 : index
    %4 = vector.load %arg4[%c0_4, %c0_5] : memref<1x32xf32, #tpu.memory_space<vmem>>, vector<1x32xf32>
    %5 = vector.broadcast %4 : vector<1x32xf32> to vector<8x32xf32>
    %6 = arith.addf %3, %5 : vector<8x32xf32>
    %c0_6 = arith.constant 0 : index
    %c0_7 = arith.constant 0 : index
    %c0_8 = arith.constant 0 : index
    %7 = vector.load %arg2[%c0_6, %c0_7, %c0_8] : memref<1x8x1xf32, #tpu.memory_space<vmem>>, vector<1x8x1xf32>
    %8 = vector.shape_cast %7 : vector<1x8x1xf32> to vector<8x1xf32>
    %c0_9 = arith.constant 0 : index
    %c0_10 = arith.constant 0 : index
    %9 = vector.load %arg6[%c0_9, %c0_10] : memref<8x32xf32, #tpu.memory_space<vmem>>, vector<8x32xf32>
    %c0_11 = arith.constant 0 : index
    %c0_12 = arith.constant 0 : index
    %10 = vector.load %arg5[%c0_11, %c0_12] : memref<1x32xf32, #tpu.memory_space<vmem>>, vector<1x32xf32>
    %11 = vector.broadcast %10 : vector<1x32xf32> to vector<8x32xf32>
    %12 = arith.subf %11, %6 : vector<8x32xf32>
    %13 = vector.broadcast %8 : vector<8x1xf32> to vector<8x32xf32>
    %14 = arith.mulf %13, %12 : vector<8x32xf32>
    %15 = arith.addf %6, %14 : vector<8x32xf32>
    %16 = arith.addf %15, %9 : vector<8x32xf32>
    %c0_13 = arith.constant 0 : index
    %c0_14 = arith.constant 0 : index
    %c0_15 = arith.constant 0 : index
    %17 = vector.load %arg7[%c0_13, %c0_14, %c0_15] : memref<3x32x96xf32, #tpu.memory_space<vmem>>, vector<1x32x96xf32>
    %18 = vector.shape_cast %17 : vector<1x32x96xf32> to vector<32x96xf32>
    %cst_16 = arith.constant dense<0.000000e+00> : vector<8x96xf32>
    %19 = tpu.matmul %16, %18, %cst_16 {dimension_numbers = #tpu.dot_dimension_numbers<[1], [0], [0], [1], [0, 0, 1, 1], [], []>} : vector<8x32xf32>, vector<32x96xf32>, vector<8x96xf32> -> vector<8x96xf32>
    %c0_17 = arith.constant 0 : index
    %c0_18 = arith.constant 0 : index
    %c0_19 = arith.constant 0 : index
    %20 = vector.load %arg8[%c0_17, %c0_18, %c0_19] : memref<3x1x96xf32, #tpu.memory_space<vmem>>, vector<1x1x96xf32>
    %21 = vector.shape_cast %20 : vector<1x1x96xf32> to vector<1x96xf32>
    %22 = vector.broadcast %21 : vector<1x96xf32> to vector<8x96xf32>
    %23 = arith.addf %19, %22 : vector<8x96xf32>
    %24 = vector.extract_strided_slice %23 {offsets = [0, 0], sizes = [8, 8], strides = [1, 1]} : vector<8x96xf32> to vector<8x8xf32>
    %25 = vector.extract_strided_slice %23 {offsets = [0, 32], sizes = [8, 8], strides = [1, 1]} : vector<8x96xf32> to vector<8x8xf32>
    %26 = vector.extract_strided_slice %23 {offsets = [0, 64], sizes = [8, 8], strides = [1, 1]} : vector<8x96xf32> to vector<8x8xf32>
    %cst_20 = arith.constant dense<0.000000e+00> : vector<8x8xf32>
    %27 = tpu.matmul %24, %25, %cst_20 {dimension_numbers = #tpu.dot_dimension_numbers<[1], [1], [0], [0], [0, 0, 1, 0], [], []>} : vector<8x8xf32>, vector<8x8xf32>, vector<8x8xf32> -> vector<8x8xf32>
    %28 = vector.extract_strided_slice %23 {offsets = [0, 8], sizes = [8, 8], strides = [1, 1]} : vector<8x96xf32> to vector<8x8xf32>
    %29 = vector.extract_strided_slice %23 {offsets = [0, 40], sizes = [8, 8], strides = [1, 1]} : vector<8x96xf32> to vector<8x8xf32>
    %30 = vector.extract_strided_slice %23 {offsets = [0, 72], sizes = [8, 8], strides = [1, 1]} : vector<8x96xf32> to vector<8x8xf32>
    %cst_21 = arith.constant dense<0.000000e+00> : vector<8x8xf32>
    %31 = tpu.matmul %28, %29, %cst_21 {dimension_numbers = #tpu.dot_dimension_numbers<[1], [1], [0], [0], [0, 0, 1, 0], [], []>} : vector<8x8xf32>, vector<8x8xf32>, vector<8x8xf32> -> vector<8x8xf32>
    %32 = vector.extract_strided_slice %23 {offsets = [0, 16], sizes = [8, 8], strides = [1, 1]} : vector<8x96xf32> to vector<8x8xf32>
    %33 = vector.extract_strided_slice %23 {offsets = [0, 48], sizes = [8, 8], strides = [1, 1]} : vector<8x96xf32> to vector<8x8xf32>
    %34 = vector.extract_strided_slice %23 {offsets = [0, 80], sizes = [8, 8], strides = [1, 1]} : vector<8x96xf32> to vector<8x8xf32>
    %cst_22 = arith.constant dense<0.000000e+00> : vector<8x8xf32>
    %35 = tpu.matmul %32, %33, %cst_22 {dimension_numbers = #tpu.dot_dimension_numbers<[1], [1], [0], [0], [0, 0, 1, 0], [], []>} : vector<8x8xf32>, vector<8x8xf32>, vector<8x8xf32> -> vector<8x8xf32>
    %36 = vector.extract_strided_slice %23 {offsets = [0, 24], sizes = [8, 8], strides = [1, 1]} : vector<8x96xf32> to vector<8x8xf32>
    %37 = vector.extract_strided_slice %23 {offsets = [0, 56], sizes = [8, 8], strides = [1, 1]} : vector<8x96xf32> to vector<8x8xf32>
    %38 = vector.extract_strided_slice %23 {offsets = [0, 88], sizes = [8, 8], strides = [1, 1]} : vector<8x96xf32> to vector<8x8xf32>
    %cst_23 = arith.constant dense<0.000000e+00> : vector<8x8xf32>
    %39 = tpu.matmul %36, %37, %cst_23 {dimension_numbers = #tpu.dot_dimension_numbers<[1], [1], [0], [0], [0, 0, 1, 0], [], []>} : vector<8x8xf32>, vector<8x8xf32>, vector<8x8xf32> -> vector<8x8xf32>
    %40 = tpu.concatenate %27, %31, %35, %39 in 0 : vector<8x8xf32>, vector<8x8xf32>, vector<8x8xf32>, vector<8x8xf32> -> vector<32x8xf32>
    %cst_24 = arith.constant dense<0xFF800000> : vector<32xf32>
    %41 = vector.multi_reduction <maximumf>, %40, %cst_24 [1] : vector<32x8xf32> to vector<32xf32>
    %42 = vector.shape_cast %41 : vector<32xf32> to vector<32x1xf32>
    %43 = vector.broadcast %42 : vector<32x1xf32> to vector<32x8xf32>
    %44 = arith.subf %40, %43 : vector<32x8xf32>
    %45 = math.exp %44 : vector<32x8xf32>
    %cst_25 = arith.constant dense<0.000000e+00> : vector<32xf32>
    %46 = vector.multi_reduction <add>, %45, %cst_25 [1] : vector<32x8xf32> to vector<32xf32>
    %47 = vector.shape_cast %46 : vector<32xf32> to vector<32x1xf32>
    %48 = tpu.reciprocal %47 {approx = true} : vector<32x1xf32> -> vector<32x1xf32>
    %49 = vector.broadcast %48 : vector<32x1xf32> to vector<32x8xf32>
    %50 = arith.mulf %45, %49 : vector<32x8xf32>
    %51 = vector.extract_strided_slice %50 {offsets = [0, 0], sizes = [8, 8], strides = [1, 1]} : vector<32x8xf32> to vector<8x8xf32>
    %cst_26 = arith.constant dense<0.000000e+00> : vector<8x8xf32>
    %52 = tpu.matmul %51, %26, %cst_26 {dimension_numbers = #tpu.dot_dimension_numbers<[1], [0], [0], [1], [0, 0, 1, 1], [], []>} : vector<8x8xf32>, vector<8x8xf32>, vector<8x8xf32> -> vector<8x8xf32>
    %53 = vector.extract_strided_slice %50 {offsets = [8, 0], sizes = [8, 8], strides = [1, 1]} : vector<32x8xf32> to vector<8x8xf32>
    %cst_27 = arith.constant dense<0.000000e+00> : vector<8x8xf32>
    %54 = tpu.matmul %53, %30, %cst_27 {dimension_numbers = #tpu.dot_dimension_numbers<[1], [0], [0], [1], [0, 0, 1, 1], [], []>} : vector<8x8xf32>, vector<8x8xf32>, vector<8x8xf32> -> vector<8x8xf32>
    %55 = vector.extract_strided_slice %50 {offsets = [16, 0], sizes = [8, 8], strides = [1, 1]} : vector<32x8xf32> to vector<8x8xf32>
    %cst_28 = arith.constant dense<0.000000e+00> : vector<8x8xf32>
    %56 = tpu.matmul %55, %34, %cst_28 {dimension_numbers = #tpu.dot_dimension_numbers<[1], [0], [0], [1], [0, 0, 1, 1], [], []>} : vector<8x8xf32>, vector<8x8xf32>, vector<8x8xf32> -> vector<8x8xf32>
    %57 = vector.extract_strided_slice %50 {offsets = [24, 0], sizes = [8, 8], strides = [1, 1]} : vector<32x8xf32> to vector<8x8xf32>
    %cst_29 = arith.constant dense<0.000000e+00> : vector<8x8xf32>
    %58 = tpu.matmul %57, %38, %cst_29 {dimension_numbers = #tpu.dot_dimension_numbers<[1], [0], [0], [1], [0, 0, 1, 1], [], []>} : vector<8x8xf32>, vector<8x8xf32>, vector<8x8xf32> -> vector<8x8xf32>
    %59 = tpu.concatenate %52, %54, %56, %58 in 1 : vector<8x8xf32>, vector<8x8xf32>, vector<8x8xf32>, vector<8x8xf32> -> vector<8x32xf32>
    %c0_30 = arith.constant 0 : index
    %c0_31 = arith.constant 0 : index
    %c0_32 = arith.constant 0 : index
    %60 = vector.load %arg9[%c0_30, %c0_31, %c0_32] : memref<3x32x32xf32, #tpu.memory_space<vmem>>, vector<1x32x32xf32>
    %61 = vector.shape_cast %60 : vector<1x32x32xf32> to vector<32x32xf32>
    %cst_33 = arith.constant dense<0.000000e+00> : vector<8x32xf32>
    %62 = tpu.matmul %59, %61, %cst_33 {dimension_numbers = #tpu.dot_dimension_numbers<[1], [0], [0], [1], [0, 0, 1, 1], [], []>} : vector<8x32xf32>, vector<32x32xf32>, vector<8x32xf32> -> vector<8x32xf32>
    %c0_34 = arith.constant 0 : index
    %c0_35 = arith.constant 0 : index
    %c0_36 = arith.constant 0 : index
    %63 = vector.load %arg10[%c0_34, %c0_35, %c0_36] : memref<3x1x32xf32, #tpu.memory_space<vmem>>, vector<1x1x32xf32>
    %64 = vector.shape_cast %63 : vector<1x1x32xf32> to vector<1x32xf32>
    %65 = vector.broadcast %64 : vector<1x32xf32> to vector<8x32xf32>
    %66 = arith.addf %62, %65 : vector<8x32xf32>
    %67 = arith.addf %16, %66 : vector<8x32xf32>
    %c0_37 = arith.constant 0 : index
    %c0_38 = arith.constant 0 : index
    %c0_39 = arith.constant 0 : index
    %68 = vector.load %arg15[%c0_37, %c0_38, %c0_39] : memref<3x1x32xf32, #tpu.memory_space<vmem>>, vector<1x1x32xf32>
    %69 = vector.shape_cast %68 : vector<1x1x32xf32> to vector<1x32xf32>
    %c0_40 = arith.constant 0 : index
    %c0_41 = arith.constant 0 : index
    %c0_42 = arith.constant 0 : index
    %70 = vector.load %arg16[%c0_40, %c0_41, %c0_42] : memref<3x1x32xf32, #tpu.memory_space<vmem>>, vector<1x1x32xf32>
    %71 = vector.shape_cast %70 : vector<1x1x32xf32> to vector<1x32xf32>
    %cst_43 = arith.constant dense<0.000000e+00> : vector<8xf32>
    %72 = vector.multi_reduction <add>, %67, %cst_43 [1] : vector<8x32xf32> to vector<8xf32>
    %73 = vector.shape_cast %72 : vector<8xf32> to vector<8x1xf32>
    %cst_44 = arith.constant 3.200000e+01 : f32
    %74 = vector.broadcast %cst_44 : f32 to vector<8x1xf32>
    %75 = arith.divf %73, %74 : vector<8x1xf32>
    %76 = vector.broadcast %75 : vector<8x1xf32> to vector<8x32xf32>
    %77 = arith.subf %67, %76 : vector<8x32xf32>
    %78 = arith.mulf %77, %77 : vector<8x32xf32>
    %cst_45 = arith.constant dense<0.000000e+00> : vector<8xf32>
    %79 = vector.multi_reduction <add>, %78, %cst_45 [1] : vector<8x32xf32> to vector<8xf32>
    %80 = vector.shape_cast %79 : vector<8xf32> to vector<8x1xf32>
    %cst_46 = arith.constant 3.200000e+01 : f32
    %81 = vector.broadcast %cst_46 : f32 to vector<8x1xf32>
    %82 = arith.divf %80, %81 : vector<8x1xf32>
    %83 = vector.broadcast %75 : vector<8x1xf32> to vector<8x32xf32>
    %84 = arith.subf %67, %83 : vector<8x32xf32>
    %cst_47 = arith.constant 9.99999974E-6 : f32
    %85 = vector.broadcast %cst_47 : f32 to vector<8x1xf32>
    %86 = arith.addf %82, %85 : vector<8x1xf32>
    %87 = math.rsqrt %86 : vector<8x1xf32>
    %88 = vector.broadcast %87 : vector<8x1xf32> to vector<8x32xf32>
    %89 = arith.mulf %84, %88 : vector<8x32xf32>
    %90 = vector.broadcast %69 : vector<1x32xf32> to vector<8x32xf32>
    %91 = arith.mulf %89, %90 : vector<8x32xf32>
    %92 = vector.broadcast %71 : vector<1x32xf32> to vector<8x32xf32>
    %93 = arith.addf %91, %92 : vector<8x32xf32>
    %c0_48 = arith.constant 0 : index
    %c0_49 = arith.constant 0 : index
    %c0_50 = arith.constant 0 : index
    %94 = vector.load %arg11[%c0_48, %c0_49, %c0_50] : memref<3x32x64xf32, #tpu.memory_space<vmem>>, vector<1x32x64xf32>
    %95 = vector.shape_cast %94 : vector<1x32x64xf32> to vector<32x64xf32>
    %cst_51 = arith.constant dense<0.000000e+00> : vector<8x64xf32>
    %96 = tpu.matmul %93, %95, %cst_51 {dimension_numbers = #tpu.dot_dimension_numbers<[1], [0], [0], [1], [0, 0, 1, 1], [], []>} : vector<8x32xf32>, vector<32x64xf32>, vector<8x64xf32> -> vector<8x64xf32>
    %c0_52 = arith.constant 0 : index
    %c0_53 = arith.constant 0 : index
    %c0_54 = arith.constant 0 : index
    %97 = vector.load %arg12[%c0_52, %c0_53, %c0_54] : memref<3x1x64xf32, #tpu.memory_space<vmem>>, vector<1x1x64xf32>
    %98 = vector.shape_cast %97 : vector<1x1x64xf32> to vector<1x64xf32>
    %99 = vector.broadcast %98 : vector<1x64xf32> to vector<8x64xf32>
    %100 = arith.addf %96, %99 : vector<8x64xf32>
    %101 = arith.mulf %100, %100 : vector<8x64xf32>
    %102 = arith.mulf %100, %101 : vector<8x64xf32>
    %cst_55 = arith.constant 4.471500e-02 : f32
    %103 = vector.broadcast %cst_55 : f32 to vector<8x64xf32>
    %104 = arith.mulf %103, %102 : vector<8x64xf32>
    %105 = arith.addf %100, %104 : vector<8x64xf32>
    %cst_56 = arith.constant 0.797884583 : f32
    %106 = vector.broadcast %cst_56 : f32 to vector<8x64xf32>
    %107 = arith.mulf %106, %105 : vector<8x64xf32>
    %108 = math.tanh %107 : vector<8x64xf32>
    %cst_57 = arith.constant 1.000000e+00 : f32
    %109 = vector.broadcast %cst_57 : f32 to vector<8x64xf32>
    %110 = arith.addf %109, %108 : vector<8x64xf32>
    %cst_58 = arith.constant 5.000000e-01 : f32
    %111 = vector.broadcast %cst_58 : f32 to vector<8x64xf32>
    %112 = arith.mulf %111, %110 : vector<8x64xf32>
    %113 = arith.mulf %100, %112 : vector<8x64xf32>
    %c0_59 = arith.constant 0 : index
    %c0_60 = arith.constant 0 : index
    %c0_61 = arith.constant 0 : index
    %114 = vector.load %arg13[%c0_59, %c0_60, %c0_61] : memref<3x64x32xf32, #tpu.memory_space<vmem>>, vector<1x64x32xf32>
    %115 = vector.shape_cast %114 : vector<1x64x32xf32> to vector<64x32xf32>
    %cst_62 = arith.constant dense<0.000000e+00> : vector<8x32xf32>
    %116 = tpu.matmul %113, %115, %cst_62 {dimension_numbers = #tpu.dot_dimension_numbers<[1], [0], [0], [1], [0, 0, 1, 1], [], []>} : vector<8x64xf32>, vector<64x32xf32>, vector<8x32xf32> -> vector<8x32xf32>
    %c0_63 = arith.constant 0 : index
    %c0_64 = arith.constant 0 : index
    %c0_65 = arith.constant 0 : index
    %117 = vector.load %arg14[%c0_63, %c0_64, %c0_65] : memref<3x1x32xf32, #tpu.memory_space<vmem>>, vector<1x1x32xf32>
    %118 = vector.shape_cast %117 : vector<1x1x32xf32> to vector<1x32xf32>
    %119 = vector.broadcast %118 : vector<1x32xf32> to vector<8x32xf32>
    %120 = arith.addf %116, %119 : vector<8x32xf32>
    %121 = arith.addf %93, %120 : vector<8x32xf32>
    %c0_66 = arith.constant 0 : index
    %c0_67 = arith.constant 0 : index
    %c0_68 = arith.constant 0 : index
    %122 = vector.load %arg17[%c0_66, %c0_67, %c0_68] : memref<3x1x32xf32, #tpu.memory_space<vmem>>, vector<1x1x32xf32>
    %123 = vector.shape_cast %122 : vector<1x1x32xf32> to vector<1x32xf32>
    %c0_69 = arith.constant 0 : index
    %c0_70 = arith.constant 0 : index
    %c0_71 = arith.constant 0 : index
    %124 = vector.load %arg18[%c0_69, %c0_70, %c0_71] : memref<3x1x32xf32, #tpu.memory_space<vmem>>, vector<1x1x32xf32>
    %125 = vector.shape_cast %124 : vector<1x1x32xf32> to vector<1x32xf32>
    %cst_72 = arith.constant dense<0.000000e+00> : vector<8xf32>
    %126 = vector.multi_reduction <add>, %121, %cst_72 [1] : vector<8x32xf32> to vector<8xf32>
    %127 = vector.shape_cast %126 : vector<8xf32> to vector<8x1xf32>
    %cst_73 = arith.constant 3.200000e+01 : f32
    %128 = vector.broadcast %cst_73 : f32 to vector<8x1xf32>
    %129 = arith.divf %127, %128 : vector<8x1xf32>
    %130 = vector.broadcast %129 : vector<8x1xf32> to vector<8x32xf32>
    %131 = arith.subf %121, %130 : vector<8x32xf32>
    %132 = arith.mulf %131, %131 : vector<8x32xf32>
    %cst_74 = arith.constant dense<0.000000e+00> : vector<8xf32>
    %133 = vector.multi_reduction <add>, %132, %cst_74 [1] : vector<8x32xf32> to vector<8xf32>
    %134 = vector.shape_cast %133 : vector<8xf32> to vector<8x1xf32>
    %cst_75 = arith.constant 3.200000e+01 : f32
    %135 = vector.broadcast %cst_75 : f32 to vector<8x1xf32>
    %136 = arith.divf %134, %135 : vector<8x1xf32>
    %137 = vector.broadcast %129 : vector<8x1xf32> to vector<8x32xf32>
    %138 = arith.subf %121, %137 : vector<8x32xf32>
    %cst_76 = arith.constant 9.99999974E-6 : f32
    %139 = vector.broadcast %cst_76 : f32 to vector<8x1xf32>
    %140 = arith.addf %136, %139 : vector<8x1xf32>
    %141 = math.rsqrt %140 : vector<8x1xf32>
    %142 = vector.broadcast %141 : vector<8x1xf32> to vector<8x32xf32>
    %143 = arith.mulf %138, %142 : vector<8x32xf32>
    %144 = vector.broadcast %123 : vector<1x32xf32> to vector<8x32xf32>
    %145 = arith.mulf %143, %144 : vector<8x32xf32>
    %146 = vector.broadcast %125 : vector<1x32xf32> to vector<8x32xf32>
    %147 = arith.addf %145, %146 : vector<8x32xf32>
    %c1 = arith.constant 1 : index
    %c0_77 = arith.constant 0 : index
    %c0_78 = arith.constant 0 : index
    %148 = vector.load %arg7[%c1, %c0_77, %c0_78] : memref<3x32x96xf32, #tpu.memory_space<vmem>>, vector<1x32x96xf32>
    %149 = vector.shape_cast %148 : vector<1x32x96xf32> to vector<32x96xf32>
    %cst_79 = arith.constant dense<0.000000e+00> : vector<8x96xf32>
    %150 = tpu.matmul %147, %149, %cst_79 {dimension_numbers = #tpu.dot_dimension_numbers<[1], [0], [0], [1], [0, 0, 1, 1], [], []>} : vector<8x32xf32>, vector<32x96xf32>, vector<8x96xf32> -> vector<8x96xf32>
    %c1_80 = arith.constant 1 : index
    %c0_81 = arith.constant 0 : index
    %c0_82 = arith.constant 0 : index
    %151 = vector.load %arg8[%c1_80, %c0_81, %c0_82] : memref<3x1x96xf32, #tpu.memory_space<vmem>>, vector<1x1x96xf32>
    %152 = vector.shape_cast %151 : vector<1x1x96xf32> to vector<1x96xf32>
    %153 = vector.broadcast %152 : vector<1x96xf32> to vector<8x96xf32>
    %154 = arith.addf %150, %153 : vector<8x96xf32>
    %155 = vector.extract_strided_slice %154 {offsets = [0, 0], sizes = [8, 8], strides = [1, 1]} : vector<8x96xf32> to vector<8x8xf32>
    %156 = vector.extract_strided_slice %154 {offsets = [0, 32], sizes = [8, 8], strides = [1, 1]} : vector<8x96xf32> to vector<8x8xf32>
    %157 = vector.extract_strided_slice %154 {offsets = [0, 64], sizes = [8, 8], strides = [1, 1]} : vector<8x96xf32> to vector<8x8xf32>
    %cst_83 = arith.constant dense<0.000000e+00> : vector<8x8xf32>
    %158 = tpu.matmul %155, %156, %cst_83 {dimension_numbers = #tpu.dot_dimension_numbers<[1], [1], [0], [0], [0, 0, 1, 0], [], []>} : vector<8x8xf32>, vector<8x8xf32>, vector<8x8xf32> -> vector<8x8xf32>
    %159 = vector.extract_strided_slice %154 {offsets = [0, 8], sizes = [8, 8], strides = [1, 1]} : vector<8x96xf32> to vector<8x8xf32>
    %160 = vector.extract_strided_slice %154 {offsets = [0, 40], sizes = [8, 8], strides = [1, 1]} : vector<8x96xf32> to vector<8x8xf32>
    %161 = vector.extract_strided_slice %154 {offsets = [0, 72], sizes = [8, 8], strides = [1, 1]} : vector<8x96xf32> to vector<8x8xf32>
    %cst_84 = arith.constant dense<0.000000e+00> : vector<8x8xf32>
    %162 = tpu.matmul %159, %160, %cst_84 {dimension_numbers = #tpu.dot_dimension_numbers<[1], [1], [0], [0], [0, 0, 1, 0], [], []>} : vector<8x8xf32>, vector<8x8xf32>, vector<8x8xf32> -> vector<8x8xf32>
    %163 = vector.extract_strided_slice %154 {offsets = [0, 16], sizes = [8, 8], strides = [1, 1]} : vector<8x96xf32> to vector<8x8xf32>
    %164 = vector.extract_strided_slice %154 {offsets = [0, 48], sizes = [8, 8], strides = [1, 1]} : vector<8x96xf32> to vector<8x8xf32>
    %165 = vector.extract_strided_slice %154 {offsets = [0, 80], sizes = [8, 8], strides = [1, 1]} : vector<8x96xf32> to vector<8x8xf32>
    %cst_85 = arith.constant dense<0.000000e+00> : vector<8x8xf32>
    %166 = tpu.matmul %163, %164, %cst_85 {dimension_numbers = #tpu.dot_dimension_numbers<[1], [1], [0], [0], [0, 0, 1, 0], [], []>} : vector<8x8xf32>, vector<8x8xf32>, vector<8x8xf32> -> vector<8x8xf32>
    %167 = vector.extract_strided_slice %154 {offsets = [0, 24], sizes = [8, 8], strides = [1, 1]} : vector<8x96xf32> to vector<8x8xf32>
    %168 = vector.extract_strided_slice %154 {offsets = [0, 56], sizes = [8, 8], strides = [1, 1]} : vector<8x96xf32> to vector<8x8xf32>
    %169 = vector.extract_strided_slice %154 {offsets = [0, 88], sizes = [8, 8], strides = [1, 1]} : vector<8x96xf32> to vector<8x8xf32>
    %cst_86 = arith.constant dense<0.000000e+00> : vector<8x8xf32>
    %170 = tpu.matmul %167, %168, %cst_86 {dimension_numbers = #tpu.dot_dimension_numbers<[1], [1], [0], [0], [0, 0, 1, 0], [], []>} : vector<8x8xf32>, vector<8x8xf32>, vector<8x8xf32> -> vector<8x8xf32>
    %171 = tpu.concatenate %158, %162, %166, %170 in 0 : vector<8x8xf32>, vector<8x8xf32>, vector<8x8xf32>, vector<8x8xf32> -> vector<32x8xf32>
    %cst_87 = arith.constant dense<0xFF800000> : vector<32xf32>
    %172 = vector.multi_reduction <maximumf>, %171, %cst_87 [1] : vector<32x8xf32> to vector<32xf32>
    %173 = vector.shape_cast %172 : vector<32xf32> to vector<32x1xf32>
    %174 = vector.broadcast %173 : vector<32x1xf32> to vector<32x8xf32>
    %175 = arith.subf %171, %174 : vector<32x8xf32>
    %176 = math.exp %175 : vector<32x8xf32>
    %cst_88 = arith.constant dense<0.000000e+00> : vector<32xf32>
    %177 = vector.multi_reduction <add>, %176, %cst_88 [1] : vector<32x8xf32> to vector<32xf32>
    %178 = vector.shape_cast %177 : vector<32xf32> to vector<32x1xf32>
    %179 = tpu.reciprocal %178 {approx = true} : vector<32x1xf32> -> vector<32x1xf32>
    %180 = vector.broadcast %179 : vector<32x1xf32> to vector<32x8xf32>
    %181 = arith.mulf %176, %180 : vector<32x8xf32>
    %182 = vector.extract_strided_slice %181 {offsets = [0, 0], sizes = [8, 8], strides = [1, 1]} : vector<32x8xf32> to vector<8x8xf32>
    %cst_89 = arith.constant dense<0.000000e+00> : vector<8x8xf32>
    %183 = tpu.matmul %182, %157, %cst_89 {dimension_numbers = #tpu.dot_dimension_numbers<[1], [0], [0], [1], [0, 0, 1, 1], [], []>} : vector<8x8xf32>, vector<8x8xf32>, vector<8x8xf32> -> vector<8x8xf32>
    %184 = vector.extract_strided_slice %181 {offsets = [8, 0], sizes = [8, 8], strides = [1, 1]} : vector<32x8xf32> to vector<8x8xf32>
    %cst_90 = arith.constant dense<0.000000e+00> : vector<8x8xf32>
    %185 = tpu.matmul %184, %161, %cst_90 {dimension_numbers = #tpu.dot_dimension_numbers<[1], [0], [0], [1], [0, 0, 1, 1], [], []>} : vector<8x8xf32>, vector<8x8xf32>, vector<8x8xf32> -> vector<8x8xf32>
    %186 = vector.extract_strided_slice %181 {offsets = [16, 0], sizes = [8, 8], strides = [1, 1]} : vector<32x8xf32> to vector<8x8xf32>
    %cst_91 = arith.constant dense<0.000000e+00> : vector<8x8xf32>
    %187 = tpu.matmul %186, %165, %cst_91 {dimension_numbers = #tpu.dot_dimension_numbers<[1], [0], [0], [1], [0, 0, 1, 1], [], []>} : vector<8x8xf32>, vector<8x8xf32>, vector<8x8xf32> -> vector<8x8xf32>
    %188 = vector.extract_strided_slice %181 {offsets = [24, 0], sizes = [8, 8], strides = [1, 1]} : vector<32x8xf32> to vector<8x8xf32>
    %cst_92 = arith.constant dense<0.000000e+00> : vector<8x8xf32>
    %189 = tpu.matmul %188, %169, %cst_92 {dimension_numbers = #tpu.dot_dimension_numbers<[1], [0], [0], [1], [0, 0, 1, 1], [], []>} : vector<8x8xf32>, vector<8x8xf32>, vector<8x8xf32> -> vector<8x8xf32>
    %190 = tpu.concatenate %183, %185, %187, %189 in 1 : vector<8x8xf32>, vector<8x8xf32>, vector<8x8xf32>, vector<8x8xf32> -> vector<8x32xf32>
    %c1_93 = arith.constant 1 : index
    %c0_94 = arith.constant 0 : index
    %c0_95 = arith.constant 0 : index
    %191 = vector.load %arg9[%c1_93, %c0_94, %c0_95] : memref<3x32x32xf32, #tpu.memory_space<vmem>>, vector<1x32x32xf32>
    %192 = vector.shape_cast %191 : vector<1x32x32xf32> to vector<32x32xf32>
    %cst_96 = arith.constant dense<0.000000e+00> : vector<8x32xf32>
    %193 = tpu.matmul %190, %192, %cst_96 {dimension_numbers = #tpu.dot_dimension_numbers<[1], [0], [0], [1], [0, 0, 1, 1], [], []>} : vector<8x32xf32>, vector<32x32xf32>, vector<8x32xf32> -> vector<8x32xf32>
    %c1_97 = arith.constant 1 : index
    %c0_98 = arith.constant 0 : index
    %c0_99 = arith.constant 0 : index
    %194 = vector.load %arg10[%c1_97, %c0_98, %c0_99] : memref<3x1x32xf32, #tpu.memory_space<vmem>>, vector<1x1x32xf32>
    %195 = vector.shape_cast %194 : vector<1x1x32xf32> to vector<1x32xf32>
    %196 = vector.broadcast %195 : vector<1x32xf32> to vector<8x32xf32>
    %197 = arith.addf %193, %196 : vector<8x32xf32>
    %198 = arith.addf %147, %197 : vector<8x32xf32>
    %c1_100 = arith.constant 1 : index
    %c0_101 = arith.constant 0 : index
    %c0_102 = arith.constant 0 : index
    %199 = vector.load %arg15[%c1_100, %c0_101, %c0_102] : memref<3x1x32xf32, #tpu.memory_space<vmem>>, vector<1x1x32xf32>
    %200 = vector.shape_cast %199 : vector<1x1x32xf32> to vector<1x32xf32>
    %c1_103 = arith.constant 1 : index
    %c0_104 = arith.constant 0 : index
    %c0_105 = arith.constant 0 : index
    %201 = vector.load %arg16[%c1_103, %c0_104, %c0_105] : memref<3x1x32xf32, #tpu.memory_space<vmem>>, vector<1x1x32xf32>
    %202 = vector.shape_cast %201 : vector<1x1x32xf32> to vector<1x32xf32>
    %cst_106 = arith.constant dense<0.000000e+00> : vector<8xf32>
    %203 = vector.multi_reduction <add>, %198, %cst_106 [1] : vector<8x32xf32> to vector<8xf32>
    %204 = vector.shape_cast %203 : vector<8xf32> to vector<8x1xf32>
    %cst_107 = arith.constant 3.200000e+01 : f32
    %205 = vector.broadcast %cst_107 : f32 to vector<8x1xf32>
    %206 = arith.divf %204, %205 : vector<8x1xf32>
    %207 = vector.broadcast %206 : vector<8x1xf32> to vector<8x32xf32>
    %208 = arith.subf %198, %207 : vector<8x32xf32>
    %209 = arith.mulf %208, %208 : vector<8x32xf32>
    %cst_108 = arith.constant dense<0.000000e+00> : vector<8xf32>
    %210 = vector.multi_reduction <add>, %209, %cst_108 [1] : vector<8x32xf32> to vector<8xf32>
    %211 = vector.shape_cast %210 : vector<8xf32> to vector<8x1xf32>
    %cst_109 = arith.constant 3.200000e+01 : f32
    %212 = vector.broadcast %cst_109 : f32 to vector<8x1xf32>
    %213 = arith.divf %211, %212 : vector<8x1xf32>
    %214 = vector.broadcast %206 : vector<8x1xf32> to vector<8x32xf32>
    %215 = arith.subf %198, %214 : vector<8x32xf32>
    %cst_110 = arith.constant 9.99999974E-6 : f32
    %216 = vector.broadcast %cst_110 : f32 to vector<8x1xf32>
    %217 = arith.addf %213, %216 : vector<8x1xf32>
    %218 = math.rsqrt %217 : vector<8x1xf32>
    %219 = vector.broadcast %218 : vector<8x1xf32> to vector<8x32xf32>
    %220 = arith.mulf %215, %219 : vector<8x32xf32>
    %221 = vector.broadcast %200 : vector<1x32xf32> to vector<8x32xf32>
    %222 = arith.mulf %220, %221 : vector<8x32xf32>
    %223 = vector.broadcast %202 : vector<1x32xf32> to vector<8x32xf32>
    %224 = arith.addf %222, %223 : vector<8x32xf32>
    %c1_111 = arith.constant 1 : index
    %c0_112 = arith.constant 0 : index
    %c0_113 = arith.constant 0 : index
    %225 = vector.load %arg11[%c1_111, %c0_112, %c0_113] : memref<3x32x64xf32, #tpu.memory_space<vmem>>, vector<1x32x64xf32>
    %226 = vector.shape_cast %225 : vector<1x32x64xf32> to vector<32x64xf32>
    %cst_114 = arith.constant dense<0.000000e+00> : vector<8x64xf32>
    %227 = tpu.matmul %224, %226, %cst_114 {dimension_numbers = #tpu.dot_dimension_numbers<[1], [0], [0], [1], [0, 0, 1, 1], [], []>} : vector<8x32xf32>, vector<32x64xf32>, vector<8x64xf32> -> vector<8x64xf32>
    %c1_115 = arith.constant 1 : index
    %c0_116 = arith.constant 0 : index
    %c0_117 = arith.constant 0 : index
    %228 = vector.load %arg12[%c1_115, %c0_116, %c0_117] : memref<3x1x64xf32, #tpu.memory_space<vmem>>, vector<1x1x64xf32>
    %229 = vector.shape_cast %228 : vector<1x1x64xf32> to vector<1x64xf32>
    %230 = vector.broadcast %229 : vector<1x64xf32> to vector<8x64xf32>
    %231 = arith.addf %227, %230 : vector<8x64xf32>
    %232 = arith.mulf %231, %231 : vector<8x64xf32>
    %233 = arith.mulf %231, %232 : vector<8x64xf32>
    %cst_118 = arith.constant 4.471500e-02 : f32
    %234 = vector.broadcast %cst_118 : f32 to vector<8x64xf32>
    %235 = arith.mulf %234, %233 : vector<8x64xf32>
    %236 = arith.addf %231, %235 : vector<8x64xf32>
    %cst_119 = arith.constant 0.797884583 : f32
    %237 = vector.broadcast %cst_119 : f32 to vector<8x64xf32>
    %238 = arith.mulf %237, %236 : vector<8x64xf32>
    %239 = math.tanh %238 : vector<8x64xf32>
    %cst_120 = arith.constant 1.000000e+00 : f32
    %240 = vector.broadcast %cst_120 : f32 to vector<8x64xf32>
    %241 = arith.addf %240, %239 : vector<8x64xf32>
    %cst_121 = arith.constant 5.000000e-01 : f32
    %242 = vector.broadcast %cst_121 : f32 to vector<8x64xf32>
    %243 = arith.mulf %242, %241 : vector<8x64xf32>
    %244 = arith.mulf %231, %243 : vector<8x64xf32>
    %c1_122 = arith.constant 1 : index
    %c0_123 = arith.constant 0 : index
    %c0_124 = arith.constant 0 : index
    %245 = vector.load %arg13[%c1_122, %c0_123, %c0_124] : memref<3x64x32xf32, #tpu.memory_space<vmem>>, vector<1x64x32xf32>
    %246 = vector.shape_cast %245 : vector<1x64x32xf32> to vector<64x32xf32>
    %cst_125 = arith.constant dense<0.000000e+00> : vector<8x32xf32>
    %247 = tpu.matmul %244, %246, %cst_125 {dimension_numbers = #tpu.dot_dimension_numbers<[1], [0], [0], [1], [0, 0, 1, 1], [], []>} : vector<8x64xf32>, vector<64x32xf32>, vector<8x32xf32> -> vector<8x32xf32>
    %c1_126 = arith.constant 1 : index
    %c0_127 = arith.constant 0 : index
    %c0_128 = arith.constant 0 : index
    %248 = vector.load %arg14[%c1_126, %c0_127, %c0_128] : memref<3x1x32xf32, #tpu.memory_space<vmem>>, vector<1x1x32xf32>
    %249 = vector.shape_cast %248 : vector<1x1x32xf32> to vector<1x32xf32>
    %250 = vector.broadcast %249 : vector<1x32xf32> to vector<8x32xf32>
    %251 = arith.addf %247, %250 : vector<8x32xf32>
    %252 = arith.addf %224, %251 : vector<8x32xf32>
    %c1_129 = arith.constant 1 : index
    %c0_130 = arith.constant 0 : index
    %c0_131 = arith.constant 0 : index
    %253 = vector.load %arg17[%c1_129, %c0_130, %c0_131] : memref<3x1x32xf32, #tpu.memory_space<vmem>>, vector<1x1x32xf32>
    %254 = vector.shape_cast %253 : vector<1x1x32xf32> to vector<1x32xf32>
    %c1_132 = arith.constant 1 : index
    %c0_133 = arith.constant 0 : index
    %c0_134 = arith.constant 0 : index
    %255 = vector.load %arg18[%c1_132, %c0_133, %c0_134] : memref<3x1x32xf32, #tpu.memory_space<vmem>>, vector<1x1x32xf32>
    %256 = vector.shape_cast %255 : vector<1x1x32xf32> to vector<1x32xf32>
    %cst_135 = arith.constant dense<0.000000e+00> : vector<8xf32>
    %257 = vector.multi_reduction <add>, %252, %cst_135 [1] : vector<8x32xf32> to vector<8xf32>
    %258 = vector.shape_cast %257 : vector<8xf32> to vector<8x1xf32>
    %cst_136 = arith.constant 3.200000e+01 : f32
    %259 = vector.broadcast %cst_136 : f32 to vector<8x1xf32>
    %260 = arith.divf %258, %259 : vector<8x1xf32>
    %261 = vector.broadcast %260 : vector<8x1xf32> to vector<8x32xf32>
    %262 = arith.subf %252, %261 : vector<8x32xf32>
    %263 = arith.mulf %262, %262 : vector<8x32xf32>
    %cst_137 = arith.constant dense<0.000000e+00> : vector<8xf32>
    %264 = vector.multi_reduction <add>, %263, %cst_137 [1] : vector<8x32xf32> to vector<8xf32>
    %265 = vector.shape_cast %264 : vector<8xf32> to vector<8x1xf32>
    %cst_138 = arith.constant 3.200000e+01 : f32
    %266 = vector.broadcast %cst_138 : f32 to vector<8x1xf32>
    %267 = arith.divf %265, %266 : vector<8x1xf32>
    %268 = vector.broadcast %260 : vector<8x1xf32> to vector<8x32xf32>
    %269 = arith.subf %252, %268 : vector<8x32xf32>
    %cst_139 = arith.constant 9.99999974E-6 : f32
    %270 = vector.broadcast %cst_139 : f32 to vector<8x1xf32>
    %271 = arith.addf %267, %270 : vector<8x1xf32>
    %272 = math.rsqrt %271 : vector<8x1xf32>
    %273 = vector.broadcast %272 : vector<8x1xf32> to vector<8x32xf32>
    %274 = arith.mulf %269, %273 : vector<8x32xf32>
    %275 = vector.broadcast %254 : vector<1x32xf32> to vector<8x32xf32>
    %276 = arith.mulf %274, %275 : vector<8x32xf32>
    %277 = vector.broadcast %256 : vector<1x32xf32> to vector<8x32xf32>
    %278 = arith.addf %276, %277 : vector<8x32xf32>
    %279 = arith.addf %278, %9 : vector<8x32xf32>
    %c2 = arith.constant 2 : index
    %c0_140 = arith.constant 0 : index
    %c0_141 = arith.constant 0 : index
    %280 = vector.load %arg7[%c2, %c0_140, %c0_141] : memref<3x32x96xf32, #tpu.memory_space<vmem>>, vector<1x32x96xf32>
    %281 = vector.shape_cast %280 : vector<1x32x96xf32> to vector<32x96xf32>
    %cst_142 = arith.constant dense<0.000000e+00> : vector<8x96xf32>
    %282 = tpu.matmul %279, %281, %cst_142 {dimension_numbers = #tpu.dot_dimension_numbers<[1], [0], [0], [1], [0, 0, 1, 1], [], []>} : vector<8x32xf32>, vector<32x96xf32>, vector<8x96xf32> -> vector<8x96xf32>
    %c2_143 = arith.constant 2 : index
    %c0_144 = arith.constant 0 : index
    %c0_145 = arith.constant 0 : index
    %283 = vector.load %arg8[%c2_143, %c0_144, %c0_145] : memref<3x1x96xf32, #tpu.memory_space<vmem>>, vector<1x1x96xf32>
    %284 = vector.shape_cast %283 : vector<1x1x96xf32> to vector<1x96xf32>
    %285 = vector.broadcast %284 : vector<1x96xf32> to vector<8x96xf32>
    %286 = arith.addf %282, %285 : vector<8x96xf32>
    %287 = vector.extract_strided_slice %286 {offsets = [0, 0], sizes = [8, 8], strides = [1, 1]} : vector<8x96xf32> to vector<8x8xf32>
    %288 = vector.extract_strided_slice %286 {offsets = [0, 32], sizes = [8, 8], strides = [1, 1]} : vector<8x96xf32> to vector<8x8xf32>
    %289 = vector.extract_strided_slice %286 {offsets = [0, 64], sizes = [8, 8], strides = [1, 1]} : vector<8x96xf32> to vector<8x8xf32>
    %cst_146 = arith.constant dense<0.000000e+00> : vector<8x8xf32>
    %290 = tpu.matmul %287, %288, %cst_146 {dimension_numbers = #tpu.dot_dimension_numbers<[1], [1], [0], [0], [0, 0, 1, 0], [], []>} : vector<8x8xf32>, vector<8x8xf32>, vector<8x8xf32> -> vector<8x8xf32>
    %291 = vector.extract_strided_slice %286 {offsets = [0, 8], sizes = [8, 8], strides = [1, 1]} : vector<8x96xf32> to vector<8x8xf32>
    %292 = vector.extract_strided_slice %286 {offsets = [0, 40], sizes = [8, 8], strides = [1, 1]} : vector<8x96xf32> to vector<8x8xf32>
    %293 = vector.extract_strided_slice %286 {offsets = [0, 72], sizes = [8, 8], strides = [1, 1]} : vector<8x96xf32> to vector<8x8xf32>
    %cst_147 = arith.constant dense<0.000000e+00> : vector<8x8xf32>
    %294 = tpu.matmul %291, %292, %cst_147 {dimension_numbers = #tpu.dot_dimension_numbers<[1], [1], [0], [0], [0, 0, 1, 0], [], []>} : vector<8x8xf32>, vector<8x8xf32>, vector<8x8xf32> -> vector<8x8xf32>
    %295 = vector.extract_strided_slice %286 {offsets = [0, 16], sizes = [8, 8], strides = [1, 1]} : vector<8x96xf32> to vector<8x8xf32>
    %296 = vector.extract_strided_slice %286 {offsets = [0, 48], sizes = [8, 8], strides = [1, 1]} : vector<8x96xf32> to vector<8x8xf32>
    %297 = vector.extract_strided_slice %286 {offsets = [0, 80], sizes = [8, 8], strides = [1, 1]} : vector<8x96xf32> to vector<8x8xf32>
    %cst_148 = arith.constant dense<0.000000e+00> : vector<8x8xf32>
    %298 = tpu.matmul %295, %296, %cst_148 {dimension_numbers = #tpu.dot_dimension_numbers<[1], [1], [0], [0], [0, 0, 1, 0], [], []>} : vector<8x8xf32>, vector<8x8xf32>, vector<8x8xf32> -> vector<8x8xf32>
    %299 = vector.extract_strided_slice %286 {offsets = [0, 24], sizes = [8, 8], strides = [1, 1]} : vector<8x96xf32> to vector<8x8xf32>
    %300 = vector.extract_strided_slice %286 {offsets = [0, 56], sizes = [8, 8], strides = [1, 1]} : vector<8x96xf32> to vector<8x8xf32>
    %301 = vector.extract_strided_slice %286 {offsets = [0, 88], sizes = [8, 8], strides = [1, 1]} : vector<8x96xf32> to vector<8x8xf32>
    %cst_149 = arith.constant dense<0.000000e+00> : vector<8x8xf32>
    %302 = tpu.matmul %299, %300, %cst_149 {dimension_numbers = #tpu.dot_dimension_numbers<[1], [1], [0], [0], [0, 0, 1, 0], [], []>} : vector<8x8xf32>, vector<8x8xf32>, vector<8x8xf32> -> vector<8x8xf32>
    %303 = tpu.concatenate %290, %294, %298, %302 in 0 : vector<8x8xf32>, vector<8x8xf32>, vector<8x8xf32>, vector<8x8xf32> -> vector<32x8xf32>
    %cst_150 = arith.constant dense<0xFF800000> : vector<32xf32>
    %304 = vector.multi_reduction <maximumf>, %303, %cst_150 [1] : vector<32x8xf32> to vector<32xf32>
    %305 = vector.shape_cast %304 : vector<32xf32> to vector<32x1xf32>
    %306 = vector.broadcast %305 : vector<32x1xf32> to vector<32x8xf32>
    %307 = arith.subf %303, %306 : vector<32x8xf32>
    %308 = math.exp %307 : vector<32x8xf32>
    %cst_151 = arith.constant dense<0.000000e+00> : vector<32xf32>
    %309 = vector.multi_reduction <add>, %308, %cst_151 [1] : vector<32x8xf32> to vector<32xf32>
    %310 = vector.shape_cast %309 : vector<32xf32> to vector<32x1xf32>
    %311 = tpu.reciprocal %310 {approx = true} : vector<32x1xf32> -> vector<32x1xf32>
    %312 = vector.broadcast %311 : vector<32x1xf32> to vector<32x8xf32>
    %313 = arith.mulf %308, %312 : vector<32x8xf32>
    %314 = vector.extract_strided_slice %313 {offsets = [0, 0], sizes = [8, 8], strides = [1, 1]} : vector<32x8xf32> to vector<8x8xf32>
    %cst_152 = arith.constant dense<0.000000e+00> : vector<8x8xf32>
    %315 = tpu.matmul %314, %289, %cst_152 {dimension_numbers = #tpu.dot_dimension_numbers<[1], [0], [0], [1], [0, 0, 1, 1], [], []>} : vector<8x8xf32>, vector<8x8xf32>, vector<8x8xf32> -> vector<8x8xf32>
    %316 = vector.extract_strided_slice %313 {offsets = [8, 0], sizes = [8, 8], strides = [1, 1]} : vector<32x8xf32> to vector<8x8xf32>
    %cst_153 = arith.constant dense<0.000000e+00> : vector<8x8xf32>
    %317 = tpu.matmul %316, %293, %cst_153 {dimension_numbers = #tpu.dot_dimension_numbers<[1], [0], [0], [1], [0, 0, 1, 1], [], []>} : vector<8x8xf32>, vector<8x8xf32>, vector<8x8xf32> -> vector<8x8xf32>
    %318 = vector.extract_strided_slice %313 {offsets = [16, 0], sizes = [8, 8], strides = [1, 1]} : vector<32x8xf32> to vector<8x8xf32>
    %cst_154 = arith.constant dense<0.000000e+00> : vector<8x8xf32>
    %319 = tpu.matmul %318, %297, %cst_154 {dimension_numbers = #tpu.dot_dimension_numbers<[1], [0], [0], [1], [0, 0, 1, 1], [], []>} : vector<8x8xf32>, vector<8x8xf32>, vector<8x8xf32> -> vector<8x8xf32>
    %320 = vector.extract_strided_slice %313 {offsets = [24, 0], sizes = [8, 8], strides = [1, 1]} : vector<32x8xf32> to vector<8x8xf32>
    %cst_155 = arith.constant dense<0.000000e+00> : vector<8x8xf32>
    %321 = tpu.matmul %320, %301, %cst_155 {dimension_numbers = #tpu.dot_dimension_numbers<[1], [0], [0], [1], [0, 0, 1, 1], [], []>} : vector<8x8xf32>, vector<8x8xf32>, vector<8x8xf32> -> vector<8x8xf32>
    %322 = tpu.concatenate %315, %317, %319, %321 in 1 : vector<8x8xf32>, vector<8x8xf32>, vector<8x8xf32>, vector<8x8xf32> -> vector<8x32xf32>
    %c2_156 = arith.constant 2 : index
    %c0_157 = arith.constant 0 : index
    %c0_158 = arith.constant 0 : index
    %323 = vector.load %arg9[%c2_156, %c0_157, %c0_158] : memref<3x32x32xf32, #tpu.memory_space<vmem>>, vector<1x32x32xf32>
    %324 = vector.shape_cast %323 : vector<1x32x32xf32> to vector<32x32xf32>
    %cst_159 = arith.constant dense<0.000000e+00> : vector<8x32xf32>
    %325 = tpu.matmul %322, %324, %cst_159 {dimension_numbers = #tpu.dot_dimension_numbers<[1], [0], [0], [1], [0, 0, 1, 1], [], []>} : vector<8x32xf32>, vector<32x32xf32>, vector<8x32xf32> -> vector<8x32xf32>
    %c2_160 = arith.constant 2 : index
    %c0_161 = arith.constant 0 : index
    %c0_162 = arith.constant 0 : index
    %326 = vector.load %arg10[%c2_160, %c0_161, %c0_162] : memref<3x1x32xf32, #tpu.memory_space<vmem>>, vector<1x1x32xf32>
    %327 = vector.shape_cast %326 : vector<1x1x32xf32> to vector<1x32xf32>
    %328 = vector.broadcast %327 : vector<1x32xf32> to vector<8x32xf32>
    %329 = arith.addf %325, %328 : vector<8x32xf32>
    %330 = arith.addf %279, %329 : vector<8x32xf32>
    %c2_163 = arith.constant 2 : index
    %c0_164 = arith.constant 0 : index
    %c0_165 = arith.constant 0 : index
    %331 = vector.load %arg15[%c2_163, %c0_164, %c0_165] : memref<3x1x32xf32, #tpu.memory_space<vmem>>, vector<1x1x32xf32>
    %332 = vector.shape_cast %331 : vector<1x1x32xf32> to vector<1x32xf32>
    %c2_166 = arith.constant 2 : index
    %c0_167 = arith.constant 0 : index
    %c0_168 = arith.constant 0 : index
    %333 = vector.load %arg16[%c2_166, %c0_167, %c0_168] : memref<3x1x32xf32, #tpu.memory_space<vmem>>, vector<1x1x32xf32>
    %334 = vector.shape_cast %333 : vector<1x1x32xf32> to vector<1x32xf32>
    %cst_169 = arith.constant dense<0.000000e+00> : vector<8xf32>
    %335 = vector.multi_reduction <add>, %330, %cst_169 [1] : vector<8x32xf32> to vector<8xf32>
    %336 = vector.shape_cast %335 : vector<8xf32> to vector<8x1xf32>
    %cst_170 = arith.constant 3.200000e+01 : f32
    %337 = vector.broadcast %cst_170 : f32 to vector<8x1xf32>
    %338 = arith.divf %336, %337 : vector<8x1xf32>
    %339 = vector.broadcast %338 : vector<8x1xf32> to vector<8x32xf32>
    %340 = arith.subf %330, %339 : vector<8x32xf32>
    %341 = arith.mulf %340, %340 : vector<8x32xf32>
    %cst_171 = arith.constant dense<0.000000e+00> : vector<8xf32>
    %342 = vector.multi_reduction <add>, %341, %cst_171 [1] : vector<8x32xf32> to vector<8xf32>
    %343 = vector.shape_cast %342 : vector<8xf32> to vector<8x1xf32>
    %cst_172 = arith.constant 3.200000e+01 : f32
    %344 = vector.broadcast %cst_172 : f32 to vector<8x1xf32>
    %345 = arith.divf %343, %344 : vector<8x1xf32>
    %346 = vector.broadcast %338 : vector<8x1xf32> to vector<8x32xf32>
    %347 = arith.subf %330, %346 : vector<8x32xf32>
    %cst_173 = arith.constant 9.99999974E-6 : f32
    %348 = vector.broadcast %cst_173 : f32 to vector<8x1xf32>
    %349 = arith.addf %345, %348 : vector<8x1xf32>
    %350 = math.rsqrt %349 : vector<8x1xf32>
    %351 = vector.broadcast %350 : vector<8x1xf32> to vector<8x32xf32>
    %352 = arith.mulf %347, %351 : vector<8x32xf32>
    %353 = vector.broadcast %332 : vector<1x32xf32> to vector<8x32xf32>
    %354 = arith.mulf %352, %353 : vector<8x32xf32>
    %355 = vector.broadcast %334 : vector<1x32xf32> to vector<8x32xf32>
    %356 = arith.addf %354, %355 : vector<8x32xf32>
    %c2_174 = arith.constant 2 : index
    %c0_175 = arith.constant 0 : index
    %c0_176 = arith.constant 0 : index
    %357 = vector.load %arg11[%c2_174, %c0_175, %c0_176] : memref<3x32x64xf32, #tpu.memory_space<vmem>>, vector<1x32x64xf32>
    %358 = vector.shape_cast %357 : vector<1x32x64xf32> to vector<32x64xf32>
    %cst_177 = arith.constant dense<0.000000e+00> : vector<8x64xf32>
    %359 = tpu.matmul %356, %358, %cst_177 {dimension_numbers = #tpu.dot_dimension_numbers<[1], [0], [0], [1], [0, 0, 1, 1], [], []>} : vector<8x32xf32>, vector<32x64xf32>, vector<8x64xf32> -> vector<8x64xf32>
    %c2_178 = arith.constant 2 : index
    %c0_179 = arith.constant 0 : index
    %c0_180 = arith.constant 0 : index
    %360 = vector.load %arg12[%c2_178, %c0_179, %c0_180] : memref<3x1x64xf32, #tpu.memory_space<vmem>>, vector<1x1x64xf32>
    %361 = vector.shape_cast %360 : vector<1x1x64xf32> to vector<1x64xf32>
    %362 = vector.broadcast %361 : vector<1x64xf32> to vector<8x64xf32>
    %363 = arith.addf %359, %362 : vector<8x64xf32>
    %364 = arith.mulf %363, %363 : vector<8x64xf32>
    %365 = arith.mulf %363, %364 : vector<8x64xf32>
    %cst_181 = arith.constant 4.471500e-02 : f32
    %366 = vector.broadcast %cst_181 : f32 to vector<8x64xf32>
    %367 = arith.mulf %366, %365 : vector<8x64xf32>
    %368 = arith.addf %363, %367 : vector<8x64xf32>
    %cst_182 = arith.constant 0.797884583 : f32
    %369 = vector.broadcast %cst_182 : f32 to vector<8x64xf32>
    %370 = arith.mulf %369, %368 : vector<8x64xf32>
    %371 = math.tanh %370 : vector<8x64xf32>
    %cst_183 = arith.constant 1.000000e+00 : f32
    %372 = vector.broadcast %cst_183 : f32 to vector<8x64xf32>
    %373 = arith.addf %372, %371 : vector<8x64xf32>
    %cst_184 = arith.constant 5.000000e-01 : f32
    %374 = vector.broadcast %cst_184 : f32 to vector<8x64xf32>
    %375 = arith.mulf %374, %373 : vector<8x64xf32>
    %376 = arith.mulf %363, %375 : vector<8x64xf32>
    %c2_185 = arith.constant 2 : index
    %c0_186 = arith.constant 0 : index
    %c0_187 = arith.constant 0 : index
    %377 = vector.load %arg13[%c2_185, %c0_186, %c0_187] : memref<3x64x32xf32, #tpu.memory_space<vmem>>, vector<1x64x32xf32>
    %378 = vector.shape_cast %377 : vector<1x64x32xf32> to vector<64x32xf32>
    %cst_188 = arith.constant dense<0.000000e+00> : vector<8x32xf32>
    %379 = tpu.matmul %376, %378, %cst_188 {dimension_numbers = #tpu.dot_dimension_numbers<[1], [0], [0], [1], [0, 0, 1, 1], [], []>} : vector<8x64xf32>, vector<64x32xf32>, vector<8x32xf32> -> vector<8x32xf32>
    %c2_189 = arith.constant 2 : index
    %c0_190 = arith.constant 0 : index
    %c0_191 = arith.constant 0 : index
    %380 = vector.load %arg14[%c2_189, %c0_190, %c0_191] : memref<3x1x32xf32, #tpu.memory_space<vmem>>, vector<1x1x32xf32>
    %381 = vector.shape_cast %380 : vector<1x1x32xf32> to vector<1x32xf32>
    %382 = vector.broadcast %381 : vector<1x32xf32> to vector<8x32xf32>
    %383 = arith.addf %379, %382 : vector<8x32xf32>
    %384 = arith.addf %356, %383 : vector<8x32xf32>
    %c2_192 = arith.constant 2 : index
    %c0_193 = arith.constant 0 : index
    %c0_194 = arith.constant 0 : index
    %385 = vector.load %arg17[%c2_192, %c0_193, %c0_194] : memref<3x1x32xf32, #tpu.memory_space<vmem>>, vector<1x1x32xf32>
    %386 = vector.shape_cast %385 : vector<1x1x32xf32> to vector<1x32xf32>
    %c2_195 = arith.constant 2 : index
    %c0_196 = arith.constant 0 : index
    %c0_197 = arith.constant 0 : index
    %387 = vector.load %arg18[%c2_195, %c0_196, %c0_197] : memref<3x1x32xf32, #tpu.memory_space<vmem>>, vector<1x1x32xf32>
    %388 = vector.shape_cast %387 : vector<1x1x32xf32> to vector<1x32xf32>
    %cst_198 = arith.constant dense<0.000000e+00> : vector<8xf32>
    %389 = vector.multi_reduction <add>, %384, %cst_198 [1] : vector<8x32xf32> to vector<8xf32>
    %390 = vector.shape_cast %389 : vector<8xf32> to vector<8x1xf32>
    %cst_199 = arith.constant 3.200000e+01 : f32
    %391 = vector.broadcast %cst_199 : f32 to vector<8x1xf32>
    %392 = arith.divf %390, %391 : vector<8x1xf32>
    %393 = vector.broadcast %392 : vector<8x1xf32> to vector<8x32xf32>
    %394 = arith.subf %384, %393 : vector<8x32xf32>
    %395 = arith.mulf %394, %394 : vector<8x32xf32>
    %cst_200 = arith.constant dense<0.000000e+00> : vector<8xf32>
    %396 = vector.multi_reduction <add>, %395, %cst_200 [1] : vector<8x32xf32> to vector<8xf32>
    %397 = vector.shape_cast %396 : vector<8xf32> to vector<8x1xf32>
    %cst_201 = arith.constant 3.200000e+01 : f32
    %398 = vector.broadcast %cst_201 : f32 to vector<8x1xf32>
    %399 = arith.divf %397, %398 : vector<8x1xf32>
    %400 = vector.broadcast %392 : vector<8x1xf32> to vector<8x32xf32>
    %401 = arith.subf %384, %400 : vector<8x32xf32>
    %cst_202 = arith.constant 9.99999974E-6 : f32
    %402 = vector.broadcast %cst_202 : f32 to vector<8x1xf32>
    %403 = arith.addf %399, %402 : vector<8x1xf32>
    %404 = math.rsqrt %403 : vector<8x1xf32>
    %405 = vector.broadcast %404 : vector<8x1xf32> to vector<8x32xf32>
    %406 = arith.mulf %401, %405 : vector<8x32xf32>
    %407 = vector.broadcast %386 : vector<1x32xf32> to vector<8x32xf32>
    %408 = arith.mulf %406, %407 : vector<8x32xf32>
    %409 = vector.broadcast %388 : vector<1x32xf32> to vector<8x32xf32>
    %410 = arith.addf %408, %409 : vector<8x32xf32>
    %c0_203 = arith.constant 0 : index
    %c0_204 = arith.constant 0 : index
    %411 = vector.load %arg19[%c0_203, %c0_204] : memref<32x32xf32, #tpu.memory_space<vmem>>, vector<32x32xf32>
    %cst_205 = arith.constant dense<0.000000e+00> : vector<8x32xf32>
    %412 = tpu.matmul %410, %411, %cst_205 {dimension_numbers = #tpu.dot_dimension_numbers<[1], [0], [0], [1], [0, 0, 1, 1], [], []>} : vector<8x32xf32>, vector<32x32xf32>, vector<8x32xf32> -> vector<8x32xf32>
    %c0_206 = arith.constant 0 : index
    %c0_207 = arith.constant 0 : index
    %413 = vector.load %arg20[%c0_206, %c0_207] : memref<1x32xf32, #tpu.memory_space<vmem>>, vector<1x32xf32>
    %414 = vector.broadcast %413 : vector<1x32xf32> to vector<8x32xf32>
    %415 = arith.addf %412, %414 : vector<8x32xf32>
    %c0_208 = arith.constant 0 : index
    %c0_209 = arith.constant 0 : index
    %c0_210 = arith.constant 0 : index
    %416 = vector.load %arg21[%c0_208, %c0_209, %c0_210] : memref<1x8x32xf32, #tpu.memory_space<vmem>>, vector<1x8x32xf32>
    %417 = vector.shape_cast %416 : vector<1x8x32xf32> to vector<8x32xf32>
    %418 = vector.shape_cast %415 : vector<8x32xf32> to vector<1x8x32xf32>
    tpu.vector_store %arg21[%c0_208, %c0_209, %c0_210], %418 {strides = array<i32>} : memref<1x8x32xf32, #tpu.memory_space<vmem>>, vector<1x8x32xf32>,
    %419 = arith.subf %415, %1 : vector<8x32xf32>
    %420 = arith.mulf %419, %419 : vector<8x32xf32>
    %cst_211 = arith.constant dense<0.000000e+00> : vector<8xf32>
    %421 = vector.multi_reduction <add>, %420, %cst_211 [1] : vector<8x32xf32> to vector<8xf32>
    %422 = vector.shape_cast %421 : vector<8xf32> to vector<8x1xf32>
    %c0_212 = arith.constant 0 : index
    %c0_213 = arith.constant 0 : index
    %c0_214 = arith.constant 0 : index
    %423 = vector.load %arg22[%c0_212, %c0_213, %c0_214] : memref<1x8x1xf32, #tpu.memory_space<vmem>>, vector<1x8x1xf32>
    %424 = vector.shape_cast %423 : vector<1x8x1xf32> to vector<8x1xf32>
    %425 = vector.shape_cast %422 : vector<8x1xf32> to vector<1x8x1xf32>
    tpu.vector_store %arg22[%c0_212, %c0_213, %c0_214], %425 {strides = array<i32>} : memref<1x8x1xf32, #tpu.memory_space<vmem>>, vector<1x8x1xf32>,
    return
  }
  func.func @transform_0(%arg0: i32) -> (i32, i32, i32) {
    %c0_i32 = arith.constant 0 : i32
    %c0_i32_0 = arith.constant 0 : i32
    %c0_i32_1 = arith.constant 0 : i32
    return %arg0, %c0_i32, %c0_i32_0 : i32, i32, i32
  }
  func.func @transform_1(%arg0: i32) -> (i32, i32, i32) {
    %c0_i32 = arith.constant 0 : i32
    %c0_i32_0 = arith.constant 0 : i32
    %c0_i32_1 = arith.constant 0 : i32
    return %arg0, %c0_i32, %c0_i32_0 : i32, i32, i32
  }
  func.func @transform_2(%arg0: i32) -> (i32, i32) {
    %c0_i32 = arith.constant 0 : i32
    %c0_i32_0 = arith.constant 0 : i32
    %c0_i32_1 = arith.constant 0 : i32
    return %c0_i32, %c0_i32_0 : i32, i32
  }
  func.func @transform_3(%arg0: i32) -> (i32, i32) {
    %c0_i32 = arith.constant 0 : i32
    %c0_i32_0 = arith.constant 0 : i32
    %c0_i32_1 = arith.constant 0 : i32
    return %c0_i32, %c0_i32_0 : i32, i32
  }
  func.func @transform_4(%arg0: i32) -> (i32, i32) {
    %c0_i32 = arith.constant 0 : i32
    %c0_i32_0 = arith.constant 0 : i32
    %c0_i32_1 = arith.constant 0 : i32
    return %c0_i32, %c0_i32_0 : i32, i32
  }
  func.func @transform_5(%arg0: i32) -> (i32, i32) {
    %c0_i32 = arith.constant 0 : i32
    %c0_i32_0 = arith.constant 0 : i32
    %c0_i32_1 = arith.constant 0 : i32
    return %c0_i32, %c0_i32_0 : i32, i32
  }
  func.func @transform_6(%arg0: i32) -> (i32, i32, i32) {
    %c0_i32 = arith.constant 0 : i32
    %c0_i32_0 = arith.constant 0 : i32
    %c0_i32_1 = arith.constant 0 : i32
    %c0_i32_2 = arith.constant 0 : i32
    return %c0_i32, %c0_i32_0, %c0_i32_1 : i32, i32, i32
  }
  func.func @transform_7(%arg0: i32) -> (i32, i32, i32) {
    %c0_i32 = arith.constant 0 : i32
    %c0_i32_0 = arith.constant 0 : i32
    %c0_i32_1 = arith.constant 0 : i32
    %c0_i32_2 = arith.constant 0 : i32
    return %c0_i32, %c0_i32_0, %c0_i32_1 : i32, i32, i32
  }
  func.func @transform_8(%arg0: i32) -> (i32, i32, i32) {
    %c0_i32 = arith.constant 0 : i32
    %c0_i32_0 = arith.constant 0 : i32
    %c0_i32_1 = arith.constant 0 : i32
    %c0_i32_2 = arith.constant 0 : i32
    return %c0_i32, %c0_i32_0, %c0_i32_1 : i32, i32, i32
  }
  func.func @transform_9(%arg0: i32) -> (i32, i32, i32) {
    %c0_i32 = arith.constant 0 : i32
    %c0_i32_0 = arith.constant 0 : i32
    %c0_i32_1 = arith.constant 0 : i32
    %c0_i32_2 = arith.constant 0 : i32
    return %c0_i32, %c0_i32_0, %c0_i32_1 : i32, i32, i32
  }
  func.func @transform_10(%arg0: i32) -> (i32, i32, i32) {
    %c0_i32 = arith.constant 0 : i32
    %c0_i32_0 = arith.constant 0 : i32
    %c0_i32_1 = arith.constant 0 : i32
    %c0_i32_2 = arith.constant 0 : i32
    return %c0_i32, %c0_i32_0, %c0_i32_1 : i32, i32, i32
  }
  func.func @transform_11(%arg0: i32) -> (i32, i32, i32) {
    %c0_i32 = arith.constant 0 : i32
    %c0_i32_0 = arith.constant 0 : i32
    %c0_i32_1 = arith.constant 0 : i32
    %c0_i32_2 = arith.constant 0 : i32
    return %c0_i32, %c0_i32_0, %c0_i32_1 : i32, i32, i32
  }
  func.func @transform_12(%arg0: i32) -> (i32, i32, i32) {
    %c0_i32 = arith.constant 0 : i32
    %c0_i32_0 = arith.constant 0 : i32
    %c0_i32_1 = arith.constant 0 : i32
    %c0_i32_2 = arith.constant 0 : i32
    return %c0_i32, %c0_i32_0, %c0_i32_1 : i32, i32, i32
  }
  func.func @transform_13(%arg0: i32) -> (i32, i32, i32) {
    %c0_i32 = arith.constant 0 : i32
    %c0_i32_0 = arith.constant 0 : i32
    %c0_i32_1 = arith.constant 0 : i32
    %c0_i32_2 = arith.constant 0 : i32
    return %c0_i32, %c0_i32_0, %c0_i32_1 : i32, i32, i32
  }
  func.func @transform_14(%arg0: i32) -> (i32, i32, i32) {
    %c0_i32 = arith.constant 0 : i32
    %c0_i32_0 = arith.constant 0 : i32
    %c0_i32_1 = arith.constant 0 : i32
    %c0_i32_2 = arith.constant 0 : i32
    return %c0_i32, %c0_i32_0, %c0_i32_1 : i32, i32, i32
  }
  func.func @transform_15(%arg0: i32) -> (i32, i32, i32) {
    %c0_i32 = arith.constant 0 : i32
    %c0_i32_0 = arith.constant 0 : i32
    %c0_i32_1 = arith.constant 0 : i32
    %c0_i32_2 = arith.constant 0 : i32
    return %c0_i32, %c0_i32_0, %c0_i32_1 : i32, i32, i32
  }
  func.func @transform_16(%arg0: i32) -> (i32, i32, i32) {
    %c0_i32 = arith.constant 0 : i32
    %c0_i32_0 = arith.constant 0 : i32
    %c0_i32_1 = arith.constant 0 : i32
    %c0_i32_2 = arith.constant 0 : i32
    return %c0_i32, %c0_i32_0, %c0_i32_1 : i32, i32, i32
  }
  func.func @transform_17(%arg0: i32) -> (i32, i32, i32) {
    %c0_i32 = arith.constant 0 : i32
    %c0_i32_0 = arith.constant 0 : i32
    %c0_i32_1 = arith.constant 0 : i32
    %c0_i32_2 = arith.constant 0 : i32
    return %c0_i32, %c0_i32_0, %c0_i32_1 : i32, i32, i32
  }
  func.func @transform_18(%arg0: i32) -> (i32, i32) {
    %c0_i32 = arith.constant 0 : i32
    %c0_i32_0 = arith.constant 0 : i32
    %c0_i32_1 = arith.constant 0 : i32
    return %c0_i32, %c0_i32_0 : i32, i32
  }
  func.func @transform_19(%arg0: i32) -> (i32, i32) {
    %c0_i32 = arith.constant 0 : i32
    %c0_i32_0 = arith.constant 0 : i32
    %c0_i32_1 = arith.constant 0 : i32
    return %c0_i32, %c0_i32_0 : i32, i32
  }
  func.func @transform_20(%arg0: i32) -> (i32, i32, i32) {
    %c0_i32 = arith.constant 0 : i32
    %c0_i32_0 = arith.constant 0 : i32
    %c0_i32_1 = arith.constant 0 : i32
    return %arg0, %c0_i32, %c0_i32_0 : i32, i32, i32
  }
  func.func @transform_21(%arg0: i32) -> (i32, i32, i32) {
    %c0_i32 = arith.constant 0 : i32
    %c0_i32_0 = arith.constant 0 : i32
    %c0_i32_1 = arith.constant 0 : i32
    return %arg0, %c0_i32, %c0_i32_0 : i32, i32, i32
  }
}

</mosaic_0001>

<llo_original>
// kernel: neurobert_mae_forward.1
$region0: #{neurobert_mae_forward.1}
  #allocation0 [shape = 'u32[]', space=smem, size = 0x4, offset = 0x4, fixed_abs, tag = 'smem constant byte address 0x4 - core index']
  #allocation1 [shape = 'u32[144,128]{1,0:T(1,128)}', space=vmem, size = 0x12000, scoped, tag = 'internal scratch']
  %s0 = inlined_call_operand.vmem [shape: f32[2,8,32], index: 0, kind: input, shape index: {}]
  %s1 = inlined_call_operand.vmem [shape: f32[2,8,1], index: 1, kind: input, shape index: {}]
  %s2 = inlined_call_operand.vmem [shape: f32[32,32], index: 2, kind: input, shape index: {}]
  %s3 = inlined_call_operand.vmem [shape: f32[1,32], index: 3, kind: input, shape index: {}]
  %s4 = inlined_call_operand.vmem [shape: f32[1,32], index: 4, kind: input, shape index: {}]
  %s5 = inlined_call_operand.vmem [shape: f32[8,32], index: 5, kind: input, shape index: {}]
  %s6 = inlined_call_operand.vmem [shape: f32[3,32,96], index: 6, kind: input, shape index: {}]
  %s7 = inlined_call_operand.vmem [shape: f32[3,1,96], index: 7, kind: input, shape index: {}]
  %s8 = inlined_call_operand.vmem [shape: f32[3,32,32], index: 8, kind: input, shape index: {}]
  %s9 = inlined_call_operand.vmem [shape: f32[3,1,32], index: 9, kind: input, shape index: {}]
  %s10 = inlined_call_operand.vmem [shape: f32[3,32,64], index: 10, kind: input, shape index: {}]
  %s11 = inlined_call_operand.vmem [shape: f32[3,1,64], index: 11, kind: input, shape index: {}]
  %s12 = inlined_call_operand.vmem [shape: f32[3,64,32], index: 12, kind: input, shape index: {}]
  %s13 = inlined_call_operand.vmem [shape: f32[3,1,32], index: 13, kind: input, shape index: {}]
  %s14 = inlined_call_operand.vmem [shape: f32[3,1,32], index: 14, kind: input, shape index: {}]
  %s15 = inlined_call_operand.vmem [shape: f32[3,1,32], index: 15, kind: input, shape index: {}]
  %s16 = inlined_call_operand.vmem [shape: f32[3,1,32], index: 16, kind: input, shape index: {}]
  %s17 = inlined_call_operand.vmem [shape: f32[3,1,32], index: 17, kind: input, shape index: {}]
  %s18 = inlined_call_operand.vmem [shape: f32[32,32], index: 18, kind: input, shape index: {}]
  %s19 = inlined_call_operand.vmem [shape: f32[1,32], index: 19, kind: input, shape index: {}]
  %s20 = inlined_call_operand.vmem [shape: f32[2,8,32], index: 20, kind: output, shape index: {0}]
  %s21 = inlined_call_operand.vmem [shape: f32[2,8,1], index: 21, kind: output, shape index: {1}]
  %22 = xla_tuple %s20, %s21
  %s23 = sld [smem:[#allocation0]]
  $region121: #{neurobert_mae_forward.1} parent=0
    _
  %s25 = ssub.s32 1, %s23
  %s26 = scalar_select 0, %s25, %s23
  loop: start=0, step=1, limit=4
  $region2: #{neurobert_mae_forward.1} parent=0 // loop_pre_header
    _
  $region3: #{neurobert_mae_forward.1} parent=0 // loop_header
    %s28 = sphi 0, %s32
    %p29 = scmp.ge.s32.totalorder %s28, 4
    %s38 = sphi 0, %s40
    %s41 = sphi 0, %s38
    %s42 = sphi 0, %s41
    %s58 = sphi 0, %s42
    %s64 = sphi 0, %s66
    %s67 = sphi 0, %s64
    %s68 = sphi 0, %s67
    %s84 = sphi 0, %s68
    %s88 = sphi 0, %s88
    %s90 = sphi 0, %s88
    %s91 = sphi 0, %s90
    %s105 = sphi 0, %s91
    %s109 = sphi 0, %s109
    %s111 = sphi 0, %s109
    %s112 = sphi 0, %s111
    %s126 = sphi 0, %s112
    %s130 = sphi 0, %s130
    %s132 = sphi 0, %s130
    %s133 = sphi 0, %s132
    %s147 = sphi 0, %s133
    %s151 = sphi 0, %s151
    %s153 = sphi 0, %s151
    %s154 = sphi 0, %s153
    %s168 = sphi 0, %s154
    %s172 = sphi 0, %s172
    %s174 = sphi 0, %s172
    %s175 = sphi 0, %s174
    %s189 = sphi 0, %s175
    %s193 = sphi 0, %s193
    %s195 = sphi 0, %s193
    %s196 = sphi 0, %s195
    %s210 = sphi 0, %s196
    %s214 = sphi 0, %s214
    %s216 = sphi 0, %s214
    %s217 = sphi 0, %s216
    %s231 = sphi 0, %s217
    %s235 = sphi 0, %s235
    %s237 = sphi 0, %s235
    %s238 = sphi 0, %s237
    %s252 = sphi 0, %s238
    %s256 = sphi 0, %s256
    %s258 = sphi 0, %s256
    %s259 = sphi 0, %s258
    %s273 = sphi 0, %s259
    %s277 = sphi 0, %s277
    %s279 = sphi 0, %s277
    %s280 = sphi 0, %s279
    %s294 = sphi 0, %s280
    %s298 = sphi 0, %s298
    %s300 = sphi 0, %s298
    %s301 = sphi 0, %s300
    %s315 = sphi 0, %s301
    %s319 = sphi 0, %s319
    %s321 = sphi 0, %s319
    %s322 = sphi 0, %s321
    %s336 = sphi 0, %s322
    %s340 = sphi 0, %s340
    %s342 = sphi 0, %s340
    %s343 = sphi 0, %s342
    %s357 = sphi 0, %s343
    %s361 = sphi 0, %s361
    %s363 = sphi 0, %s361
    %s364 = sphi 0, %s363
    %s378 = sphi 0, %s364
    %s382 = sphi 0, %s382
    %s384 = sphi 0, %s382
    %s385 = sphi 0, %s384
    %s399 = sphi 0, %s385
    %s403 = sphi 0, %s403
    %s405 = sphi 0, %s403
    %s406 = sphi 0, %s405
    %s420 = sphi 0, %s406
    %s424 = sphi 0, %s424
    %s426 = sphi 0, %s424
    %s427 = sphi 0, %s426
    %s441 = sphi 0, %s427
    %s445 = sphi 0, %s445
    %s447 = sphi 0, %s445
    %s448 = sphi 0, %s447
    %s462 = sphi 0, %s448
    %s468 = sphi 0, %s470
    %s471 = sphi 0, %s468
    %s472 = sphi 0, %s471
    %s488 = sphi 0, %s472
    %s494 = sphi 0, %s496
    %s497 = sphi 0, %s494
    %s498 = sphi 0, %s497
    %s514 = sphi 0, %s498
  $region4: #{neurobert_mae_forward.1} parent=0 // loop_header_branch
    %31 = sbr.rel (%p29) target = $region8
  $region5: #{neurobert_mae_forward.1} parent=0 // loop_body
    %s33 = ssub.s32 %s28, 1
    %s34 = ssub.s32 %s28, 2
    %s35 = sadd.s32 %s28, 1
    %s36 = ssub.s32 %s28, %s35
    %p37 = scmp.eq.s32.totalorder %s36, 0
    %s39 = sadd.s32 %s38, 1
    %s40 = scalar_select %p37, %s38, %s39
    %p43 = pneg %p37
    %p44 = scmp.eq.s32.totalorder %s28, 1
    %p45 = por %p43, %p44
    %p46 = scmp.ne.s32.totalorder %s38, %s41
    %p47 = scmp.eq.s32.totalorder %s28, 0
    %p48 = por %p46, %p47
    %p49 = scmp.ne.s32.totalorder %s38, %s41
    %p50 = scmp.eq.s32.totalorder %s33, 1
    %p51 = por %p49, %p50
    %p52 = scmp.ne.s32.totalorder %s41, %s42
    %p53 = scmp.eq.s32.totalorder %s33, 0
    %p54 = por %p52, %p53
    %p55 = scmp.ne.s32.totalorder %s41, %s42
    %p56 = scmp.eq.s32.totalorder %s34, 1
    %p57 = por %p55, %p56
    %p59 = scmp.ne.s32.totalorder %s42, %s58
    %p60 = scmp.eq.s32.totalorder %s34, 0
    %p61 = por %p59, %p60
    %s62 = ssub.s32 %s28, %s35
    %p63 = scmp.eq.s32.totalorder %s62, 0
    %s65 = sadd.s32 %s64, 1
    %s66 = scalar_select %p63, %s64, %s65
    %p69 = pneg %p63
    %p70 = scmp.eq.s32.totalorder %s28, 1
    %p71 = por %p69, %p70
    %p72 = scmp.ne.s32.totalorder %s64, %s67
    %p73 = scmp.eq.s32.totalorder %s28, 0
    %p74 = por %p72, %p73
    %p75 = scmp.ne.s32.totalorder %s64, %s67
    %p76 = scmp.eq.s32.totalorder %s33, 1
    %p77 = por %p75, %p76
    %p78 = scmp.ne.s32.totalorder %s67, %s68
    %p79 = scmp.eq.s32.totalorder %s33, 0
    %p80 = por %p78, %p79
    %p81 = scmp.ne.s32.totalorder %s67, %s68
    %p82 = scmp.eq.s32.totalorder %s34, 1
    %p83 = por %p81, %p82
    %p85 = scmp.ne.s32.totalorder %s68, %s84
    %p86 = scmp.eq.s32.totalorder %s34, 0
    %p87 = por %p85, %p86
    %s89 = sadd.s32 %s88, 1
    %p92 = scmp.eq.s32.totalorder %s28, 1
    %p93 = scmp.ne.s32.totalorder %s88, %s90
    %p94 = scmp.eq.s32.totalorder %s28, 0
    %p95 = por %p93, %p94
    %p96 = scmp.ne.s32.totalorder %s88, %s90
    %p97 = scmp.eq.s32.totalorder %s33, 1
    %p98 = por %p96, %p97
    %p99 = scmp.ne.s32.totalorder %s90, %s91
    %p100 = scmp.eq.s32.totalorder %s33, 0
    %p101 = por %p99, %p100
    %p102 = scmp.ne.s32.totalorder %s90, %s91
    %p103 = scmp.eq.s32.totalorder %s34, 1
    %p104 = por %p102, %p103
    %p106 = scmp.ne.s32.totalorder %s91, %s105
    %p107 = scmp.eq.s32.totalorder %s34, 0
    %p108 = por %p106, %p107
    %s110 = sadd.s32 %s109, 1
    %p113 = scmp.eq.s32.totalorder %s28, 1
    %p114 = scmp.ne.s32.totalorder %s109, %s111
    %p115 = scmp.eq.s32.totalorder %s28, 0
    %p116 = por %p114, %p115
    %p117 = scmp.ne.s32.totalorder %s109, %s111
    %p118 = scmp.eq.s32.totalorder %s33, 1
    %p119 = por %p117, %p118
    %p120 = scmp.ne.s32.totalorder %s111, %s112
    %p121 = scmp.eq.s32.totalorder %s33, 0
    %p122 = por %p120, %p121
    %p123 = scmp.ne.s32.totalorder %s111, %s112
    %p124 = scmp.eq.s32.totalorder %s34, 1
    %p125 = por %p123, %p124
    %p127 = scmp.ne.s32.totalorder %s112, %s126
    %p128 = scmp.eq.s32.totalorder %s34, 0
    %p129 = por %p127, %p128
    %s131 = sadd.s32 %s130, 1
    %p134 = scmp.eq.s32.totalorder %s28, 1
    %p135 = scmp.ne.s32.totalorder %s130, %s132
    %p136 = scmp.eq.s32.totalorder %s28, 0
    %p137 = por %p135, %p136
    %p138 = scmp.ne.s32.totalorder %s130, %s132
    %p139 = scmp.eq.s32.totalorder %s33, 1
    %p140 = por %p138, %p139
    %p141 = scmp.ne.s32.totalorder %s132, %s133
    %p142 = scmp.eq.s32.totalorder %s33, 0
    %p143 = por %p141, %p142
    %p144 = scmp.ne.s32.totalorder %s132, %s133
    %p145 = scmp.eq.s32.totalorder %s34, 1
    %p146 = por %p144, %p145
    %p148 = scmp.ne.s32.totalorder %s133, %s147
    %p149 = scmp.eq.s32.totalorder %s34, 0
    %p150 = por %p148, %p149
    %s152 = sadd.s32 %s151, 1
    %p155 = scmp.eq.s32.totalorder %s28, 1
    %p156 = scmp.ne.s32.totalorder %s151, %s153
    %p157 = scmp.eq.s32.totalorder %s28, 0
    %p158 = por %p156, %p157
    %p159 = scmp.ne.s32.totalorder %s151, %s153
    %p160 = scmp.eq.s32.totalorder %s33, 1
    %p161 = por %p159, %p160
    %p162 = scmp.ne.s32.totalorder %s153, %s154
    %p163 = scmp.eq.s32.totalorder %s33, 0
    %p164 = por %p162, %p163
    %p165 = scmp.ne.s32.totalorder %s153, %s154
    %p166 = scmp.eq.s32.totalorder %s34, 1
    %p167 = por %p165, %p166
    %p169 = scmp.ne.s32.totalorder %s154, %s168
    %p170 = scmp.eq.s32.totalorder %s34, 0
    %p171 = por %p169, %p170
    %s173 = sadd.s32 %s172, 1
    %p176 = scmp.eq.s32.totalorder %s28, 1
    %p177 = scmp.ne.s32.totalorder %s172, %s174
    %p178 = scmp.eq.s32.totalorder %s28, 0
    %p179 = por %p177, %p178
    %p180 = scmp.ne.s32.totalorder %s172, %s174
    %p181 = scmp.eq.s32.totalorder %s33, 1
    %p182 = por %p180, %p181
    %p183 = scmp.ne.s32.totalorder %s174, %s175
    %p184 = scmp.eq.s32.totalorder %s33, 0
    %p185 = por %p183, %p184
    %p186 = scmp.ne.s32.totalorder %s174, %s175
    %p187 = scmp.eq.s32.totalorder %s34, 1
    %p188 = por %p186, %p187
    %p190 = scmp.ne.s32.totalorder %s175, %s189
    %p191 = scmp.eq.s32.totalorder %s34, 0
    %p192 = por %p190, %p191
    %s194 = sadd.s32 %s193, 1
    %p197 = scmp.eq.s32.totalorder %s28, 1
    %p198 = scmp.ne.s32.totalorder %s193, %s195
    %p199 = scmp.eq.s32.totalorder %s28, 0
    %p200 = por %p198, %p199
    %p201 = scmp.ne.s32.totalorder %s193, %s195
    %p202 = scmp.eq.s32.totalorder %s33, 1
    %p203 = por %p201, %p202
    %p204 = scmp.ne.s32.totalorder %s195, %s196
    %p205 = scmp.eq.s32.totalorder %s33, 0
    %p206 = por %p204, %p205
    %p207 = scmp.ne.s32.totalorder %s195, %s196
    %p208 = scmp.eq.s32.totalorder %s34, 1
    %p209 = por %p207, %p208
    %p211 = scmp.ne.s32.totalorder %s196, %s210
    %p212 = scmp.eq.s32.totalorder %s34, 0
    %p213 = por %p211, %p212
    %s215 = sadd.s32 %s214, 1
    %p218 = scmp.eq.s32.totalorder %s28, 1
    %p219 = scmp.ne.s32.totalorder %s214, %s216
    %p220 = scmp.eq.s32.totalorder %s28, 0
    %p221 = por %p219, %p220
    %p222 = scmp.ne.s32.totalorder %s214, %s216
    %p223 = scmp.eq.s32.totalorder %s33, 1
    %p224 = por %p222, %p223
    %p225 = scmp.ne.s32.totalorder %s216, %s217
    %p226 = scmp.eq.s32.totalorder %s33, 0
    %p227 = por %p225, %p226
    %p228 = scmp.ne.s32.totalorder %s216, %s217
    %p229 = scmp.eq.s32.totalorder %s34, 1
    %p230 = por %p228, %p229
    %p232 = scmp.ne.s32.totalorder %s217, %s231
    %p233 = scmp.eq.s32.totalorder %s34, 0
    %p234 = por %p232, %p233
    %s236 = sadd.s32 %s235, 1
    %p239 = scmp.eq.s32.totalorder %s28, 1
    %p240 = scmp.ne.s32.totalorder %s235, %s237
    %p241 = scmp.eq.s32.totalorder %s28, 0
    %p242 = por %p240, %p241
    %p243 = scmp.ne.s32.totalorder %s235, %s237
    %p244 = scmp.eq.s32.totalorder %s33, 1
    %p245 = por %p243, %p244
    %p246 = scmp.ne.s32.totalorder %s237, %s238
    %p247 = scmp.eq.s32.totalorder %s33, 0
    %p248 = por %p246, %p247
    %p249 = scmp.ne.s32.totalorder %s237, %s238
    %p250 = scmp.eq.s32.totalorder %s34, 1
    %p251 = por %p249, %p250
    %p253 = scmp.ne.s32.totalorder %s238, %s252
    %p254 = scmp.eq.s32.totalorder %s34, 0
    %p255 = por %p253, %p254
    %s257 = sadd.s32 %s256, 1
    %p260 = scmp.eq.s32.totalorder %s28, 1
    %p261 = scmp.ne.s32.totalorder %s256, %s258
    %p262 = scmp.eq.s32.totalorder %s28, 0
    %p263 = por %p261, %p262
    %p264 = scmp.ne.s32.totalorder %s256, %s258
    %p265 = scmp.eq.s32.totalorder %s33, 1
    %p266 = por %p264, %p265
    %p267 = scmp.ne.s32.totalorder %s258, %s259
    %p268 = scmp.eq.s32.totalorder %s33, 0
    %p269 = por %p267, %p268
    %p270 = scmp.ne.s32.totalorder %s258, %s259
    %p271 = scmp.eq.s32.totalorder %s34, 1
    %p272 = por %p270, %p271
    %p274 = scmp.ne.s32.totalorder %s259, %s273
    %p275 = scmp.eq.s32.totalorder %s34, 0
    %p276 = por %p274, %p275
    %s278 = sadd.s32 %s277, 1
    %p281 = scmp.eq.s32.totalorder %s28, 1
    %p282 = scmp.ne.s32.totalorder %s277, %s279
    %p283 = scmp.eq.s32.totalorder %s28, 0
    %p284 = por %p282, %p283
    %p285 = scmp.ne.s32.totalorder %s277, %s279
    %p286 = scmp.eq.s32.totalorder %s33, 1
    %p287 = por %p285, %p286
    %p288 = scmp.ne.s32.totalorder %s279, %s280
    %p289 = scmp.eq.s32.totalorder %s33, 0
    %p290 = por %p288, %p289
    %p291 = scmp.ne.s32.totalorder %s279, %s280
    %p292 = scmp.eq.s32.totalorder %s34, 1
    %p293 = por %p291, %p292
    %p295 = scmp.ne.s32.totalorder %s280, %s294
    %p296 = scmp.eq.s32.totalorder %s34, 0
    %p297 = por %p295, %p296
    %s299 = sadd.s32 %s298, 1
    %p302 = scmp.eq.s32.totalorder %s28, 1
    %p303 = scmp.ne.s32.totalorder %s298, %s300
    %p304 = scmp.eq.s32.totalorder %s28, 0
    %p305 = por %p303, %p304
    %p306 = scmp.ne.s32.totalorder %s298, %s300
    %p307 = scmp.eq.s32.totalorder %s33, 1
    %p308 = por %p306, %p307
    %p309 = scmp.ne.s32.totalorder %s300, %s301
    %p310 = scmp.eq.s32.totalorder %s33, 0
    %p311 = por %p309, %p310
    %p312 = scmp.ne.s32.totalorder %s300, %s301
    %p313 = scmp.eq.s32.totalorder %s34, 1
    %p314 = por %p312, %p313
    %p316 = scmp.ne.s32.totalorder %s301, %s315
    %p317 = scmp.eq.s32.totalorder %s34, 0
    %p318 = por %p316, %p317
    %s320 = sadd.s32 %s319, 1
    %p323 = scmp.eq.s32.totalorder %s28, 1
    %p324 = scmp.ne.s32.totalorder %s319, %s321
    %p325 = scmp.eq.s32.totalorder %s28, 0
    %p326 = por %p324, %p325
    %p327 = scmp.ne.s32.totalorder %s319, %s321
    %p328 = scmp.eq.s32.totalorder %s33, 1
    %p329 = por %p327, %p328
    %p330 = scmp.ne.s32.totalorder %s321, %s322
    %p331 = scmp.eq.s32.totalorder %s33, 0
    %p332 = por %p330, %p331
    %p333 = scmp.ne.s32.totalorder %s321, %s322
    %p334 = scmp.eq.s32.totalorder %s34, 1
    %p335 = por %p333, %p334
    %p337 = scmp.ne.s32.totalorder %s322, %s336
    %p338 = scmp.eq.s32.totalorder %s34, 0
    %p339 = por %p337, %p338
    %s341 = sadd.s32 %s340, 1
    %p344 = scmp.eq.s32.totalorder %s28, 1
    %p345 = scmp.ne.s32.totalorder %s340, %s342
    %p346 = scmp.eq.s32.totalorder %s28, 0
    %p347 = por %p345, %p346
    %p348 = scmp.ne.s32.totalorder %s340, %s342
    %p349 = scmp.eq.s32.totalorder %s33, 1
    %p350 = por %p348, %p349
    %p351 = scmp.ne.s32.totalorder %s342, %s343
    %p352 = scmp.eq.s32.totalorder %s33, 0
    %p353 = por %p351, %p352
    %p354 = scmp.ne.s32.totalorder %s342, %s343
    %p355 = scmp.eq.s32.totalorder %s34, 1
    %p356 = por %p354, %p355
    %p358 = scmp.ne.s32.totalorder %s343, %s357
    %p359 = scmp.eq.s32.totalorder %s34, 0
    %p360 = por %p358, %p359
    %s362 = sadd.s32 %s361, 1
    %p365 = scmp.eq.s32.totalorder %s28, 1
    %p366 = scmp.ne.s32.totalorder %s361, %s363
    %p367 = scmp.eq.s32.totalorder %s28, 0
    %p368 = por %p366, %p367
    %p369 = scmp.ne.s32.totalorder %s361, %s363
    %p370 = scmp.eq.s32.totalorder %s33, 1
    %p371 = por %p369, %p370
    %p372 = scmp.ne.s32.totalorder %s363, %s364
    %p373 = scmp.eq.s32.totalorder %s33, 0
    %p374 = por %p372, %p373
    %p375 = scmp.ne.s32.totalorder %s363, %s364
    %p376 = scmp.eq.s32.totalorder %s34, 1
    %p377 = por %p375, %p376
    %p379 = scmp.ne.s32.totalorder %s364, %s378
    %p380 = scmp.eq.s32.totalorder %s34, 0
    %p381 = por %p379, %p380
    %s383 = sadd.s32 %s382, 1
    %p386 = scmp.eq.s32.totalorder %s28, 1
    %p387 = scmp.ne.s32.totalorder %s382, %s384
    %p388 = scmp.eq.s32.totalorder %s28, 0
    %p389 = por %p387, %p388
    %p390 = scmp.ne.s32.totalorder %s382, %s384
    %p391 = scmp.eq.s32.totalorder %s33, 1
    %p392 = por %p390, %p391
    %p393 = scmp.ne.s32.totalorder %s384, %s385
    %p394 = scmp.eq.s32.totalorder %s33, 0
    %p395 = por %p393, %p394
    %p396 = scmp.ne.s32.totalorder %s384, %s385
    %p397 = scmp.eq.s32.totalorder %s34, 1
    %p398 = por %p396, %p397
    %p400 = scmp.ne.s32.totalorder %s385, %s399
    %p401 = scmp.eq.s32.totalorder %s34, 0
    %p402 = por %p400, %p401
    %s404 = sadd.s32 %s403, 1
    %p407 = scmp.eq.s32.totalorder %s28, 1
    %p408 = scmp.ne.s32.totalorder %s403, %s405
    %p409 = scmp.eq.s32.totalorder %s28, 0
    %p410 = por %p408, %p409
    %p411 = scmp.ne.s32.totalorder %s403, %s405
    %p412 = scmp.eq.s32.totalorder %s33, 1
    %p413 = por %p411, %p412
    %p414 = scmp.ne.s32.totalorder %s405, %s406
    %p415 = scmp.eq.s32.totalorder %s33, 0
    %p416 = por %p414, %p415
    %p417 = scmp.ne.s32.totalorder %s405, %s406
    %p418 = scmp.eq.s32.totalorder %s34, 1
    %p419 = por %p417, %p418
    %p421 = scmp.ne.s32.totalorder %s406, %s420
    %p422 = scmp.eq.s32.totalorder %s34, 0
    %p423 = por %p421, %p422
    %s425 = sadd.s32 %s424, 1
    %p428 = scmp.eq.s32.totalorder %s28, 1
    %p429 = scmp.ne.s32.totalorder %s424, %s426
    %p430 = scmp.eq.s32.totalorder %s28, 0
    %p431 = por %p429, %p430
    %p432 = scmp.ne.s32.totalorder %s424, %s426
    %p433 = scmp.eq.s32.totalorder %s33, 1
    %p434 = por %p432, %p433
    %p435 = scmp.ne.s32.totalorder %s426, %s427
    %p436 = scmp.eq.s32.totalorder %s33, 0
    %p437 = por %p435, %p436
    %p438 = scmp.ne.s32.totalorder %s426, %s427
    %p439 = scmp.eq.s32.totalorder %s34, 1
    %p440 = por %p438, %p439
    %p442 = scmp.ne.s32.totalorder %s427, %s441
    %p443 = scmp.eq.s32.totalorder %s34, 0
    %p444 = por %p442, %p443
    %s446 = sadd.s32 %s445, 1
    %p449 = scmp.eq.s32.totalorder %s28, 1
    %p450 = scmp.ne.s32.totalorder %s445, %s447
    %p451 = scmp.eq.s32.totalorder %s28, 0
    %p452 = por %p450, %p451
    %p453 = scmp.ne.s32.totalorder %s445, %s447
    %p454 = scmp.eq.s32.totalorder %s33, 1
    %p455 = por %p453, %p454
    %p456 = scmp.ne.s32.totalorder %s447, %s448
    %p457 = scmp.eq.s32.totalorder %s33, 0
    %p458 = por %p456, %p457
    %p459 = scmp.ne.s32.totalorder %s447, %s448
    %p460 = scmp.eq.s32.totalorder %s34, 1
    %p461 = por %p459, %p460
    %p463 = scmp.ne.s32.totalorder %s448, %s462
    %p464 = scmp.eq.s32.totalorder %s34, 0
    %p465 = por %p463, %p464
    %s466 = ssub.s32 %s28, %s35
    %p467 = scmp.eq.s32.totalorder %s466, 0
    %s469 = sadd.s32 %s468, 1
    %s470 = scalar_select %p467, %s468, %s469
    %p473 = pneg %p467
    %p474 = scmp.eq.s32.totalorder %s28, 1
    %p475 = por %p473, %p474
    %p476 = scmp.ne.s32.totalorder %s468, %s471
    %p477 = scmp.eq.s32.totalorder %s28, 0
    %p478 = por %p476, %p477
    %p479 = scmp.ne.s32.totalorder %s468, %s471
    %p480 = scmp.eq.s32.totalorder %s33, 1
    %p481 = por %p479, %p480
    %p482 = scmp.ne.s32.totalorder %s471, %s472
    %p483 = scmp.eq.s32.totalorder %s33, 0
    %p484 = por %p482, %p483
    %p485 = scmp.ne.s32.totalorder %s471, %s472
    %p486 = scmp.eq.s32.totalorder %s34, 1
    %p487 = por %p485, %p486
    %p489 = scmp.ne.s32.totalorder %s472, %s488
    %p490 = scmp.eq.s32.totalorder %s34, 0
    %p491 = por %p489, %p490
    %s492 = ssub.s32 %s28, %s35
    %p493 = scmp.eq.s32.totalorder %s492, 0
    %s495 = sadd.s32 %s494, 1
    %s496 = scalar_select %p493, %s494, %s495
    %p499 = pneg %p493
    %p500 = scmp.eq.s32.totalorder %s28, 1
    %p501 = por %p499, %p500
    %p502 = scmp.ne.s32.totalorder %s494, %s497
    %p503 = scmp.eq.s32.totalorder %s28, 0
    %p504 = por %p502, %p503
    %p505 = scmp.ne.s32.totalorder %s494, %s497
    %p506 = scmp.eq.s32.totalorder %s33, 1
    %p507 = por %p505, %p506
    %p508 = scmp.ne.s32.totalorder %s497, %s498
    %p509 = scmp.eq.s32.totalorder %s33, 0
    %p510 = por %p508, %p509
    %p511 = scmp.ne.s32.totalorder %s497, %s498
    %p512 = scmp.eq.s32.totalorder %s34, 1
    %p513 = por %p511, %p512
    %p515 = scmp.ne.s32.totalorder %s498, %s514
    %p516 = scmp.eq.s32.totalorder %s34, 0
    %p517 = por %p515, %p516
    %p518 = scmp.le.s32.totalorder 1, %s28
    %p519 = scmp.lt.s32.totalorder %s28, 3
    %p520 = pnand %p518, %p519
    %p521 = pneg %p520
    // Predicated region
    $region9: #{neurobert_mae_forward.1} parent=5 // pred_check
      _
    $region10: #{neurobert_mae_forward.1} parent=5 // pred_check_branch
      %523 = sbr.rel (%p520) target = $region12
    $region11: #{neurobert_mae_forward.1} parent=5 // pred_region
      %s524 = ssub.s32 %s28, 1
      // Predicated region
      $region13: #{neurobert_mae_forward.1} parent=11 // pred_check
        %p525 = pneg %p101
      $region14: #{neurobert_mae_forward.1} parent=11 // pred_check_branch
        %527 = sbr.rel (%p525) target = $region16
      $region15: #{neurobert_mae_forward.1} parent=11 // pred_region
        _
      $region16: #{neurobert_mae_forward.1} parent=11 // pred_fallthru
        _
      // Predicated region
      $region17: #{neurobert_mae_forward.1} parent=11 // pred_check
        %p528 = pneg %p122
      $region18: #{neurobert_mae_forward.1} parent=11 // pred_check_branch
        %530 = sbr.rel (%p528) target = $region20
      $region19: #{neurobert_mae_forward.1} parent=11 // pred_region
        _
      $region20: #{neurobert_mae_forward.1} parent=11 // pred_fallthru
        _
      // Predicated region
      $region21: #{neurobert_mae_forward.1} parent=11 // pred_check
        %p531 = pneg %p143
      $region22: #{neurobert_mae_forward.1} parent=11 // pred_check_branch
        %533 = sbr.rel (%p531) target = $region24
      $region23: #{neurobert_mae_forward.1} parent=11 // pred_region
        _
      $region24: #{neurobert_mae_forward.1} parent=11 // pred_fallthru
        _
      // Predicated region
      $region25: #{neurobert_mae_forward.1} parent=11 // pred_check
        %p534 = pneg %p164
      $region26: #{neurobert_mae_forward.1} parent=11 // pred_check_branch
        %536 = sbr.rel (%p534) target = $region28
      $region27: #{neurobert_mae_forward.1} parent=11 // pred_region
        _
      $region28: #{neurobert_mae_forward.1} parent=11 // pred_fallthru
        _
      // Predicated region
      $region29: #{neurobert_mae_forward.1} parent=11 // pred_check
        %p537 = pneg %p185
      $region30: #{neurobert_mae_forward.1} parent=11 // pred_check_branch
        %539 = sbr.rel (%p537) target = $region32
      $region31: #{neurobert_mae_forward.1} parent=11 // pred_region
        _
      $region32: #{neurobert_mae_forward.1} parent=11 // pred_fallthru
        _
      // Predicated region
      $region33: #{neurobert_mae_forward.1} parent=11 // pred_check
        %p540 = pneg %p206
      $region34: #{neurobert_mae_forward.1} parent=11 // pred_check_branch
        %542 = sbr.rel (%p540) target = $region36
      $region35: #{neurobert_mae_forward.1} parent=11 // pred_region
        _
      $region36: #{neurobert_mae_forward.1} parent=11 // pred_fallthru
        _
      // Predicated region
      $region37: #{neurobert_mae_forward.1} parent=11 // pred_check
        %p543 = pneg %p227
      $region38: #{neurobert_mae_forward.1} parent=11 // pred_check_branch
        %545 = sbr.rel (%p543) target = $region40
      $region39: #{neurobert_mae_forward.1} parent=11 // pred_region
        _
      $region40: #{neurobert_mae_forward.1} parent=11 // pred_fallthru
        _
      // Predicated region
      $region41: #{neurobert_mae_forward.1} parent=11 // pred_check
        %p546 = pneg %p248
      $region42: #{neurobert_mae_forward.1} parent=11 // pred_check_branch
        %548 = sbr.rel (%p546) target = $region44
      $region43: #{neurobert_mae_forward.1} parent=11 // pred_region
        _
      $region44: #{neurobert_mae_forward.1} parent=11 // pred_fallthru
        _
      // Predicated region
      $region45: #{neurobert_mae_forward.1} parent=11 // pred_check
        %p549 = pneg %p269
      $region46: #{neurobert_mae_forward.1} parent=11 // pred_check_branch
        %551 = sbr.rel (%p549) target = $region48
      $region47: #{neurobert_mae_forward.1} parent=11 // pred_region
        _
      $region48: #{neurobert_mae_forward.1} parent=11 // pred_fallthru
        _
      // Predicated region
      $region49: #{neurobert_mae_forward.1} parent=11 // pred_check
        %p552 = pneg %p290
      $region50: #{neurobert_mae_forward.1} parent=11 // pred_check_branch
        %554 = sbr.rel (%p552) target = $region52
      $region51: #{neurobert_mae_forward.1} parent=11 // pred_region
        _
      $region52: #{neurobert_mae_forward.1} parent=11 // pred_fallthru
        _
      // Predicated region
      $region53: #{neurobert_mae_forward.1} parent=11 // pred_check
        %p555 = pneg %p311
      $region54: #{neurobert_mae_forward.1} parent=11 // pred_check_branch
        %557 = sbr.rel (%p555) target = $region56
      $region55: #{neurobert_mae_forward.1} parent=11 // pred_region
        _
      $region56: #{neurobert_mae_forward.1} parent=11 // pred_fallthru
        _
      // Predicated region
      $region57: #{neurobert_mae_forward.1} parent=11 // pred_check
        %p558 = pneg %p332
      $region58: #{neurobert_mae_forward.1} parent=11 // pred_check_branch
        %560 = sbr.rel (%p558) target = $region60
      $region59: #{neurobert_mae_forward.1} parent=11 // pred_region
        _
      $region60: #{neurobert_mae_forward.1} parent=11 // pred_fallthru
        _
      // Predicated region
      $region61: #{neurobert_mae_forward.1} parent=11 // pred_check
        %p561 = pneg %p353
      $region62: #{neurobert_mae_forward.1} parent=11 // pred_check_branch
        %563 = sbr.rel (%p561) target = $region64
      $region63: #{neurobert_mae_forward.1} parent=11 // pred_region
        _
      $region64: #{neurobert_mae_forward.1} parent=11 // pred_fallthru
        _
      // Predicated region
      $region65: #{neurobert_mae_forward.1} parent=11 // pred_check
        %p564 = pneg %p374
      $region66: #{neurobert_mae_forward.1} parent=11 // pred_check_branch
        %566 = sbr.rel (%p564) target = $region68
      $region67: #{neurobert_mae_forward.1} parent=11 // pred_region
        _
      $region68: #{neurobert_mae_forward.1} parent=11 // pred_fallthru
        _
      // Predicated region
      $region69: #{neurobert_mae_forward.1} parent=11 // pred_check
        %p567 = pneg %p395
      $region70: #{neurobert_mae_forward.1} parent=11 // pred_check_branch
        %569 = sbr.rel (%p567) target = $region72
      $region71: #{neurobert_mae_forward.1} parent=11 // pred_region
        _
      $region72: #{neurobert_mae_forward.1} parent=11 // pred_fallthru
        _
      // Predicated region
      $region73: #{neurobert_mae_forward.1} parent=11 // pred_check
        %p570 = pneg %p416
      $region74: #{neurobert_mae_forward.1} parent=11 // pred_check_branch
        %572 = sbr.rel (%p570) target = $region76
      $region75: #{neurobert_mae_forward.1} parent=11 // pred_region
        _
      $region76: #{neurobert_mae_forward.1} parent=11 // pred_fallthru
        _
      // Predicated region
      $region77: #{neurobert_mae_forward.1} parent=11 // pred_check
        %p573 = pneg %p437
      $region78: #{neurobert_mae_forward.1} parent=11 // pred_check_branch
        %575 = sbr.rel (%p573) target = $region80
      $region79: #{neurobert_mae_forward.1} parent=11 // pred_region
        _
      $region80: #{neurobert_mae_forward.1} parent=11 // pred_fallthru
        _
      // Predicated region
      $region81: #{neurobert_mae_forward.1} parent=11 // pred_check
        %p576 = pneg %p458
      $region82: #{neurobert_mae_forward.1} parent=11 // pred_check_branch
        %578 = sbr.rel (%p576) target = $region84
      $region83: #{neurobert_mae_forward.1} parent=11 // pred_region
        _
      $region84: #{neurobert_mae_forward.1} parent=11 // pred_fallthru
        _
    $region12: #{neurobert_mae_forward.1} parent=5 // pred_fallthru
      _
    %p579 = scmp.lt.s32.totalorder %s28, 2
    // Predicated region
    $region85: #{neurobert_mae_forward.1} parent=5 // pred_check
      %p580 = pneg %p579
    $region86: #{neurobert_mae_forward.1} parent=5 // pred_check_branch
      %582 = sbr.rel (%p580) target = $region88
    $region87: #{neurobert_mae_forward.1} parent=5 // pred_region
      // Predicated region
      $region89: #{neurobert_mae_forward.1} parent=87 // pred_check
        %p583 = pneg %p48
      $region90: #{neurobert_mae_forward.1} parent=87 // pred_check_branch
        %585 = sbr.rel (%p583) target = $region92
      $region91: #{neurobert_mae_forward.1} parent=87 // pred_region
        %p586 = scmp.lt.s32.totalorder %s28, 1
        %s587 = scalar_select %p586, %s28, 1
        %s588 = smul.addr %s587, 8
        %s589 = scalar_lea.vmem %s0, %s588
      $region92: #{neurobert_mae_forward.1} parent=87 // pred_fallthru
        _
      // Predicated region
      $region93: #{neurobert_mae_forward.1} parent=87 // pred_check
        %p590 = pneg %p74
      $region94: #{neurobert_mae_forward.1} parent=87 // pred_check_branch
        %592 = sbr.rel (%p590) target = $region96
      $region95: #{neurobert_mae_forward.1} parent=87 // pred_region
        %p593 = scmp.lt.s32.totalorder %s28, 1
        %s594 = scalar_select %p593, %s28, 1
        %s595 = smul.addr %s594, 8
        %s596 = scalar_lea.vmem %s1, %s595
      $region96: #{neurobert_mae_forward.1} parent=87 // pred_fallthru
        _
    $region88: #{neurobert_mae_forward.1} parent=5 // pred_fallthru
      _
    %p597 = scmp.le.s32.totalorder 1, %s28
    %p598 = scmp.lt.s32.totalorder %s28, 3
    %p599 = pnand %p597, %p598
    %p600 = pneg %p599
    // Predicated region
    $region97: #{neurobert_mae_forward.1} parent=5 // pred_check
      _
    $region98: #{neurobert_mae_forward.1} parent=5 // pred_check_branch
      %602 = sbr.rel (%p599) target = $region100
    $region99: #{neurobert_mae_forward.1} parent=5 // pred_region
      %s603 = ssub.s32 %s28, 1
      %p604 = scmp.lt.s32.totalorder %s33, 1
      %s605 = scalar_select %p604, %s33, 1
      %s606 = smul.addr %s605, 8
      %s607 = scalar_lea.vmem %s0, %s606
      %p608 = pneg %p54
      %p609 = pneg %p51
      %p610 = scmp.lt.s32.totalorder %s33, 1
      %s611 = scalar_select %p610, %s33, 1
      %s612 = smul.addr %s611, 8
      %s613 = scalar_lea.vmem %s1, %s612
      %p614 = pneg %p80
      %p615 = pneg %p77
      %p616 = pneg %p101
      %p617 = pneg %p98
      %p618 = pneg %p122
      %p619 = pneg %p119
      %p620 = pneg %p143
      %p621 = pneg %p140
      %p622 = pneg %p164
      %p623 = pneg %p161
      %p624 = pneg %p185
      %p625 = pneg %p182
      %p626 = pneg %p206
      %p627 = pneg %p203
      %p628 = pneg %p227
      %p629 = pneg %p224
      %p630 = pneg %p248
      %p631 = pneg %p245
      %p632 = pneg %p269
      %p633 = pneg %p266
      %p634 = pneg %p290
      %p635 = pneg %p287
      %p636 = pneg %p311
      %p637 = pneg %p308
      %p638 = pneg %p332
      %p639 = pneg %p329
      %p640 = pneg %p353
      %p641 = pneg %p350
      %p642 = pneg %p374
      %p643 = pneg %p371
      %p644 = pneg %p395
      %p645 = pneg %p392
      %p646 = pneg %p416
      %p647 = pneg %p413
      %p648 = pneg %p437
      %p649 = pneg %p434
      %p650 = pneg %p458
      %p651 = pneg %p455
      %p652 = pneg %p484
      %p653 = pneg %p481
      %p654 = scmp.lt.s32.totalorder %s33, 1
      %s655 = scalar_select %p654, %s33, 1
      %s656 = smul.addr %s655, 8
      %s657 = scalar_lea.vmem %s20, %s656
      %p658 = pneg %p510
      %p659 = pneg %p507
      %p660 = scmp.lt.s32.totalorder %s33, 1
      %s661 = scalar_select %p660, %s33, 1
      %s662 = smul.addr %s661, 8
      %s663 = scalar_lea.vmem %s21, %s662
      %p664 = scmp.lt.s32.totalorder %s33, 1
      %s665 = scalar_select %p664, %s33, 1
      %s666 = smul.addr %s665, 8
      %s667 = scalar_lea.vmem %s0, %s666
      %p668 = scmp.lt.s32.totalorder %s33, 1
      %s669 = scalar_select %p668, %s33, 1
      %s670 = smul.addr %s669, 8
      %s671 = scalar_lea.vmem %s1, %s670
      %p672 = scmp.lt.s32.totalorder %s33, 1
      %s673 = scalar_select %p672, %s33, 1
      %s674 = smul.addr %s673, 8
      %s675 = scalar_lea.vmem %s20, %s674
      %p676 = scmp.lt.s32.totalorder %s33, 1
      %s677 = scalar_select %p676, %s33, 1
      %s678 = smul.addr %s677, 8
      %s679 = scalar_lea.vmem %s21, %s678
      %v680 = vld [vmem:[%s667] sm:$0xff]
      %v681 = vld [vmem:[%s2] sm:$0xff]
      %v682 = vld [vmem:[%s2 + $0x8] sm:$0xff]
      %v683 = vld [vmem:[%s2 + $0x10] sm:$0xff]
      %v684 = vld [vmem:[%s2 + $0x18] sm:$0xff]
      %v685 = vld [vmem:[%s3] sm:$0x1]
      %v687 = vlaneseq
      %v688 = vshrl.u32 %v687, 7
      %v689 = vsub.s32 0, %v688
      %v690 = vrot.slane %v685, %v689
      %vm692 = vcmask 261120
      %v694 = vsel %vm692, %v680, 0
      %696 = vmatprep.subr.mxu0 0.0
      %697 = vmatpush1.msra.mxu0 0.0
      %698 = vmatprep.subr.mxu0 0.0
      %699 = vmatpush1.msra.mxu0 0.0
      %700 = vmatprep.subr.mxu0 0.0
      %701 = vmatpush1.msra.mxu0 0.0
      %702 = vmatprep.subr.mxu0 0.0
      %703 = vmatpush1.msra.mxu0 0.0
      %704 = vmatprep.subr.mxu0 0.0
      %705 = vmatpush1.msra.mxu0 0.0
      %706 = vmatprep.subr.mxu0 0.0
      %707 = vmatpush1.msra.mxu0 0.0
      %708 = vmatprep.subr.mxu0 0.0
      %709 = vmatpush1.msra.mxu0 0.0
      %710 = vmatprep.subr.mxu0 0.0
      %711 = vmatpush1.msra.mxu0 0.0
      %712 = vmatprep.subr.mxu0 0.0
      %713 = vmatpush1.msra.mxu0 0.0
      %714 = vmatprep.subr.mxu0 0.0
      %715 = vmatpush1.msra.mxu0 0.0
      %716 = vmatprep.subr.mxu0 0.0
      %717 = vmatpush1.msra.mxu0 0.0
      %718 = vmatprep.subr.mxu0 0.0
      %719 = vmatpush1.msra.mxu0 0.0
      %720 = vmatprep.subr.mxu0 0.0
      %721 = vmatpush1.msra.mxu0 %v684
      %722 = vmatprep.subr.mxu0 0.0
      %723 = vmatpush1.msra.mxu0 %v683
      %724 = vmatprep.subr.mxu0 0.0
      %725 = vmatpush1.msra.mxu0 %v682
      %726 = vmatprep.subr.mxu0 0.0
      %727 = vmatpush1.msra.mxu0 %v681
      %728 = vmatprep.subr.mxu0 0.0
      %729 = vmatpush2.msra.mxu0 0.0
      %730 = vmatprep.subr.mxu0 0.0
      %731 = vmatpush2.msra.mxu0 0.0
      %732 = vmatprep.subr.mxu0 0.0
      %733 = vmatpush2.msra.mxu0 0.0
      %734 = vmatprep.subr.mxu0 0.0
      %735 = vmatpush2.msra.mxu0 0.0
      %736 = vmatprep.subr.mxu0 0.0
      %737 = vmatpush2.msra.mxu0 0.0
      %738 = vmatprep.subr.mxu0 0.0
      %739 = vmatpush2.msra.mxu0 0.0
      %740 = vmatprep.subr.mxu0 0.0
      %741 = vmatpush2.msra.mxu0 0.0
      %742 = vmatprep.subr.mxu0 0.0
      %743 = vmatpush2.msra.mxu0 0.0
      %744 = vmatprep.subr.mxu0 0.0
      %745 = vmatpush2.msra.mxu0 0.0
      %746 = vmatprep.subr.mxu0 0.0
      %747 = vmatpush2.msra.mxu0 0.0
      %748 = vmatprep.subr.mxu0 0.0
      %749 = vmatpush2.msra.mxu0 0.0
      %750 = vmatprep.subr.mxu0 0.0
      %751 = vmatpush2.msra.mxu0 0.0
      %752 = vmatprep.subr.mxu0 0.0
      %753 = vmatpush2.msra.mxu0 0.0
      %754 = vmatprep.subr.mxu0 0.0
      %755 = vmatpush2.msra.mxu0 0.0
      %756 = vmatprep.subr.mxu0 0.0
      %757 = vmatpush2.msra.mxu0 0.0
      %758 = vmatprep.subr.mxu0 0.0
      %759 = vmatpush2.msra.mxu0 0.0
      %760 = vmatprep.mubr.f32.mxu0 0.0
      %761 = vmatmul.mubr.f32.gmra.mxu0 %v694
      %v762 = vpop.f32.mrf.mxu0
      %v763 = vadd.f32 %v690, %v762
      %v764 = vpop.f32.mrf.mxu0
      %765 = vdwg.mxu0
      %v766 = vld [vmem:[%s671] sm:$0xff]
      %v767 = vld [vmem:[%s5] sm:$0xff]
      %v768 = vld [vmem:[%s4] sm:$0x1]
      %v770 = vlaneseq
      %v771 = vshrl.u32 %v770, 7
      %v772 = vsub.s32 0, %v771
      %v773 = vrot.slane %v768, %v772
      %v775 = vsub.f32 %v773, %v763
      %777 = vset.pattern.permute.xlu0 0
      %778 = vperm.xlu0 %777, %v766
      %v779 = vpop.permute.xlu0 %778
      %v781 = vmul.f32 %v779, %v775
      %v782 = vadd.f32 %v763, %v781
      %v783 = vadd.f32 %v782, %v767
      %v784 = vld [vmem:[%s6] sm:$0xff]
      %v785 = vld [vmem:[%s6 + $0x8] sm:$0xff]
      %v786 = vld [vmem:[%s6 + $0x10] sm:$0xff]
      %v787 = vld [vmem:[%s6 + $0x18] sm:$0xff]
      %v788 = vld [vmem:[%s7] sm:$0x1]
      %v790 = vlaneseq
      %v791 = vshrl.u32 %v790, 7
      %v792 = vsub.s32 0, %v791
      %v793 = vrot.slane %v788, %v792
      %v796 = vsel %vm692, %v783, 0
      %798 = vmatprep.subr.mxu0 0.0
      %799 = vmatpush1.msra.mxu0 0.0
      %800 = vmatprep.subr.mxu0 0.0
      %801 = vmatpush1.msra.mxu0 0.0
      %802 = vmatprep.subr.mxu0 0.0
      %803 = vmatpush1.msra.mxu0 0.0
      %804 = vmatprep.subr.mxu0 0.0
      %805 = vmatpush1.msra.mxu0 0.0
      %806 = vmatprep.subr.mxu0 0.0
      %807 = vmatpush1.msra.mxu0 0.0
      %808 = vmatprep.subr.mxu0 0.0
      %809 = vmatpush1.msra.mxu0 0.0
      %810 = vmatprep.subr.mxu0 0.0
      %811 = vmatpush1.msra.mxu0 0.0
      %812 = vmatprep.subr.mxu0 0.0
      %813 = vmatpush1.msra.mxu0 0.0
      %814 = vmatprep.subr.mxu0 0.0
      %815 = vmatpush1.msra.mxu0 0.0
      %816 = vmatprep.subr.mxu0 0.0
      %817 = vmatpush1.msra.mxu0 0.0
      %818 = vmatprep.subr.mxu0 0.0
      %819 = vmatpush1.msra.mxu0 0.0
      %820 = vmatprep.subr.mxu0 0.0
      %821 = vmatpush1.msra.mxu0 0.0
      %822 = vmatprep.subr.mxu0 0.0
      %823 = vmatpush1.msra.mxu0 %v787
      %824 = vmatprep.subr.mxu0 0.0
      %825 = vmatpush1.msra.mxu0 %v786
      %826 = vmatprep.subr.mxu0 0.0
      %827 = vmatpush1.msra.mxu0 %v785
      %828 = vmatprep.subr.mxu0 0.0
      %829 = vmatpush1.msra.mxu0 %v784
      %830 = vmatprep.subr.mxu0 0.0
      %831 = vmatpush2.msra.mxu0 0.0
      %832 = vmatprep.subr.mxu0 0.0
      %833 = vmatpush2.msra.mxu0 0.0
      %834 = vmatprep.subr.mxu0 0.0
      %835 = vmatpush2.msra.mxu0 0.0
      %836 = vmatprep.subr.mxu0 0.0
      %837 = vmatpush2.msra.mxu0 0.0
      %838 = vmatprep.subr.mxu0 0.0
      %839 = vmatpush2.msra.mxu0 0.0
      %840 = vmatprep.subr.mxu0 0.0
      %841 = vmatpush2.msra.mxu0 0.0
      %842 = vmatprep.subr.mxu0 0.0
      %843 = vmatpush2.msra.mxu0 0.0
      %844 = vmatprep.subr.mxu0 0.0
      %845 = vmatpush2.msra.mxu0 0.0
      %846 = vmatprep.subr.mxu0 0.0
      %847 = vmatpush2.msra.mxu0 0.0
      %848 = vmatprep.subr.mxu0 0.0
      %849 = vmatpush2.msra.mxu0 0.0
      %850 = vmatprep.subr.mxu0 0.0
      %851 = vmatpush2.msra.mxu0 0.0
      %852 = vmatprep.subr.mxu0 0.0
      %853 = vmatpush2.msra.mxu0 0.0
      %854 = vmatprep.subr.mxu0 0.0
      %855 = vmatpush2.msra.mxu0 0.0
      %856 = vmatprep.subr.mxu0 0.0
      %857 = vmatpush2.msra.mxu0 0.0
      %858 = vmatprep.subr.mxu0 0.0
      %859 = vmatpush2.msra.mxu0 0.0
      %860 = vmatprep.subr.mxu0 0.0
      %861 = vmatpush2.msra.mxu0 0.0
      %862 = vmatprep.mubr.f32.mxu0 0.0
      %863 = vmatmul.mubr.f32.gmra.mxu0 %v796
      %v864 = vpop.f32.mrf.mxu0
      %v865 = vadd.f32 %v793, %v864
      %v866 = vpop.f32.mrf.mxu0
      %867 = vdwg.mxu0
      %869 = vrot.lane.b32.xlu0 %v865, 96
      %v870 = vpop.permute.xlu0 %869
      %vm871 = vcmask 64512
      %v872 = vsel %vm871, %v865, 0
      %v874 = vsel %vm871, %v870, 0
      %876 = vmatprep.subr.mxu0 0.0
      %877 = vmatpush1.xpose.msra.mxu0 0.0
      %878 = vmatprep.subr.mxu0 0.0
      %879 = vmatpush1.xpose.msra.mxu0 0.0
      %880 = vmatprep.subr.mxu0 0.0
      %881 = vmatpush1.xpose.msra.mxu0 0.0
      %882 = vmatprep.subr.mxu0 0.0
      %883 = vmatpush1.xpose.msra.mxu0 0.0
      %884 = vmatprep.subr.mxu0 0.0
      %885 = vmatpush1.xpose.msra.mxu0 0.0
      %886 = vmatprep.subr.mxu0 0.0
      %887 = vmatpush1.xpose.msra.mxu0 0.0
      %888 = vmatprep.subr.mxu0 0.0
      %889 = vmatpush1.xpose.msra.mxu0 0.0
      %890 = vmatprep.subr.mxu0 0.0
      %891 = vmatpush1.xpose.msra.mxu0 0.0
      %892 = vmatprep.subr.mxu0 0.0
      %893 = vmatpush1.xpose.msra.mxu0 0.0
      %894 = vmatprep.subr.mxu0 0.0
      %895 = vmatpush1.xpose.msra.mxu0 0.0
      %896 = vmatprep.subr.mxu0 0.0
      %897 = vmatpush1.xpose.msra.mxu0 0.0
      %898 = vmatprep.subr.mxu0 0.0
      %899 = vmatpush1.xpose.msra.mxu0 0.0
      %900 = vmatprep.subr.mxu0 0.0
      %901 = vmatpush1.xpose.msra.mxu0 0.0
      %902 = vmatprep.subr.mxu0 0.0
      %903 = vmatpush1.xpose.msra.mxu0 0.0
      %904 = vmatprep.subr.mxu0 0.0
      %905 = vmatpush1.xpose.msra.mxu0 0.0
      %906 = vmatprep.subr.mxu0 0.0
      %907 = vmatpush1.xpose.msra.mxu0 %v874
      %908 = vmatprep.subr.mxu0 0.0
      %909 = vmatpush2.xpose.msra.mxu0 0.0
      %910 = vmatprep.subr.mxu0 0.0
      %911 = vmatpush2.xpose.msra.mxu0 0.0
      %912 = vmatprep.subr.mxu0 0.0
      %913 = vmatpush2.xpose.msra.mxu0 0.0
      %914 = vmatprep.subr.mxu0 0.0
      %915 = vmatpush2.xpose.msra.mxu0 0.0
      %916 = vmatprep.subr.mxu0 0.0
      %917 = vmatpush2.xpose.msra.mxu0 0.0
      %918 = vmatprep.subr.mxu0 0.0
      %919 = vmatpush2.xpose.msra.mxu0 0.0
      %920 = vmatprep.subr.mxu0 0.0
      %921 = vmatpush2.xpose.msra.mxu0 0.0
      %922 = vmatprep.subr.mxu0 0.0
      %923 = vmatpush2.xpose.msra.mxu0 0.0
      %924 = vmatprep.subr.mxu0 0.0
      %925 = vmatpush2.xpose.msra.mxu0 0.0
      %926 = vmatprep.subr.mxu0 0.0
      %927 = vmatpush2.xpose.msra.mxu0 0.0
      %928 = vmatprep.subr.mxu0 0.0
      %929 = vmatpush2.xpose.msra.mxu0 0.0
      %930 = vmatprep.subr.mxu0 0.0
      %931 = vmatpush2.xpose.msra.mxu0 0.0
      %932 = vmatprep.subr.mxu0 0.0
      %933 = vmatpush2.xpose.msra.mxu0 0.0
      %934 = vmatprep.subr.mxu0 0.0
      %935 = vmatpush2.xpose.msra.mxu0 0.0
      %936 = vmatprep.subr.mxu0 0.0
      %937 = vmatpush2.xpose.msra.mxu0 0.0
      %938 = vmatprep.subr.mxu0 0.0
      %939 = vmatpush2.xpose.msra.mxu0 0.0
      %940 = vmatprep.mubr.f32.mxu0 0.0
      %941 = vmatmul.mubr.f32.gmra.mxu0 %v872
      %v942 = vpop.f32.mrf.mxu0
      %v943 = vadd.f32 0.0, %v942
      %v944 = vpop.f32.mrf.mxu0
      %945 = vdwg.mxu0
      %946 = vrot.lane.b32.xlu0 %v865, 120
      %v947 = vpop.permute.xlu0 %946
      %948 = vrot.lane.b32.xlu0 %v865, 88
      %v949 = vpop.permute.xlu0 %948
      %v950 = vsel %vm871, %v947, 0
      %v952 = vsel %vm871, %v949, 0
      %954 = vmatprep.subr.mxu0 0.0
      %955 = vmatpush1.xpose.msra.mxu0 0.0
      %956 = vmatprep.subr.mxu0 0.0
      %957 = vmatpush1.xpose.msra.mxu0 0.0
      %958 = vmatprep.subr.mxu0 0.0
      %959 = vmatpush1.xpose.msra.mxu0 0.0
      %960 = vmatprep.subr.mxu0 0.0
      %961 = vmatpush1.xpose.msra.mxu0 0.0
      %962 = vmatprep.subr.mxu0 0.0
      %963 = vmatpush1.xpose.msra.mxu0 0.0
      %964 = vmatprep.subr.mxu0 0.0
      %965 = vmatpush1.xpose.msra.mxu0 0.0
      %966 = vmatprep.subr.mxu0 0.0
      %967 = vmatpush1.xpose.msra.mxu0 0.0
      %968 = vmatprep.subr.mxu0 0.0
      %969 = vmatpush1.xpose.msra.mxu0 0.0
      %970 = vmatprep.subr.mxu0 0.0
      %971 = vmatpush1.xpose.msra.mxu0 0.0
      %972 = vmatprep.subr.mxu0 0.0
      %973 = vmatpush1.xpose.msra.mxu0 0.0
      %974 = vmatprep.subr.mxu0 0.0
      %975 = vmatpush1.xpose.msra.mxu0 0.0
      %976 = vmatprep.subr.mxu0 0.0
      %977 = vmatpush1.xpose.msra.mxu0 0.0
      %978 = vmatprep.subr.mxu0 0.0
      %979 = vmatpush1.xpose.msra.mxu0 0.0
      %980 = vmatprep.subr.mxu0 0.0
      %981 = vmatpush1.xpose.msra.mxu0 0.0
      %982 = vmatprep.subr.mxu0 0.0
      %983 = vmatpush1.xpose.msra.mxu0 0.0
      %984 = vmatprep.subr.mxu0 0.0
      %985 = vmatpush1.xpose.msra.mxu0 %v952
      %986 = vmatprep.subr.mxu0 0.0
      %987 = vmatpush2.xpose.msra.mxu0 0.0
      %988 = vmatprep.subr.mxu0 0.0
      %989 = vmatpush2.xpose.msra.mxu0 0.0
      %990 = vmatprep.subr.mxu0 0.0
      %991 = vmatpush2.xpose.msra.mxu0 0.0
      %992 = vmatprep.subr.mxu0 0.0
      %993 = vmatpush2.xpose.msra.mxu0 0.0
      %994 = vmatprep.subr.mxu0 0.0
      %995 = vmatpush2.xpose.msra.mxu0 0.0
      %996 = vmatprep.subr.mxu0 0.0
      %997 = vmatpush2.xpose.msra.mxu0 0.0
      %998 = vmatprep.subr.mxu0 0.0
      %999 = vmatpush2.xpose.msra.mxu0 0.0
      %1000 = vmatprep.subr.mxu0 0.0
      %1001 = vmatpush2.xpose.msra.mxu0 0.0
      %1002 = vmatprep.subr.mxu0 0.0
      %1003 = vmatpush2.xpose.msra.mxu0 0.0
      %1004 = vmatprep.subr.mxu0 0.0
      %1005 = vmatpush2.xpose.msra.mxu0 0.0
      %1006 = vmatprep.subr.mxu0 0.0
      %1007 = vmatpush2.xpose.msra.mxu0 0.0
      %1008 = vmatprep.subr.mxu0 0.0
      %1009 = vmatpush2.xpose.msra.mxu0 0.0
      %1010 = vmatprep.subr.mxu0 0.0
      %1011 = vmatpush2.xpose.msra.mxu0 0.0
      %1012 = vmatprep.subr.mxu0 0.0
      %1013 = vmatpush2.xpose.msra.mxu0 0.0
      %1014 = vmatprep.subr.mxu0 0.0
      %1015 = vmatpush2.xpose.msra.mxu0 0.0
      %1016 = vmatprep.subr.mxu0 0.0
      %1017 = vmatpush2.xpose.msra.mxu0 0.0
      %1018 = vmatprep.mubr.f32.mxu0 0.0
      %1019 = vmatmul.mubr.f32.gmra.mxu0 %v950
      %v1020 = vpop.f32.mrf.mxu0
      %v1021 = vadd.f32 0.0, %v1020
      %v1022 = vpop.f32.mrf.mxu0
      %1023 = vdwg.mxu0
      %1024 = vrot.lane.b32.xlu0 %v865, 112
      %v1025 = vpop.permute.xlu0 %1024
      %1026 = vrot.lane.b32.xlu0 %v865, 80
      %v1027 = vpop.permute.xlu0 %1026
      %v1028 = vsel %vm871, %v1025, 0
      %v1030 = vsel %vm871, %v1027, 0
      %1032 = vmatprep.subr.mxu0 0.0
      %1033 = vmatpush1.xpose.msra.mxu0 0.0
      %1034 = vmatprep.subr.mxu0 0.0
      %1035 = vmatpush1.xpose.msra.mxu0 0.0
      %1036 = vmatprep.subr.mxu0 0.0
      %1037 = vmatpush1.xpose.msra.mxu0 0.0
      %1038 = vmatprep.subr.mxu0 0.0
      %1039 = vmatpush1.xpose.msra.mxu0 0.0
      %1040 = vmatprep.subr.mxu0 0.0
      %1041 = vmatpush1.xpose.msra.mxu0 0.0
      %1042 = vmatprep.subr.mxu0 0.0
      %1043 = vmatpush1.xpose.msra.mxu0 0.0
      %1044 = vmatprep.subr.mxu0 0.0
      %1045 = vmatpush1.xpose.msra.mxu0 0.0
      %1046 = vmatprep.subr.mxu0 0.0
      %1047 = vmatpush1.xpose.msra.mxu0 0.0
      %1048 = vmatprep.subr.mxu0 0.0
      %1049 = vmatpush1.xpose.msra.mxu0 0.0
      %1050 = vmatprep.subr.mxu0 0.0
      %1051 = vmatpush1.xpose.msra.mxu0 0.0
      %1052 = vmatprep.subr.mxu0 0.0
      %1053 = vmatpush1.xpose.msra.mxu0 0.0
      %1054 = vmatprep.subr.mxu0 0.0
      %1055 = vmatpush1.xpose.msra.mxu0 0.0
      %1056 = vmatprep.subr.mxu0 0.0
      %1057 = vmatpush1.xpose.msra.mxu0 0.0
      %1058 = vmatprep.subr.mxu0 0.0
      %1059 = vmatpush1.xpose.msra.mxu0 0.0
      %1060 = vmatprep.subr.mxu0 0.0
      %1061 = vmatpush1.xpose.msra.mxu0 0.0
      %1062 = vmatprep.subr.mxu0 0.0
      %1063 = vmatpush1.xpose.msra.mxu0 %v1030
      %1064 = vmatprep.subr.mxu0 0.0
      %1065 = vmatpush2.xpose.msra.mxu0 0.0
      %1066 = vmatprep.subr.mxu0 0.0
      %1067 = vmatpush2.xpose.msra.mxu0 0.0
      %1068 = vmatprep.subr.mxu0 0.0
      %1069 = vmatpush2.xpose.msra.mxu0 0.0
      %1070 = vmatprep.subr.mxu0 0.0
      %1071 = vmatpush2.xpose.msra.mxu0 0.0
      %1072 = vmatprep.subr.mxu0 0.0
      %1073 = vmatpush2.xpose.msra.mxu0 0.0
      %1074 = vmatprep.subr.mxu0 0.0
      %1075 = vmatpush2.xpose.msra.mxu0 0.0
      %1076 = vmatprep.subr.mxu0 0.0
      %1077 = vmatpush2.xpose.msra.mxu0 0.0
      %1078 = vmatprep.subr.mxu0 0.0
      %1079 = vmatpush2.xpose.msra.mxu0 0.0
      %1080 = vmatprep.subr.mxu0 0.0
      %1081 = vmatpush2.xpose.msra.mxu0 0.0
      %1082 = vmatprep.subr.mxu0 0.0
      %1083 = vmatpush2.xpose.msra.mxu0 0.0
      %1084 = vmatprep.subr.mxu0 0.0
      %1085 = vmatpush2.xpose.msra.mxu0 0.0
      %1086 = vmatprep.subr.mxu0 0.0
      %1087 = vmatpush2.xpose.msra.mxu0 0.0
      %1088 = vmatprep.subr.mxu0 0.0
      %1089 = vmatpush2.xpose.msra.mxu0 0.0
      %1090 = vmatprep.subr.mxu0 0.0
      %1091 = vmatpush2.xpose.msra.mxu0 0.0
      %1092 = vmatprep.subr.mxu0 0.0
      %1093 = vmatpush2.xpose.msra.mxu0 0.0
      %1094 = vmatprep.subr.mxu0 0.0
      %1095 = vmatpush2.xpose.msra.mxu0 0.0
      %1096 = vmatprep.mubr.f32.mxu0 0.0
      %1097 = vmatmul.mubr.f32.gmra.mxu0 %v1028
      %v1098 = vpop.f32.mrf.mxu0
      %v1099 = vadd.f32 0.0, %v1098
      %v1100 = vpop.f32.mrf.mxu0
      %1101 = vdwg.mxu0
      %1102 = vrot.lane.b32.xlu0 %v865, 104
      %v1103 = vpop.permute.xlu0 %1102
      %1104 = vrot.lane.b32.xlu0 %v865, 72
      %v1105 = vpop.permute.xlu0 %1104
      %v1106 = vsel %vm871, %v1103, 0
      %v1108 = vsel %vm871, %v1105, 0
      %1110 = vmatprep.subr.mxu0 0.0
      %1111 = vmatpush1.xpose.msra.mxu0 0.0
      %1112 = vmatprep.subr.mxu0 0.0
      %1113 = vmatpush1.xpose.msra.mxu0 0.0
      %1114 = vmatprep.subr.mxu0 0.0
      %1115 = vmatpush1.xpose.msra.mxu0 0.0
      %1116 = vmatprep.subr.mxu0 0.0
      %1117 = vmatpush1.xpose.msra.mxu0 0.0
      %1118 = vmatprep.subr.mxu0 0.0
      %1119 = vmatpush1.xpose.msra.mxu0 0.0
      %1120 = vmatprep.subr.mxu0 0.0
      %1121 = vmatpush1.xpose.msra.mxu0 0.0
      %1122 = vmatprep.subr.mxu0 0.0
      %1123 = vmatpush1.xpose.msra.mxu0 0.0
      %1124 = vmatprep.subr.mxu0 0.0
      %1125 = vmatpush1.xpose.msra.mxu0 0.0
      %1126 = vmatprep.subr.mxu0 0.0
      %1127 = vmatpush1.xpose.msra.mxu0 0.0
      %1128 = vmatprep.subr.mxu0 0.0
      %1129 = vmatpush1.xpose.msra.mxu0 0.0
      %1130 = vmatprep.subr.mxu0 0.0
      %1131 = vmatpush1.xpose.msra.mxu0 0.0
      %1132 = vmatprep.subr.mxu0 0.0
      %1133 = vmatpush1.xpose.msra.mxu0 0.0
      %1134 = vmatprep.subr.mxu0 0.0
      %1135 = vmatpush1.xpose.msra.mxu0 0.0
      %1136 = vmatprep.subr.mxu0 0.0
      %1137 = vmatpush1.xpose.msra.mxu0 0.0
      %1138 = vmatprep.subr.mxu0 0.0
      %1139 = vmatpush1.xpose.msra.mxu0 0.0
      %1140 = vmatprep.subr.mxu0 0.0
      %1141 = vmatpush1.xpose.msra.mxu0 %v1108
      %1142 = vmatprep.subr.mxu0 0.0
      %1143 = vmatpush2.xpose.msra.mxu0 0.0
      %1144 = vmatprep.subr.mxu0 0.0
      %1145 = vmatpush2.xpose.msra.mxu0 0.0
      %1146 = vmatprep.subr.mxu0 0.0
      %1147 = vmatpush2.xpose.msra.mxu0 0.0
      %1148 = vmatprep.subr.mxu0 0.0
      %1149 = vmatpush2.xpose.msra.mxu0 0.0
      %1150 = vmatprep.subr.mxu0 0.0
      %1151 = vmatpush2.xpose.msra.mxu0 0.0
      %1152 = vmatprep.subr.mxu0 0.0
      %1153 = vmatpush2.xpose.msra.mxu0 0.0
      %1154 = vmatprep.subr.mxu0 0.0
      %1155 = vmatpush2.xpose.msra.mxu0 0.0
      %1156 = vmatprep.subr.mxu0 0.0
      %1157 = vmatpush2.xpose.msra.mxu0 0.0
      %1158 = vmatprep.subr.mxu0 0.0
      %1159 = vmatpush2.xpose.msra.mxu0 0.0
      %1160 = vmatprep.subr.mxu0 0.0
      %1161 = vmatpush2.xpose.msra.mxu0 0.0
      %1162 = vmatprep.subr.mxu0 0.0
      %1163 = vmatpush2.xpose.msra.mxu0 0.0
      %1164 = vmatprep.subr.mxu0 0.0
      %1165 = vmatpush2.xpose.msra.mxu0 0.0
      %1166 = vmatprep.subr.mxu0 0.0
      %1167 = vmatpush2.xpose.msra.mxu0 0.0
      %1168 = vmatprep.subr.mxu0 0.0
      %1169 = vmatpush2.xpose.msra.mxu0 0.0
      %1170 = vmatprep.subr.mxu0 0.0
      %1171 = vmatpush2.xpose.msra.mxu0 0.0
      %1172 = vmatprep.subr.mxu0 0.0
      %1173 = vmatpush2.xpose.msra.mxu0 0.0
      %1174 = vmatprep.mubr.f32.mxu0 0.0
      %1175 = vmatmul.mubr.f32.gmra.mxu0 %v1106
      %v1176 = vpop.f32.mrf.mxu0
      %v1177 = vadd.f32 0.0, %v1176
      %v1178 = vpop.f32.mrf.mxu0
      %1179 = vdwg.mxu0
      %v1180 = vsel %vm871, %v943, -inf
      %1181 = vmax.xlane.f32.xlu0 %v1180
      %v1182 = vpop.xlane.xlu0 %1181
      %v1183 = vsel %vm871, %v1021, -inf
      %1184 = vmax.xlane.f32.xlu0 %v1183
      %v1185 = vpop.xlane.xlu0 %1184
      %v1186 = vsel %vm871, %v1099, -inf
      %1187 = vmax.xlane.f32.xlu0 %v1186
      %v1188 = vpop.xlane.xlu0 %1187
      %v1189 = vsel %vm871, %v1177, -inf
      %1190 = vmax.xlane.f32.xlu0 %v1189
      %v1191 = vpop.xlane.xlu0 %1190
      %v1192 = vsub.f32 %v943, %v1182
      %v1193 = vsub.f32 %v1021, %v1185
      %v1194 = vsub.f32 %v1099, %v1188
      %v1195 = vsub.f32 %v1177, %v1191
      %v1196 = vmul.f32 %v1192, 1.442695
      %v1197 = vpow.pop %v1196
      %v1198 = vmul.f32 %v1193, 1.442695
      %v1199 = vpow.pop %v1198
      %v1200 = vmul.f32 %v1194, 1.442695
      %v1201 = vpow.pop %v1200
      %v1202 = vmul.f32 %v1195, 1.442695
      %v1203 = vpow.pop %v1202
      %v1204 = vsel %vm871, %v1197, 0.0
      %1205 = vadd.xlane.f32.xlu0 %v1204
      %v1206 = vpop.xlane.xlu0 %1205
      %v1207 = vsel %vm871, %v1199, 0.0
      %1208 = vadd.xlane.f32.xlu0 %v1207
      %v1209 = vpop.xlane.xlu0 %1208
      %v1210 = vsel %vm871, %v1201, 0.0
      %1211 = vadd.xlane.f32.xlu0 %v1210
      %v1212 = vpop.xlane.xlu0 %1211
      %v1213 = vsel %vm871, %v1203, 0.0
      %1214 = vadd.xlane.f32.xlu0 %v1213
      %v1215 = vpop.xlane.xlu0 %1214
      %v1216 = vrcp.pop %v1206
      %v1217 = vrcp.pop %v1209
      %v1218 = vrcp.pop %v1212
      %v1219 = vrcp.pop %v1215
      %v1220 = vmul.f32 %v1197, %v1216
      %v1221 = vmul.f32 %v1199, %v1217
      %v1222 = vmul.f32 %v1201, %v1218
      %v1223 = vmul.f32 %v1203, %v1219
      %1224 = vrot.lane.b32.xlu0 %v865, 64
      %v1225 = vpop.permute.xlu0 %1224
      %v1228 = vsel %vm871, %v1220, 0
      %1230 = vmatprep.subr.mxu0 0.0
      %1231 = vmatpush1.msra.mxu0 0.0
      %1232 = vmatprep.subr.mxu0 0.0
      %1233 = vmatpush1.msra.mxu0 0.0
      %1234 = vmatprep.subr.mxu0 0.0
      %1235 = vmatpush1.msra.mxu0 0.0
      %1236 = vmatprep.subr.mxu0 0.0
      %1237 = vmatpush1.msra.mxu0 0.0
      %1238 = vmatprep.subr.mxu0 0.0
      %1239 = vmatpush1.msra.mxu0 0.0
      %1240 = vmatprep.subr.mxu0 0.0
      %1241 = vmatpush1.msra.mxu0 0.0
      %1242 = vmatprep.subr.mxu0 0.0
      %1243 = vmatpush1.msra.mxu0 0.0
      %1244 = vmatprep.subr.mxu0 0.0
      %1245 = vmatpush1.msra.mxu0 0.0
      %1246 = vmatprep.subr.mxu0 0.0
      %1247 = vmatpush1.msra.mxu0 0.0
      %1248 = vmatprep.subr.mxu0 0.0
      %1249 = vmatpush1.msra.mxu0 0.0
      %1250 = vmatprep.subr.mxu0 0.0
      %1251 = vmatpush1.msra.mxu0 0.0
      %1252 = vmatprep.subr.mxu0 0.0
      %1253 = vmatpush1.msra.mxu0 0.0
      %1254 = vmatprep.subr.mxu0 0.0
      %1255 = vmatpush1.msra.mxu0 0.0
      %1256 = vmatprep.subr.mxu0 0.0
      %1257 = vmatpush1.msra.mxu0 0.0
      %1258 = vmatprep.subr.mxu0 0.0
      %1259 = vmatpush1.msra.mxu0 0.0
      %1260 = vmatprep.subr.mxu0 0.0
      %1261 = vmatpush1.msra.mxu0 %v1225
      %1262 = vmatprep.subr.mxu0 0.0
      %1263 = vmatpush2.msra.mxu0 0.0
      %1264 = vmatprep.subr.mxu0 0.0
      %1265 = vmatpush2.msra.mxu0 0.0
      %1266 = vmatprep.subr.mxu0 0.0
      %1267 = vmatpush2.msra.mxu0 0.0
      %1268 = vmatprep.subr.mxu0 0.0
      %1269 = vmatpush2.msra.mxu0 0.0
      %1270 = vmatprep.subr.mxu0 0.0
      %1271 = vmatpush2.msra.mxu0 0.0
      %1272 = vmatprep.subr.mxu0 0.0
      %1273 = vmatpush2.msra.mxu0 0.0
      %1274 = vmatprep.subr.mxu0 0.0
      %1275 = vmatpush2.msra.mxu0 0.0
      %1276 = vmatprep.subr.mxu0 0.0
      %1277 = vmatpush2.msra.mxu0 0.0
      %1278 = vmatprep.subr.mxu0 0.0
      %1279 = vmatpush2.msra.mxu0 0.0
      %1280 = vmatprep.subr.mxu0 0.0
      %1281 = vmatpush2.msra.mxu0 0.0
      %1282 = vmatprep.subr.mxu0 0.0
      %1283 = vmatpush2.msra.mxu0 0.0
      %1284 = vmatprep.subr.mxu0 0.0
      %1285 = vmatpush2.msra.mxu0 0.0
      %1286 = vmatprep.subr.mxu0 0.0
      %1287 = vmatpush2.msra.mxu0 0.0
      %1288 = vmatprep.subr.mxu0 0.0
      %1289 = vmatpush2.msra.mxu0 0.0
      %1290 = vmatprep.subr.mxu0 0.0
      %1291 = vmatpush2.msra.mxu0 0.0
      %1292 = vmatprep.subr.mxu0 0.0
      %1293 = vmatpush2.msra.mxu0 0.0
      %1294 = vmatprep.mubr.f32.mxu0 0.0
      %1295 = vmatmul.mubr.f32.gmra.mxu0 %v1228
      %v1296 = vpop.f32.mrf.mxu0
      %v1297 = vadd.f32 0.0, %v1296
      %v1298 = vpop.f32.mrf.mxu0
      %1299 = vdwg.mxu0
      %1300 = vrot.lane.b32.xlu0 %v865, 56
      %v1301 = vpop.permute.xlu0 %1300
      %v1304 = vsel %vm871, %v1221, 0
      %1306 = vmatprep.subr.mxu0 0.0
      %1307 = vmatpush1.msra.mxu0 0.0
      %1308 = vmatprep.subr.mxu0 0.0
      %1309 = vmatpush1.msra.mxu0 0.0
      %1310 = vmatprep.subr.mxu0 0.0
      %1311 = vmatpush1.msra.mxu0 0.0
      %1312 = vmatprep.subr.mxu0 0.0
      %1313 = vmatpush1.msra.mxu0 0.0
      %1314 = vmatprep.subr.mxu0 0.0
      %1315 = vmatpush1.msra.mxu0 0.0
      %1316 = vmatprep.subr.mxu0 0.0
      %1317 = vmatpush1.msra.mxu0 0.0
      %1318 = vmatprep.subr.mxu0 0.0
      %1319 = vmatpush1.msra.mxu0 0.0
      %1320 = vmatprep.subr.mxu0 0.0
      %1321 = vmatpush1.msra.mxu0 0.0
      %1322 = vmatprep.subr.mxu0 0.0
      %1323 = vmatpush1.msra.mxu0 0.0
      %1324 = vmatprep.subr.mxu0 0.0
      %1325 = vmatpush1.msra.mxu0 0.0
      %1326 = vmatprep.subr.mxu0 0.0
      %1327 = vmatpush1.msra.mxu0 0.0
      %1328 = vmatprep.subr.mxu0 0.0
      %1329 = vmatpush1.msra.mxu0 0.0
      %1330 = vmatprep.subr.mxu0 0.0
      %1331 = vmatpush1.msra.mxu0 0.0
      %1332 = vmatprep.subr.mxu0 0.0
      %1333 = vmatpush1.msra.mxu0 0.0
      %1334 = vmatprep.subr.mxu0 0.0
      %1335 = vmatpush1.msra.mxu0 0.0
      %1336 = vmatprep.subr.mxu0 0.0
      %1337 = vmatpush1.msra.mxu0 %v1301
      %1338 = vmatprep.subr.mxu0 0.0
      %1339 = vmatpush2.msra.mxu0 0.0
      %1340 = vmatprep.subr.mxu0 0.0
      %1341 = vmatpush2.msra.mxu0 0.0
      %1342 = vmatprep.subr.mxu0 0.0
      %1343 = vmatpush2.msra.mxu0 0.0
      %1344 = vmatprep.subr.mxu0 0.0
      %1345 = vmatpush2.msra.mxu0 0.0
      %1346 = vmatprep.subr.mxu0 0.0
      %1347 = vmatpush2.msra.mxu0 0.0
      %1348 = vmatprep.subr.mxu0 0.0
      %1349 = vmatpush2.msra.mxu0 0.0
      %1350 = vmatprep.subr.mxu0 0.0
      %1351 = vmatpush2.msra.mxu0 0.0
      %1352 = vmatprep.subr.mxu0 0.0
      %1353 = vmatpush2.msra.mxu0 0.0
      %1354 = vmatprep.subr.mxu0 0.0
      %1355 = vmatpush2.msra.mxu0 0.0
      %1356 = vmatprep.subr.mxu0 0.0
      %1357 = vmatpush2.msra.mxu0 0.0
      %1358 = vmatprep.subr.mxu0 0.0
      %1359 = vmatpush2.msra.mxu0 0.0
      %1360 = vmatprep.subr.mxu0 0.0
      %1361 = vmatpush2.msra.mxu0 0.0
      %1362 = vmatprep.subr.mxu0 0.0
      %1363 = vmatpush2.msra.mxu0 0.0
      %1364 = vmatprep.subr.mxu0 0.0
      %1365 = vmatpush2.msra.mxu0 0.0
      %1366 = vmatprep.subr.mxu0 0.0
      %1367 = vmatpush2.msra.mxu0 0.0
      %1368 = vmatprep.subr.mxu0 0.0
      %1369 = vmatpush2.msra.mxu0 0.0
      %1370 = vmatprep.mubr.f32.mxu0 0.0
      %1371 = vmatmul.mubr.f32.gmra.mxu0 %v1304
      %v1372 = vpop.f32.mrf.mxu0
      %v1373 = vadd.f32 0.0, %v1372
      %v1374 = vpop.f32.mrf.mxu0
      %1375 = vdwg.mxu0
      %1376 = vrot.lane.b32.xlu0 %v865, 48
      %v1377 = vpop.permute.xlu0 %1376
      %v1380 = vsel %vm871, %v1222, 0
      %1382 = vmatprep.subr.mxu0 0.0
      %1383 = vmatpush1.msra.mxu0 0.0
      %1384 = vmatprep.subr.mxu0 0.0
      %1385 = vmatpush1.msra.mxu0 0.0
      %1386 = vmatprep.subr.mxu0 0.0
      %1387 = vmatpush1.msra.mxu0 0.0
      %1388 = vmatprep.subr.mxu0 0.0
      %1389 = vmatpush1.msra.mxu0 0.0
      %1390 = vmatprep.subr.mxu0 0.0
      %1391 = vmatpush1.msra.mxu0 0.0
      %1392 = vmatprep.subr.mxu0 0.0
      %1393 = vmatpush1.msra.mxu0 0.0
      %1394 = vmatprep.subr.mxu0 0.0
      %1395 = vmatpush1.msra.mxu0 0.0
      %1396 = vmatprep.subr.mxu0 0.0
      %1397 = vmatpush1.msra.mxu0 0.0
      %1398 = vmatprep.subr.mxu0 0.0
      %1399 = vmatpush1.msra.mxu0 0.0
      %1400 = vmatprep.subr.mxu0 0.0
      %1401 = vmatpush1.msra.mxu0 0.0
      %1402 = vmatprep.subr.mxu0 0.0
      %1403 = vmatpush1.msra.mxu0 0.0
      %1404 = vmatprep.subr.mxu0 0.0
      %1405 = vmatpush1.msra.mxu0 0.0
      %1406 = vmatprep.subr.mxu0 0.0
      %1407 = vmatpush1.msra.mxu0 0.0
      %1408 = vmatprep.subr.mxu0 0.0
      %1409 = vmatpush1.msra.mxu0 0.0
      %1410 = vmatprep.subr.mxu0 0.0
      %1411 = vmatpush1.msra.mxu0 0.0
      %1412 = vmatprep.subr.mxu0 0.0
      %1413 = vmatpush1.msra.mxu0 %v1377
      %1414 = vmatprep.subr.mxu0 0.0
      %1415 = vmatpush2.msra.mxu0 0.0
      %1416 = vmatprep.subr.mxu0 0.0
      %1417 = vmatpush2.msra.mxu0 0.0
      %1418 = vmatprep.subr.mxu0 0.0
      %1419 = vmatpush2.msra.mxu0 0.0
      %1420 = vmatprep.subr.mxu0 0.0
      %1421 = vmatpush2.msra.mxu0 0.0
      %1422 = vmatprep.subr.mxu0 0.0
      %1423 = vmatpush2.msra.mxu0 0.0
      %1424 = vmatprep.subr.mxu0 0.0
      %1425 = vmatpush2.msra.mxu0 0.0
      %1426 = vmatprep.subr.mxu0 0.0
      %1427 = vmatpush2.msra.mxu0 0.0
      %1428 = vmatprep.subr.mxu0 0.0
      %1429 = vmatpush2.msra.mxu0 0.0
      %1430 = vmatprep.subr.mxu0 0.0
      %1431 = vmatpush2.msra.mxu0 0.0
      %1432 = vmatprep.subr.mxu0 0.0
      %1433 = vmatpush2.msra.mxu0 0.0
      %1434 = vmatprep.subr.mxu0 0.0
      %1435 = vmatpush2.msra.mxu0 0.0
      %1436 = vmatprep.subr.mxu0 0.0
      %1437 = vmatpush2.msra.mxu0 0.0
      %1438 = vmatprep.subr.mxu0 0.0
      %1439 = vmatpush2.msra.mxu0 0.0
      %1440 = vmatprep.subr.mxu0 0.0
      %1441 = vmatpush2.msra.mxu0 0.0
      %1442 = vmatprep.subr.mxu0 0.0
      %1443 = vmatpush2.msra.mxu0 0.0
      %1444 = vmatprep.subr.mxu0 0.0
      %1445 = vmatpush2.msra.mxu0 0.0
      %1446 = vmatprep.mubr.f32.mxu0 0.0
      %1447 = vmatmul.mubr.f32.gmra.mxu0 %v1380
      %v1448 = vpop.f32.mrf.mxu0
      %v1449 = vadd.f32 0.0, %v1448
      %v1450 = vpop.f32.mrf.mxu0
      %1451 = vdwg.mxu0
      %1452 = vrot.lane.b32.xlu0 %v865, 40
      %v1453 = vpop.permute.xlu0 %1452
      %v1456 = vsel %vm871, %v1223, 0
      %1458 = vmatprep.subr.mxu0 0.0
      %1459 = vmatpush1.msra.mxu0 0.0
      %1460 = vmatprep.subr.mxu0 0.0
      %1461 = vmatpush1.msra.mxu0 0.0
      %1462 = vmatprep.subr.mxu0 0.0
      %1463 = vmatpush1.msra.mxu0 0.0
      %1464 = vmatprep.subr.mxu0 0.0
      %1465 = vmatpush1.msra.mxu0 0.0
      %1466 = vmatprep.subr.mxu0 0.0
      %1467 = vmatpush1.msra.mxu0 0.0
      %1468 = vmatprep.subr.mxu0 0.0
      %1469 = vmatpush1.msra.mxu0 0.0
      %1470 = vmatprep.subr.mxu0 0.0
      %1471 = vmatpush1.msra.mxu0 0.0
      %1472 = vmatprep.subr.mxu0 0.0
      %1473 = vmatpush1.msra.mxu0 0.0
      %1474 = vmatprep.subr.mxu0 0.0
      %1475 = vmatpush1.msra.mxu0 0.0
      %1476 = vmatprep.subr.mxu0 0.0
      %1477 = vmatpush1.msra.mxu0 0.0
      %1478 = vmatprep.subr.mxu0 0.0
      %1479 = vmatpush1.msra.mxu0 0.0
      %1480 = vmatprep.subr.mxu0 0.0
      %1481 = vmatpush1.msra.mxu0 0.0
      %1482 = vmatprep.subr.mxu0 0.0
      %1483 = vmatpush1.msra.mxu0 0.0
      %1484 = vmatprep.subr.mxu0 0.0
      %1485 = vmatpush1.msra.mxu0 0.0
      %1486 = vmatprep.subr.mxu0 0.0
      %1487 = vmatpush1.msra.mxu0 0.0
      %1488 = vmatprep.subr.mxu0 0.0
      %1489 = vmatpush1.msra.mxu0 %v1453
      %1490 = vmatprep.subr.mxu0 0.0
      %1491 = vmatpush2.msra.mxu0 0.0
      %1492 = vmatprep.subr.mxu0 0.0
      %1493 = vmatpush2.msra.mxu0 0.0
      %1494 = vmatprep.subr.mxu0 0.0
      %1495 = vmatpush2.msra.mxu0 0.0
      %1496 = vmatprep.subr.mxu0 0.0
      %1497 = vmatpush2.msra.mxu0 0.0
      %1498 = vmatprep.subr.mxu0 0.0
      %1499 = vmatpush2.msra.mxu0 0.0
      %1500 = vmatprep.subr.mxu0 0.0
      %1501 = vmatpush2.msra.mxu0 0.0
      %1502 = vmatprep.subr.mxu0 0.0
      %1503 = vmatpush2.msra.mxu0 0.0
      %1504 = vmatprep.subr.mxu0 0.0
      %1505 = vmatpush2.msra.mxu0 0.0
      %1506 = vmatprep.subr.mxu0 0.0
      %1507 = vmatpush2.msra.mxu0 0.0
      %1508 = vmatprep.subr.mxu0 0.0
      %1509 = vmatpush2.msra.mxu0 0.0
      %1510 = vmatprep.subr.mxu0 0.0
      %1511 = vmatpush2.msra.mxu0 0.0
      %1512 = vmatprep.subr.mxu0 0.0
      %1513 = vmatpush2.msra.mxu0 0.0
      %1514 = vmatprep.subr.mxu0 0.0
      %1515 = vmatpush2.msra.mxu0 0.0
      %1516 = vmatprep.subr.mxu0 0.0
      %1517 = vmatpush2.msra.mxu0 0.0
      %1518 = vmatprep.subr.mxu0 0.0
      %1519 = vmatpush2.msra.mxu0 0.0
      %1520 = vmatprep.subr.mxu0 0.0
      %1521 = vmatpush2.msra.mxu0 0.0
      %1522 = vmatprep.mubr.f32.mxu0 0.0
      %1523 = vmatmul.mubr.f32.gmra.mxu0 %v1456
      %v1524 = vpop.f32.mrf.mxu0
      %v1525 = vadd.f32 0.0, %v1524
      %v1526 = vpop.f32.mrf.mxu0
      %1527 = vdwg.mxu0
      %1529 = vrot.lane.b32.xlu0 %v1373, 8
      %v1530 = vpop.permute.xlu0 %1529
      %1533 = vrot.lane.b32.xlu0 %v1449, 16
      %v1534 = vpop.permute.xlu0 %1533
      %1537 = vrot.lane.b32.xlu0 %v1525, 24
      %v1538 = vpop.permute.xlu0 %1537
      %v1540 = vsel %vm871, %v1297, %v1530
      %vm1541 = vcmask 130048
      %v1542 = vsel %vm1541, %v1540, %v1534
      %vm1543 = vcmask 195584
      %v1544 = vsel %vm1543, %v1542, %v1538
      %v1545 = vld [vmem:[%s8] sm:$0xff]
      %v1546 = vld [vmem:[%s8 + $0x8] sm:$0xff]
      %v1547 = vld [vmem:[%s8 + $0x10] sm:$0xff]
      %v1548 = vld [vmem:[%s8 + $0x18] sm:$0xff]
      %v1549 = vld [vmem:[%s9] sm:$0x1]
      %v1551 = vlaneseq
      %v1552 = vshrl.u32 %v1551, 7
      %v1553 = vsub.s32 0, %v1552
      %v1554 = vrot.slane %v1549, %v1553
      %v1557 = vsel %vm692, %v1544, 0
      %1559 = vmatprep.subr.mxu0 0.0
      %1560 = vmatpush1.msra.mxu0 0.0
      %1561 = vmatprep.subr.mxu0 0.0
      %1562 = vmatpush1.msra.mxu0 0.0
      %1563 = vmatprep.subr.mxu0 0.0
      %1564 = vmatpush1.msra.mxu0 0.0
      %1565 = vmatprep.subr.mxu0 0.0
      %1566 = vmatpush1.msra.mxu0 0.0
      %1567 = vmatprep.subr.mxu0 0.0
      %1568 = vmatpush1.msra.mxu0 0.0
      %1569 = vmatprep.subr.mxu0 0.0
      %1570 = vmatpush1.msra.mxu0 0.0
      %1571 = vmatprep.subr.mxu0 0.0
      %1572 = vmatpush1.msra.mxu0 0.0
      %1573 = vmatprep.subr.mxu0 0.0
      %1574 = vmatpush1.msra.mxu0 0.0
      %1575 = vmatprep.subr.mxu0 0.0
      %1576 = vmatpush1.msra.mxu0 0.0
      %1577 = vmatprep.subr.mxu0 0.0
      %1578 = vmatpush1.msra.mxu0 0.0
      %1579 = vmatprep.subr.mxu0 0.0
      %1580 = vmatpush1.msra.mxu0 0.0
      %1581 = vmatprep.subr.mxu0 0.0
      %1582 = vmatpush1.msra.mxu0 0.0
      %1583 = vmatprep.subr.mxu0 0.0
      %1584 = vmatpush1.msra.mxu0 %v1548
      %1585 = vmatprep.subr.mxu0 0.0
      %1586 = vmatpush1.msra.mxu0 %v1547
      %1587 = vmatprep.subr.mxu0 0.0
      %1588 = vmatpush1.msra.mxu0 %v1546
      %1589 = vmatprep.subr.mxu0 0.0
      %1590 = vmatpush1.msra.mxu0 %v1545
      %1591 = vmatprep.subr.mxu0 0.0
      %1592 = vmatpush2.msra.mxu0 0.0
      %1593 = vmatprep.subr.mxu0 0.0
      %1594 = vmatpush2.msra.mxu0 0.0
      %1595 = vmatprep.subr.mxu0 0.0
      %1596 = vmatpush2.msra.mxu0 0.0
      %1597 = vmatprep.subr.mxu0 0.0
      %1598 = vmatpush2.msra.mxu0 0.0
      %1599 = vmatprep.subr.mxu0 0.0
      %1600 = vmatpush2.msra.mxu0 0.0
      %1601 = vmatprep.subr.mxu0 0.0
      %1602 = vmatpush2.msra.mxu0 0.0
      %1603 = vmatprep.subr.mxu0 0.0
      %1604 = vmatpush2.msra.mxu0 0.0
      %1605 = vmatprep.subr.mxu0 0.0
      %1606 = vmatpush2.msra.mxu0 0.0
      %1607 = vmatprep.subr.mxu0 0.0
      %1608 = vmatpush2.msra.mxu0 0.0
      %1609 = vmatprep.subr.mxu0 0.0
      %1610 = vmatpush2.msra.mxu0 0.0
      %1611 = vmatprep.subr.mxu0 0.0
      %1612 = vmatpush2.msra.mxu0 0.0
      %1613 = vmatprep.subr.mxu0 0.0
      %1614 = vmatpush2.msra.mxu0 0.0
      %1615 = vmatprep.subr.mxu0 0.0
      %1616 = vmatpush2.msra.mxu0 0.0
      %1617 = vmatprep.subr.mxu0 0.0
      %1618 = vmatpush2.msra.mxu0 0.0
      %1619 = vmatprep.subr.mxu0 0.0
      %1620 = vmatpush2.msra.mxu0 0.0
      %1621 = vmatprep.subr.mxu0 0.0
      %1622 = vmatpush2.msra.mxu0 0.0
      %1623 = vmatprep.mubr.f32.mxu0 0.0
      %1624 = vmatmul.mubr.f32.gmra.mxu0 %v1557
      %v1625 = vpop.f32.mrf.mxu0
      %v1626 = vadd.f32 %v1554, %v1625
      %v1627 = vpop.f32.mrf.mxu0
      %1628 = vdwg.mxu0
      %v1629 = vadd.f32 %v783, %v1626
      %v1630 = vld [vmem:[%s14] sm:$0x1]
      %v1631 = vld [vmem:[%s15] sm:$0x1]
      %v1632 = vsel %vm692, %v1629, 0.0
      %1633 = vadd.xlane.f32.xlu0 %v1632
      %v1634 = vpop.xlane.xlu0 %1633
      %v1635 = vrcp.pop 32.0
      %v1636 = vmul.f32 %v1634, %v1635
      %v1637 = vsub.f32 %v1629, %v1636
      %v1638 = vmul.f32 %v1637, %v1637
      %v1639 = vsel %vm692, %v1638, 0.0
      %1640 = vadd.xlane.f32.xlu0 %v1639
      %v1641 = vpop.xlane.xlu0 %1640
      %v1642 = vmul.f32 %v1641, %v1635
      %v1643 = vadd.f32 %v1642, 1e-05
      %v1644 = vrsqrt.pop %v1643
      %v1645 = vmul.f32 %v1637, %v1644
      %v1647 = vlaneseq
      %v1648 = vshrl.u32 %v1647, 7
      %v1649 = vsub.s32 0, %v1648
      %v1650 = vrot.slane %v1630, %v1649
      %v1652 = vmul.f32 %v1645, %v1650
      %v1654 = vlaneseq
      %v1655 = vshrl.u32 %v1654, 7
      %v1656 = vsub.s32 0, %v1655
      %v1657 = vrot.slane %v1631, %v1656
      %v1659 = vadd.f32 %v1652, %v1657
      %v1660 = vld [vmem:[%s10] sm:$0xff]
      %v1661 = vld [vmem:[%s10 + $0x8] sm:$0xff]
      %v1662 = vld [vmem:[%s10 + $0x10] sm:$0xff]
      %v1663 = vld [vmem:[%s10 + $0x18] sm:$0xff]
      %v1664 = vld [vmem:[%s11] sm:$0x1]
      %v1666 = vlaneseq
      %v1667 = vshrl.u32 %v1666, 7
      %v1668 = vsub.s32 0, %v1667
      %v1669 = vrot.slane %v1664, %v1668
      %v1672 = vsel %vm692, %v1659, 0
      %1674 = vmatprep.subr.mxu0 0.0
      %1675 = vmatpush1.msra.mxu0 0.0
      %1676 = vmatprep.subr.mxu0 0.0
      %1677 = vmatpush1.msra.mxu0 0.0
      %1678 = vmatprep.subr.mxu0 0.0
      %1679 = vmatpush1.msra.mxu0 0.0
      %1680 = vmatprep.subr.mxu0 0.0
      %1681 = vmatpush1.msra.mxu0 0.0
      %1682 = vmatprep.subr.mxu0 0.0
      %1683 = vmatpush1.msra.mxu0 0.0
      %1684 = vmatprep.subr.mxu0 0.0
      %1685 = vmatpush1.msra.mxu0 0.0
      %1686 = vmatprep.subr.mxu0 0.0
      %1687 = vmatpush1.msra.mxu0 0.0
      %1688 = vmatprep.subr.mxu0 0.0
      %1689 = vmatpush1.msra.mxu0 0.0
      %1690 = vmatprep.subr.mxu0 0.0
      %1691 = vmatpush1.msra.mxu0 0.0
      %1692 = vmatprep.subr.mxu0 0.0
      %1693 = vmatpush1.msra.mxu0 0.0
      %1694 = vmatprep.subr.mxu0 0.0
      %1695 = vmatpush1.msra.mxu0 0.0
      %1696 = vmatprep.subr.mxu0 0.0
      %1697 = vmatpush1.msra.mxu0 0.0
      %1698 = vmatprep.subr.mxu0 0.0
      %1699 = vmatpush1.msra.mxu0 %v1663
      %1700 = vmatprep.subr.mxu0 0.0
      %1701 = vmatpush1.msra.mxu0 %v1662
      %1702 = vmatprep.subr.mxu0 0.0
      %1703 = vmatpush1.msra.mxu0 %v1661
      %1704 = vmatprep.subr.mxu0 0.0
      %1705 = vmatpush1.msra.mxu0 %v1660
      %1706 = vmatprep.subr.mxu0 0.0
      %1707 = vmatpush2.msra.mxu0 0.0
      %1708 = vmatprep.subr.mxu0 0.0
      %1709 = vmatpush2.msra.mxu0 0.0
      %1710 = vmatprep.subr.mxu0 0.0
      %1711 = vmatpush2.msra.mxu0 0.0
      %1712 = vmatprep.subr.mxu0 0.0
      %1713 = vmatpush2.msra.mxu0 0.0
      %1714 = vmatprep.subr.mxu0 0.0
      %1715 = vmatpush2.msra.mxu0 0.0
      %1716 = vmatprep.subr.mxu0 0.0
      %1717 = vmatpush2.msra.mxu0 0.0
      %1718 = vmatprep.subr.mxu0 0.0
      %1719 = vmatpush2.msra.mxu0 0.0
      %1720 = vmatprep.subr.mxu0 0.0
      %1721 = vmatpush2.msra.mxu0 0.0
      %1722 = vmatprep.subr.mxu0 0.0
      %1723 = vmatpush2.msra.mxu0 0.0
      %1724 = vmatprep.subr.mxu0 0.0
      %1725 = vmatpush2.msra.mxu0 0.0
      %1726 = vmatprep.subr.mxu0 0.0
      %1727 = vmatpush2.msra.mxu0 0.0
      %1728 = vmatprep.subr.mxu0 0.0
      %1729 = vmatpush2.msra.mxu0 0.0
      %1730 = vmatprep.subr.mxu0 0.0
      %1731 = vmatpush2.msra.mxu0 0.0
      %1732 = vmatprep.subr.mxu0 0.0
      %1733 = vmatpush2.msra.mxu0 0.0
      %1734 = vmatprep.subr.mxu0 0.0
      %1735 = vmatpush2.msra.mxu0 0.0
      %1736 = vmatprep.subr.mxu0 0.0
      %1737 = vmatpush2.msra.mxu0 0.0
      %1738 = vmatprep.mubr.f32.mxu0 0.0
      %1739 = vmatmul.mubr.f32.gmra.mxu0 %v1672
      %v1740 = vpop.f32.mrf.mxu0
      %v1741 = vadd.f32 %v1669, %v1740
      %v1742 = vpop.f32.mrf.mxu0
      %1743 = vdwg.mxu0
      %v1744 = vmul.f32 %v1741, %v1741
      %v1745 = vmul.f32 %v1741, %v1744
      %v1746 = vmul.f32 %v1745, 0.044715
      %v1747 = vadd.f32 %v1741, %v1746
      %v1748 = vmul.f32 %v1747, 0.7978846
      %v1749 = vtanh.pop %v1748
      %v1750 = vadd.f32 %v1749, 1.0
      %v1751 = vmul.f32 %v1750, 0.5
      %v1752 = vmul.f32 %v1741, %v1751
      %v1753 = vld [vmem:[%s12] sm:$0xff]
      %v1754 = vld [vmem:[%s12 + $0x8] sm:$0xff]
      %v1755 = vld [vmem:[%s12 + $0x10] sm:$0xff]
      %v1756 = vld [vmem:[%s12 + $0x18] sm:$0xff]
      %v1757 = vld [vmem:[%s12 + $0x20] sm:$0xff]
      %v1758 = vld [vmem:[%s12 + $0x28] sm:$0xff]
      %v1759 = vld [vmem:[%s12 + $0x30] sm:$0xff]
      %v1760 = vld [vmem:[%s12 + $0x38] sm:$0xff]
      %v1761 = vld [vmem:[%s13] sm:$0x1]
      %v1763 = vlaneseq
      %v1764 = vshrl.u32 %v1763, 7
      %v1765 = vsub.s32 0, %v1764
      %v1766 = vrot.slane %v1761, %v1765
      %vm1768 = vcmask 523264
      %v1770 = vsel %vm1768, %v1752, 0
      %1772 = vmatprep.subr.mxu0 0.0
      %1773 = vmatpush1.msra.mxu0 0.0
      %1774 = vmatprep.subr.mxu0 0.0
      %1775 = vmatpush1.msra.mxu0 0.0
      %1776 = vmatprep.subr.mxu0 0.0
      %1777 = vmatpush1.msra.mxu0 0.0
      %1778 = vmatprep.subr.mxu0 0.0
      %1779 = vmatpush1.msra.mxu0 0.0
      %1780 = vmatprep.subr.mxu0 0.0
      %1781 = vmatpush1.msra.mxu0 0.0
      %1782 = vmatprep.subr.mxu0 0.0
      %1783 = vmatpush1.msra.mxu0 0.0
      %1784 = vmatprep.subr.mxu0 0.0
      %1785 = vmatpush1.msra.mxu0 0.0
      %1786 = vmatprep.subr.mxu0 0.0
      %1787 = vmatpush1.msra.mxu0 0.0
      %1788 = vmatprep.subr.mxu0 0.0
      %1789 = vmatpush1.msra.mxu0 %v1760
      %1790 = vmatprep.subr.mxu0 0.0
      %1791 = vmatpush1.msra.mxu0 %v1759
      %1792 = vmatprep.subr.mxu0 0.0
      %1793 = vmatpush1.msra.mxu0 %v1758
      %1794 = vmatprep.subr.mxu0 0.0
      %1795 = vmatpush1.msra.mxu0 %v1757
      %1796 = vmatprep.subr.mxu0 0.0
      %1797 = vmatpush1.msra.mxu0 %v1756
      %1798 = vmatprep.subr.mxu0 0.0
      %1799 = vmatpush1.msra.mxu0 %v1755
      %1800 = vmatprep.subr.mxu0 0.0
      %1801 = vmatpush1.msra.mxu0 %v1754
      %1802 = vmatprep.subr.mxu0 0.0
      %1803 = vmatpush1.msra.mxu0 %v1753
      %1804 = vmatprep.subr.mxu0 0.0
      %1805 = vmatpush2.msra.mxu0 0.0
      %1806 = vmatprep.subr.mxu0 0.0
      %1807 = vmatpush2.msra.mxu0 0.0
      %1808 = vmatprep.subr.mxu0 0.0
      %1809 = vmatpush2.msra.mxu0 0.0
      %1810 = vmatprep.subr.mxu0 0.0
      %1811 = vmatpush2.msra.mxu0 0.0
      %1812 = vmatprep.subr.mxu0 0.0
      %1813 = vmatpush2.msra.mxu0 0.0
      %1814 = vmatprep.subr.mxu0 0.0
      %1815 = vmatpush2.msra.mxu0 0.0
      %1816 = vmatprep.subr.mxu0 0.0
      %1817 = vmatpush2.msra.mxu0 0.0
      %1818 = vmatprep.subr.mxu0 0.0
      %1819 = vmatpush2.msra.mxu0 0.0
      %1820 = vmatprep.subr.mxu0 0.0
      %1821 = vmatpush2.msra.mxu0 0.0
      %1822 = vmatprep.subr.mxu0 0.0
      %1823 = vmatpush2.msra.mxu0 0.0
      %1824 = vmatprep.subr.mxu0 0.0
      %1825 = vmatpush2.msra.mxu0 0.0
      %1826 = vmatprep.subr.mxu0 0.0
      %1827 = vmatpush2.msra.mxu0 0.0
      %1828 = vmatprep.subr.mxu0 0.0
      %1829 = vmatpush2.msra.mxu0 0.0
      %1830 = vmatprep.subr.mxu0 0.0
      %1831 = vmatpush2.msra.mxu0 0.0
      %1832 = vmatprep.subr.mxu0 0.0
      %1833 = vmatpush2.msra.mxu0 0.0
      %1834 = vmatprep.subr.mxu0 0.0
      %1835 = vmatpush2.msra.mxu0 0.0
      %1836 = vmatprep.mubr.f32.mxu0 0.0
      %1837 = vmatmul.mubr.f32.gmra.mxu0 %v1770
      %v1838 = vpop.f32.mrf.mxu0
      %v1839 = vadd.f32 %v1766, %v1838
      %v1840 = vpop.f32.mrf.mxu0
      %1841 = vdwg.mxu0
      %v1842 = vadd.f32 %v1659, %v1839
      %v1843 = vld [vmem:[%s16] sm:$0x1]
      %v1844 = vld [vmem:[%s17] sm:$0x1]
      %v1845 = vsel %vm692, %v1842, 0.0
      %1846 = vadd.xlane.f32.xlu0 %v1845
      %v1847 = vpop.xlane.xlu0 %1846
      %v1848 = vmul.f32 %v1847, %v1635
      %v1849 = vsub.f32 %v1842, %v1848
      %v1850 = vmul.f32 %v1849, %v1849
      %v1851 = vsel %vm692, %v1850, 0.0
      %1852 = vadd.xlane.f32.xlu0 %v1851
      %v1853 = vpop.xlane.xlu0 %1852
      %v1854 = vmul.f32 %v1853, %v1635
      %v1855 = vadd.f32 %v1854, 1e-05
      %v1856 = vrsqrt.pop %v1855
      %v1857 = vmul.f32 %v1849, %v1856
      %v1859 = vlaneseq
      %v1860 = vshrl.u32 %v1859, 7
      %v1861 = vsub.s32 0, %v1860
      %v1862 = vrot.slane %v1843, %v1861
      %v1864 = vmul.f32 %v1857, %v1862
      %v1866 = vlaneseq
      %v1867 = vshrl.u32 %v1866, 7
      %v1868 = vsub.s32 0, %v1867
      %v1869 = vrot.slane %v1844, %v1868
      %v1871 = vadd.f32 %v1864, %v1869
      %s1872 = scalar_lea.vmem %s6, 32
      %v1873 = vld [vmem:[%s1872] sm:$0xff]
      %v1874 = vld [vmem:[%s1872 + $0x8] sm:$0xff]
      %v1875 = vld [vmem:[%s1872 + $0x10] sm:$0xff]
      %v1876 = vld [vmem:[%s1872 + $0x18] sm:$0xff]
      %s1877 = scalar_lea.vmem %s7, 1
      %v1878 = vld [vmem:[%s1877] sm:$0x1]
      %v1880 = vlaneseq
      %v1881 = vshrl.u32 %v1880, 7
      %v1882 = vsub.s32 0, %v1881
      %v1883 = vrot.slane %v1878, %v1882
      %v1886 = vsel %vm692, %v1871, 0
      %1888 = vmatprep.subr.mxu0 0.0
      %1889 = vmatpush1.msra.mxu0 0.0
      %1890 = vmatprep.subr.mxu0 0.0
      %1891 = vmatpush1.msra.mxu0 0.0
      %1892 = vmatprep.subr.mxu0 0.0
      %1893 = vmatpush1.msra.mxu0 0.0
      %1894 = vmatprep.subr.mxu0 0.0
      %1895 = vmatpush1.msra.mxu0 0.0
      %1896 = vmatprep.subr.mxu0 0.0
      %1897 = vmatpush1.msra.mxu0 0.0
      %1898 = vmatprep.subr.mxu0 0.0
      %1899 = vmatpush1.msra.mxu0 0.0
      %1900 = vmatprep.subr.mxu0 0.0
      %1901 = vmatpush1.msra.mxu0 0.0
      %1902 = vmatprep.subr.mxu0 0.0
      %1903 = vmatpush1.msra.mxu0 0.0
      %1904 = vmatprep.subr.mxu0 0.0
      %1905 = vmatpush1.msra.mxu0 0.0
      %1906 = vmatprep.subr.mxu0 0.0
      %1907 = vmatpush1.msra.mxu0 0.0
      %1908 = vmatprep.subr.mxu0 0.0
      %1909 = vmatpush1.msra.mxu0 0.0
      %1910 = vmatprep.subr.mxu0 0.0
      %1911 = vmatpush1.msra.mxu0 0.0
      %1912 = vmatprep.subr.mxu0 0.0
      %1913 = vmatpush1.msra.mxu0 %v1876
      %1914 = vmatprep.subr.mxu0 0.0
      %1915 = vmatpush1.msra.mxu0 %v1875
      %1916 = vmatprep.subr.mxu0 0.0
      %1917 = vmatpush1.msra.mxu0 %v1874
      %1918 = vmatprep.subr.mxu0 0.0
      %1919 = vmatpush1.msra.mxu0 %v1873
      %1920 = vmatprep.subr.mxu0 0.0
      %1921 = vmatpush2.msra.mxu0 0.0
      %1922 = vmatprep.subr.mxu0 0.0
      %1923 = vmatpush2.msra.mxu0 0.0
      %1924 = vmatprep.subr.mxu0 0.0
      %1925 = vmatpush2.msra.mxu0 0.0
      %1926 = vmatprep.subr.mxu0 0.0
      %1927 = vmatpush2.msra.mxu0 0.0
      %1928 = vmatprep.subr.mxu0 0.0
      %1929 = vmatpush2.msra.mxu0 0.0
      %1930 = vmatprep.subr.mxu0 0.0
      %1931 = vmatpush2.msra.mxu0 0.0
      %1932 = vmatprep.subr.mxu0 0.0
      %1933 = vmatpush2.msra.mxu0 0.0
      %1934 = vmatprep.subr.mxu0 0.0
      %1935 = vmatpush2.msra.mxu0 0.0
      %1936 = vmatprep.subr.mxu0 0.0
      %1937 = vmatpush2.msra.mxu0 0.0
      %1938 = vmatprep.subr.mxu0 0.0
      %1939 = vmatpush2.msra.mxu0 0.0
      %1940 = vmatprep.subr.mxu0 0.0
      %1941 = vmatpush2.msra.mxu0 0.0
      %1942 = vmatprep.subr.mxu0 0.0
      %1943 = vmatpush2.msra.mxu0 0.0
      %1944 = vmatprep.subr.mxu0 0.0
      %1945 = vmatpush2.msra.mxu0 0.0
      %1946 = vmatprep.subr.mxu0 0.0
      %1947 = vmatpush2.msra.mxu0 0.0
      %1948 = vmatprep.subr.mxu0 0.0
      %1949 = vmatpush2.msra.mxu0 0.0
      %1950 = vmatprep.subr.mxu0 0.0
      %1951 = vmatpush2.msra.mxu0 0.0
      %1952 = vmatprep.mubr.f32.mxu0 0.0
      %1953 = vmatmul.mubr.f32.gmra.mxu0 %v1886
      %v1954 = vpop.f32.mrf.mxu0
      %v1955 = vadd.f32 %v1883, %v1954
      %v1956 = vpop.f32.mrf.mxu0
      %1957 = vdwg.mxu0
      %1959 = vrot.lane.b32.xlu0 %v1955, 96
      %v1960 = vpop.permute.xlu0 %1959
      %v1961 = vsel %vm871, %v1955, 0
      %v1963 = vsel %vm871, %v1960, 0
      %1965 = vmatprep.subr.mxu0 0.0
      %1966 = vmatpush1.xpose.msra.mxu0 0.0
      %1967 = vmatprep.subr.mxu0 0.0
      %1968 = vmatpush1.xpose.msra.mxu0 0.0
      %1969 = vmatprep.subr.mxu0 0.0
      %1970 = vmatpush1.xpose.msra.mxu0 0.0
      %1971 = vmatprep.subr.mxu0 0.0
      %1972 = vmatpush1.xpose.msra.mxu0 0.0
      %1973 = vmatprep.subr.mxu0 0.0
      %1974 = vmatpush1.xpose.msra.mxu0 0.0
      %1975 = vmatprep.subr.mxu0 0.0
      %1976 = vmatpush1.xpose.msra.mxu0 0.0
      %1977 = vmatprep.subr.mxu0 0.0
      %1978 = vmatpush1.xpose.msra.mxu0 0.0
      %1979 = vmatprep.subr.mxu0 0.0
      %1980 = vmatpush1.xpose.msra.mxu0 0.0
      %1981 = vmatprep.subr.mxu0 0.0
      %1982 = vmatpush1.xpose.msra.mxu0 0.0
      %1983 = vmatprep.subr.mxu0 0.0
      %1984 = vmatpush1.xpose.msra.mxu0 0.0
      %1985 = vmatprep.subr.mxu0 0.0
      %1986 = vmatpush1.xpose.msra.mxu0 0.0
      %1987 = vmatprep.subr.mxu0 0.0
      %1988 = vmatpush1.xpose.msra.mxu0 0.0
      %1989 = vmatprep.subr.mxu0 0.0
      %1990 = vmatpush1.xpose.msra.mxu0 0.0
      %1991 = vmatprep.subr.mxu0 0.0
      %1992 = vmatpush1.xpose.msra.mxu0 0.0
      %1993 = vmatprep.subr.mxu0 0.0
      %1994 = vmatpush1.xpose.msra.mxu0 0.0
      %1995 = vmatprep.subr.mxu0 0.0
      %1996 = vmatpush1.xpose.msra.mxu0 %v1963
      %1997 = vmatprep.subr.mxu0 0.0
      %1998 = vmatpush2.xpose.msra.mxu0 0.0
      %1999 = vmatprep.subr.mxu0 0.0
      %2000 = vmatpush2.xpose.msra.mxu0 0.0
      %2001 = vmatprep.subr.mxu0 0.0
      %2002 = vmatpush2.xpose.msra.mxu0 0.0
      %2003 = vmatprep.subr.mxu0 0.0
      %2004 = vmatpush2.xpose.msra.mxu0 0.0
      %2005 = vmatprep.subr.mxu0 0.0
      %2006 = vmatpush2.xpose.msra.mxu0 0.0
      %2007 = vmatprep.subr.mxu0 0.0
      %2008 = vmatpush2.xpose.msra.mxu0 0.0
      %2009 = vmatprep.subr.mxu0 0.0
      %2010 = vmatpush2.xpose.msra.mxu0 0.0
      %2011 = vmatprep.subr.mxu0 0.0
      %2012 = vmatpush2.xpose.msra.mxu0 0.0
      %2013 = vmatprep.subr.mxu0 0.0
      %2014 = vmatpush2.xpose.msra.mxu0 0.0
      %2015 = vmatprep.subr.mxu0 0.0
      %2016 = vmatpush2.xpose.msra.mxu0 0.0
      %2017 = vmatprep.subr.mxu0 0.0
      %2018 = vmatpush2.xpose.msra.mxu0 0.0
      %2019 = vmatprep.subr.mxu0 0.0
      %2020 = vmatpush2.xpose.msra.mxu0 0.0
      %2021 = vmatprep.subr.mxu0 0.0
      %2022 = vmatpush2.xpose.msra.mxu0 0.0
      %2023 = vmatprep.subr.mxu0 0.0
      %2024 = vmatpush2.xpose.msra.mxu0 0.0
      %2025 = vmatprep.subr.mxu0 0.0
      %2026 = vmatpush2.xpose.msra.mxu0 0.0
      %2027 = vmatprep.subr.mxu0 0.0
      %2028 = vmatpush2.xpose.msra.mxu0 0.0
      %2029 = vmatprep.mubr.f32.mxu0 0.0
      %2030 = vmatmul.mubr.f32.gmra.mxu0 %v1961
      %v2031 = vpop.f32.mrf.mxu0
      %v2032 = vadd.f32 0.0, %v2031
      %v2033 = vpop.f32.mrf.mxu0
      %2034 = vdwg.mxu0
      %2035 = vrot.lane.b32.xlu0 %v1955, 120
      %v2036 = vpop.permute.xlu0 %2035
      %2037 = vrot.lane.b32.xlu0 %v1955, 88
      %v2038 = vpop.permute.xlu0 %2037
      %v2039 = vsel %vm871, %v2036, 0
      %v2041 = vsel %vm871, %v2038, 0
      %2043 = vmatprep.subr.mxu0 0.0
      %2044 = vmatpush1.xpose.msra.mxu0 0.0
      %2045 = vmatprep.subr.mxu0 0.0
      %2046 = vmatpush1.xpose.msra.mxu0 0.0
      %2047 = vmatprep.subr.mxu0 0.0
      %2048 = vmatpush1.xpose.msra.mxu0 0.0
      %2049 = vmatprep.subr.mxu0 0.0
      %2050 = vmatpush1.xpose.msra.mxu0 0.0
      %2051 = vmatprep.subr.mxu0 0.0
      %2052 = vmatpush1.xpose.msra.mxu0 0.0
      %2053 = vmatprep.subr.mxu0 0.0
      %2054 = vmatpush1.xpose.msra.mxu0 0.0
      %2055 = vmatprep.subr.mxu0 0.0
      %2056 = vmatpush1.xpose.msra.mxu0 0.0
      %2057 = vmatprep.subr.mxu0 0.0
      %2058 = vmatpush1.xpose.msra.mxu0 0.0
      %2059 = vmatprep.subr.mxu0 0.0
      %2060 = vmatpush1.xpose.msra.mxu0 0.0
      %2061 = vmatprep.subr.mxu0 0.0
      %2062 = vmatpush1.xpose.msra.mxu0 0.0
      %2063 = vmatprep.subr.mxu0 0.0
      %2064 = vmatpush1.xpose.msra.mxu0 0.0
      %2065 = vmatprep.subr.mxu0 0.0
      %2066 = vmatpush1.xpose.msra.mxu0 0.0
      %2067 = vmatprep.subr.mxu0 0.0
      %2068 = vmatpush1.xpose.msra.mxu0 0.0
      %2069 = vmatprep.subr.mxu0 0.0
      %2070 = vmatpush1.xpose.msra.mxu0 0.0
      %2071 = vmatprep.subr.mxu0 0.0
      %2072 = vmatpush1.xpose.msra.mxu0 0.0
      %2073 = vmatprep.subr.mxu0 0.0
      %2074 = vmatpush1.xpose.msra.mxu0 %v2041
      %2075 = vmatprep.subr.mxu0 0.0
      %2076 = vmatpush2.xpose.msra.mxu0 0.0
      %2077 = vmatprep.subr.mxu0 0.0
      %2078 = vmatpush2.xpose.msra.mxu0 0.0
      %2079 = vmatprep.subr.mxu0 0.0
      %2080 = vmatpush2.xpose.msra.mxu0 0.0
      %2081 = vmatprep.subr.mxu0 0.0
      %2082 = vmatpush2.xpose.msra.mxu0 0.0
      %2083 = vmatprep.subr.mxu0 0.0
      %2084 = vmatpush2.xpose.msra.mxu0 0.0
      %2085 = vmatprep.subr.mxu0 0.0
      %2086 = vmatpush2.xpose.msra.mxu0 0.0
      %2087 = vmatprep.subr.mxu0 0.0
      %2088 = vmatpush2.xpose.msra.mxu0 0.0
      %2089 = vmatprep.subr.mxu0 0.0
      %2090 = vmatpush2.xpose.msra.mxu0 0.0
      %2091 = vmatprep.subr.mxu0 0.0
      %2092 = vmatpush2.xpose.msra.mxu0 0.0
      %2093 = vmatprep.subr.mxu0 0.0
      %2094 = vmatpush2.xpose.msra.mxu0 0.0
      %2095 = vmatprep.subr.mxu0 0.0
      %2096 = vmatpush2.xpose.msra.mxu0 0.0
      %2097 = vmatprep.subr.mxu0 0.0
      %2098 = vmatpush2.xpose.msra.mxu0 0.0
      %2099 = vmatprep.subr.mxu0 0.0
      %2100 = vmatpush2.xpose.msra.mxu0 0.0
      %2101 = vmatprep.subr.mxu0 0.0
      %2102 = vmatpush2.xpose.msra.mxu0 0.0
      %2103 = vmatprep.subr.mxu0 0.0
      %2104 = vmatpush2.xpose.msra.mxu0 0.0
      %2105 = vmatprep.subr.mxu0 0.0
      %2106 = vmatpush2.xpose.msra.mxu0 0.0
      %2107 = vmatprep.mubr.f32.mxu0 0.0
      %2108 = vmatmul.mubr.f32.gmra.mxu0 %v2039
      %v2109 = vpop.f32.mrf.mxu0
      %v2110 = vadd.f32 0.0, %v2109
      %v2111 = vpop.f32.mrf.mxu0
      %2112 = vdwg.mxu0
      %2113 = vrot.lane.b32.xlu0 %v1955, 112
      %v2114 = vpop.permute.xlu0 %2113
      %2115 = vrot.lane.b32.xlu0 %v1955, 80
      %v2116 = vpop.permute.xlu0 %2115
      %v2117 = vsel %vm871, %v2114, 0
      %v2119 = vsel %vm871, %v2116, 0
      %2121 = vmatprep.subr.mxu0 0.0
      %2122 = vmatpush1.xpose.msra.mxu0 0.0
      %2123 = vmatprep.subr.mxu0 0.0
      %2124 = vmatpush1.xpose.msra.mxu0 0.0
      %2125 = vmatprep.subr.mxu0 0.0
      %2126 = vmatpush1.xpose.msra.mxu0 0.0
      %2127 = vmatprep.subr.mxu0 0.0
      %2128 = vmatpush1.xpose.msra.mxu0 0.0
      %2129 = vmatprep.subr.mxu0 0.0
      %2130 = vmatpush1.xpose.msra.mxu0 0.0
      %2131 = vmatprep.subr.mxu0 0.0
      %2132 = vmatpush1.xpose.msra.mxu0 0.0
      %2133 = vmatprep.subr.mxu0 0.0
      %2134 = vmatpush1.xpose.msra.mxu0 0.0
      %2135 = vmatprep.subr.mxu0 0.0
      %2136 = vmatpush1.xpose.msra.mxu0 0.0
      %2137 = vmatprep.subr.mxu0 0.0
      %2138 = vmatpush1.xpose.msra.mxu0 0.0
      %2139 = vmatprep.subr.mxu0 0.0
      %2140 = vmatpush1.xpose.msra.mxu0 0.0
      %2141 = vmatprep.subr.mxu0 0.0
      %2142 = vmatpush1.xpose.msra.mxu0 0.0
      %2143 = vmatprep.subr.mxu0 0.0
      %2144 = vmatpush1.xpose.msra.mxu0 0.0
      %2145 = vmatprep.subr.mxu0 0.0
      %2146 = vmatpush1.xpose.msra.mxu0 0.0
      %2147 = vmatprep.subr.mxu0 0.0
      %2148 = vmatpush1.xpose.msra.mxu0 0.0
      %2149 = vmatprep.subr.mxu0 0.0
      %2150 = vmatpush1.xpose.msra.mxu0 0.0
      %2151 = vmatprep.subr.mxu0 0.0
      %2152 = vmatpush1.xpose.msra.mxu0 %v2119
      %2153 = vmatprep.subr.mxu0 0.0
      %2154 = vmatpush2.xpose.msra.mxu0 0.0
      %2155 = vmatprep.subr.mxu0 0.0
      %2156 = vmatpush2.xpose.msra.mxu0 0.0
      %2157 = vmatprep.subr.mxu0 0.0
      %2158 = vmatpush2.xpose.msra.mxu0 0.0
      %2159 = vmatprep.subr.mxu0 0.0
      %2160 = vmatpush2.xpose.msra.mxu0 0.0
      %2161 = vmatprep.subr.mxu0 0.0
      %2162 = vmatpush2.xpose.msra.mxu0 0.0
      %2163 = vmatprep.subr.mxu0 0.0
      %2164 = vmatpush2.xpose.msra.mxu0 0.0
      %2165 = vmatprep.subr.mxu0 0.0
      %2166 = vmatpush2.xpose.msra.mxu0 0.0
      %2167 = vmatprep.subr.mxu0 0.0
      %2168 = vmatpush2.xpose.msra.mxu0 0.0
      %2169 = vmatprep.subr.mxu0 0.0
      %2170 = vmatpush2.xpose.msra.mxu0 0.0
      %2171 = vmatprep.subr.mxu0 0.0
      %2172 = vmatpush2.xpose.msra.mxu0 0.0
      %2173 = vmatprep.subr.mxu0 0.0
      %2174 = vmatpush2.xpose.msra.mxu0 0.0
      %2175 = vmatprep.subr.mxu0 0.0
      %2176 = vmatpush2.xpose.msra.mxu0 0.0
      %2177 = vmatprep.subr.mxu0 0.0
      %2178 = vmatpush2.xpose.msra.mxu0 0.0
      %2179 = vmatprep.subr.mxu0 0.0
      %2180 = vmatpush2.xpose.msra.mxu0 0.0
      %2181 = vmatprep.subr.mxu0 0.0
      %2182 = vmatpush2.xpose.msra.mxu0 0.0
      %2183 = vmatprep.subr.mxu0 0.0
      %2184 = vmatpush2.xpose.msra.mxu0 0.0
      %2185 = vmatprep.mubr.f32.mxu0 0.0
      %2186 = vmatmul.mubr.f32.gmra.mxu0 %v2117
      %v2187 = vpop.f32.mrf.mxu0
      %v2188 = vadd.f32 0.0, %v2187
      %v2189 = vpop.f32.mrf.mxu0
      %2190 = vdwg.mxu0
      %2191 = vrot.lane.b32.xlu0 %v1955, 104
      %v2192 = vpop.permute.xlu0 %2191
      %2193 = vrot.lane.b32.xlu0 %v1955, 72
      %v2194 = vpop.permute.xlu0 %2193
      %v2195 = vsel %vm871, %v2192, 0
      %v2197 = vsel %vm871, %v2194, 0
      %2199 = vmatprep.subr.mxu0 0.0
      %2200 = vmatpush1.xpose.msra.mxu0 0.0
      %2201 = vmatprep.subr.mxu0 0.0
      %2202 = vmatpush1.xpose.msra.mxu0 0.0
      %2203 = vmatprep.subr.mxu0 0.0
      %2204 = vmatpush1.xpose.msra.mxu0 0.0
      %2205 = vmatprep.subr.mxu0 0.0
      %2206 = vmatpush1.xpose.msra.mxu0 0.0
      %2207 = vmatprep.subr.mxu0 0.0
      %2208 = vmatpush1.xpose.msra.mxu0 0.0
      %2209 = vmatprep.subr.mxu0 0.0
      %2210 = vmatpush1.xpose.msra.mxu0 0.0
      %2211 = vmatprep.subr.mxu0 0.0
      %2212 = vmatpush1.xpose.msra.mxu0 0.0
      %2213 = vmatprep.subr.mxu0 0.0
      %2214 = vmatpush1.xpose.msra.mxu0 0.0
      %2215 = vmatprep.subr.mxu0 0.0
      %2216 = vmatpush1.xpose.msra.mxu0 0.0
      %2217 = vmatprep.subr.mxu0 0.0
      %2218 = vmatpush1.xpose.msra.mxu0 0.0
      %2219 = vmatprep.subr.mxu0 0.0
      %2220 = vmatpush1.xpose.msra.mxu0 0.0
      %2221 = vmatprep.subr.mxu0 0.0
      %2222 = vmatpush1.xpose.msra.mxu0 0.0
      %2223 = vmatprep.subr.mxu0 0.0
      %2224 = vmatpush1.xpose.msra.mxu0 0.0
      %2225 = vmatprep.subr.mxu0 0.0
      %2226 = vmatpush1.xpose.msra.mxu0 0.0
      %2227 = vmatprep.subr.mxu0 0.0
      %2228 = vmatpush1.xpose.msra.mxu0 0.0
      %2229 = vmatprep.subr.mxu0 0.0
      %2230 = vmatpush1.xpose.msra.mxu0 %v2197
      %2231 = vmatprep.subr.mxu0 0.0
      %2232 = vmatpush2.xpose.msra.mxu0 0.0
      %2233 = vmatprep.subr.mxu0 0.0
      %2234 = vmatpush2.xpose.msra.mxu0 0.0
      %2235 = vmatprep.subr.mxu0 0.0
      %2236 = vmatpush2.xpose.msra.mxu0 0.0
      %2237 = vmatprep.subr.mxu0 0.0
      %2238 = vmatpush2.xpose.msra.mxu0 0.0
      %2239 = vmatprep.subr.mxu0 0.0
      %2240 = vmatpush2.xpose.msra.mxu0 0.0
      %2241 = vmatprep.subr.mxu0 0.0
      %2242 = vmatpush2.xpose.msra.mxu0 0.0
      %2243 = vmatprep.subr.mxu0 0.0
      %2244 = vmatpush2.xpose.msra.mxu0 0.0
      %2245 = vmatprep.subr.mxu0 0.0
      %2246 = vmatpush2.xpose.msra.mxu0 0.0
      %2247 = vmatprep.subr.mxu0 0.0
      %2248 = vmatpush2.xpose.msra.mxu0 0.0
      %2249 = vmatprep.subr.mxu0 0.0
      %2250 = vmatpush2.xpose.msra.mxu0 0.0
      %2251 = vmatprep.subr.mxu0 0.0
      %2252 = vmatpush2.xpose.msra.mxu0 0.0
      %2253 = vmatprep.subr.mxu0 0.0
      %2254 = vmatpush2.xpose.msra.mxu0 0.0
      %2255 = vmatprep.subr.mxu0 0.0
      %2256 = vmatpush2.xpose.msra.mxu0 0.0
      %2257 = vmatprep.subr.mxu0 0.0
      %2258 = vmatpush2.xpose.msra.mxu0 0.0
      %2259 = vmatprep.subr.mxu0 0.0
      %2260 = vmatpush2.xpose.msra.mxu0 0.0
      %2261 = vmatprep.subr.mxu0 0.0
      %2262 = vmatpush2.xpose.msra.mxu0 0.0
      %2263 = vmatprep.mubr.f32.mxu0 0.0
      %2264 = vmatmul.mubr.f32.gmra.mxu0 %v2195
      %v2265 = vpop.f32.mrf.mxu0
      %v2266 = vadd.f32 0.0, %v2265
      %v2267 = vpop.f32.mrf.mxu0
      %2268 = vdwg.mxu0
      %v2269 = vsel %vm871, %v2032, -inf
      %2270 = vmax.xlane.f32.xlu0 %v2269
      %v2271 = vpop.xlane.xlu0 %2270
      %v2272 = vsel %vm871, %v2110, -inf
      %2273 = vmax.xlane.f32.xlu0 %v2272
      %v2274 = vpop.xlane.xlu0 %2273
      %v2275 = vsel %vm871, %v2188, -inf
      %2276 = vmax.xlane.f32.xlu0 %v2275
      %v2277 = vpop.xlane.xlu0 %2276
      %v2278 = vsel %vm871, %v2266, -inf
      %2279 = vmax.xlane.f32.xlu0 %v2278
      %v2280 = vpop.xlane.xlu0 %2279
      %v2281 = vsub.f32 %v2032, %v2271
      %v2282 = vsub.f32 %v2110, %v2274
      %v2283 = vsub.f32 %v2188, %v2277
      %v2284 = vsub.f32 %v2266, %v2280
      %v2285 = vmul.f32 %v2281, 1.442695
      %v2286 = vpow.pop %v2285
      %v2287 = vmul.f32 %v2282, 1.442695
      %v2288 = vpow.pop %v2287
      %v2289 = vmul.f32 %v2283, 1.442695
      %v2290 = vpow.pop %v2289
      %v2291 = vmul.f32 %v2284, 1.442695
      %v2292 = vpow.pop %v2291
      %v2293 = vsel %vm871, %v2286, 0.0
      %2294 = vadd.xlane.f32.xlu0 %v2293
      %v2295 = vpop.xlane.xlu0 %2294
      %v2296 = vsel %vm871, %v2288, 0.0
      %2297 = vadd.xlane.f32.xlu0 %v2296
      %v2298 = vpop.xlane.xlu0 %2297
      %v2299 = vsel %vm871, %v2290, 0.0
      %2300 = vadd.xlane.f32.xlu0 %v2299
      %v2301 = vpop.xlane.xlu0 %2300
      %v2302 = vsel %vm871, %v2292, 0.0
      %2303 = vadd.xlane.f32.xlu0 %v2302
      %v2304 = vpop.xlane.xlu0 %2303
      %v2305 = vrcp.pop %v2295
      %v2306 = vrcp.pop %v2298
      %v2307 = vrcp.pop %v2301
      %v2308 = vrcp.pop %v2304
      %v2309 = vmul.f32 %v2286, %v2305
      %v2310 = vmul.f32 %v2288, %v2306
      %v2311 = vmul.f32 %v2290, %v2307
      %v2312 = vmul.f32 %v2292, %v2308
      %2313 = vrot.lane.b32.xlu0 %v1955, 64
      %v2314 = vpop.permute.xlu0 %2313
      %v2317 = vsel %vm871, %v2309, 0
      %2319 = vmatprep.subr.mxu0 0.0
      %2320 = vmatpush1.msra.mxu0 0.0
      %2321 = vmatprep.subr.mxu0 0.0
      %2322 = vmatpush1.msra.mxu0 0.0
      %2323 = vmatprep.subr.mxu0 0.0
      %2324 = vmatpush1.msra.mxu0 0.0
      %2325 = vmatprep.subr.mxu0 0.0
      %2326 = vmatpush1.msra.mxu0 0.0
      %2327 = vmatprep.subr.mxu0 0.0
      %2328 = vmatpush1.msra.mxu0 0.0
      %2329 = vmatprep.subr.mxu0 0.0
      %2330 = vmatpush1.msra.mxu0 0.0
      %2331 = vmatprep.subr.mxu0 0.0
      %2332 = vmatpush1.msra.mxu0 0.0
      %2333 = vmatprep.subr.mxu0 0.0
      %2334 = vmatpush1.msra.mxu0 0.0
      %2335 = vmatprep.subr.mxu0 0.0
      %2336 = vmatpush1.msra.mxu0 0.0
      %2337 = vmatprep.subr.mxu0 0.0
      %2338 = vmatpush1.msra.mxu0 0.0
      %2339 = vmatprep.subr.mxu0 0.0
      %2340 = vmatpush1.msra.mxu0 0.0
      %2341 = vmatprep.subr.mxu0 0.0
      %2342 = vmatpush1.msra.mxu0 0.0
      %2343 = vmatprep.subr.mxu0 0.0
      %2344 = vmatpush1.msra.mxu0 0.0
      %2345 = vmatprep.subr.mxu0 0.0
      %2346 = vmatpush1.msra.mxu0 0.0
      %2347 = vmatprep.subr.mxu0 0.0
      %2348 = vmatpush1.msra.mxu0 0.0
      %2349 = vmatprep.subr.mxu0 0.0
      %2350 = vmatpush1.msra.mxu0 %v2314
      %2351 = vmatprep.subr.mxu0 0.0
      %2352 = vmatpush2.msra.mxu0 0.0
      %2353 = vmatprep.subr.mxu0 0.0
      %2354 = vmatpush2.msra.mxu0 0.0
      %2355 = vmatprep.subr.mxu0 0.0
      %2356 = vmatpush2.msra.mxu0 0.0
      %2357 = vmatprep.subr.mxu0 0.0
      %2358 = vmatpush2.msra.mxu0 0.0
      %2359 = vmatprep.subr.mxu0 0.0
      %2360 = vmatpush2.msra.mxu0 0.0
      %2361 = vmatprep.subr.mxu0 0.0
      %2362 = vmatpush2.msra.mxu0 0.0
      %2363 = vmatprep.subr.mxu0 0.0
      %2364 = vmatpush2.msra.mxu0 0.0
      %2365 = vmatprep.subr.mxu0 0.0
      %2366 = vmatpush2.msra.mxu0 0.0
      %2367 = vmatprep.subr.mxu0 0.0
      %2368 = vmatpush2.msra.mxu0 0.0
      %2369 = vmatprep.subr.mxu0 0.0
      %2370 = vmatpush2.msra.mxu0 0.0
      %2371 = vmatprep.subr.mxu0 0.0
      %2372 = vmatpush2.msra.mxu0 0.0
      %2373 = vmatprep.subr.mxu0 0.0
      %2374 = vmatpush2.msra.mxu0 0.0
      %2375 = vmatprep.subr.mxu0 0.0
      %2376 = vmatpush2.msra.mxu0 0.0
      %2377 = vmatprep.subr.mxu0 0.0
      %2378 = vmatpush2.msra.mxu0 0.0
      %2379 = vmatprep.subr.mxu0 0.0
      %2380 = vmatpush2.msra.mxu0 0.0
      %2381 = vmatprep.subr.mxu0 0.0
      %2382 = vmatpush2.msra.mxu0 0.0
      %2383 = vmatprep.mubr.f32.mxu0 0.0
      %2384 = vmatmul.mubr.f32.gmra.mxu0 %v2317
      %v2385 = vpop.f32.mrf.mxu0
      %v2386 = vadd.f32 0.0, %v2385
      %v2387 = vpop.f32.mrf.mxu0
      %2388 = vdwg.mxu0
      %2389 = vrot.lane.b32.xlu0 %v1955, 56
      %v2390 = vpop.permute.xlu0 %2389
      %v2393 = vsel %vm871, %v2310, 0
      %2395 = vmatprep.subr.mxu0 0.0
      %2396 = vmatpush1.msra.mxu0 0.0
      %2397 = vmatprep.subr.mxu0 0.0
      %2398 = vmatpush1.msra.mxu0 0.0
      %2399 = vmatprep.subr.mxu0 0.0
      %2400 = vmatpush1.msra.mxu0 0.0
      %2401 = vmatprep.subr.mxu0 0.0
      %2402 = vmatpush1.msra.mxu0 0.0
      %2403 = vmatprep.subr.mxu0 0.0
      %2404 = vmatpush1.msra.mxu0 0.0
      %2405 = vmatprep.subr.mxu0 0.0
      %2406 = vmatpush1.msra.mxu0 0.0
      %2407 = vmatprep.subr.mxu0 0.0
      %2408 = vmatpush1.msra.mxu0 0.0
      %2409 = vmatprep.subr.mxu0 0.0
      %2410 = vmatpush1.msra.mxu0 0.0
      %2411 = vmatprep.subr.mxu0 0.0
      %2412 = vmatpush1.msra.mxu0 0.0
      %2413 = vmatprep.subr.mxu0 0.0
      %2414 = vmatpush1.msra.mxu0 0.0
      %2415 = vmatprep.subr.mxu0 0.0
      %2416 = vmatpush1.msra.mxu0 0.0
      %2417 = vmatprep.subr.mxu0 0.0
      %2418 = vmatpush1.msra.mxu0 0.0
      %2419 = vmatprep.subr.mxu0 0.0
      %2420 = vmatpush1.msra.mxu0 0.0
      %2421 = vmatprep.subr.mxu0 0.0
      %2422 = vmatpush1.msra.mxu0 0.0
      %2423 = vmatprep.subr.mxu0 0.0
      %2424 = vmatpush1.msra.mxu0 0.0
      %2425 = vmatprep.subr.mxu0 0.0
      %2426 = vmatpush1.msra.mxu0 %v2390
      %2427 = vmatprep.subr.mxu0 0.0
      %2428 = vmatpush2.msra.mxu0 0.0
      %2429 = vmatprep.subr.mxu0 0.0
      %2430 = vmatpush2.msra.mxu0 0.0
      %2431 = vmatprep.subr.mxu0 0.0
      %2432 = vmatpush2.msra.mxu0 0.0
      %2433 = vmatprep.subr.mxu0 0.0
      %2434 = vmatpush2.msra.mxu0 0.0
      %2435 = vmatprep.subr.mxu0 0.0
      %2436 = vmatpush2.msra.mxu0 0.0
      %2437 = vmatprep.subr.mxu0 0.0
      %2438 = vmatpush2.msra.mxu0 0.0
      %2439 = vmatprep.subr.mxu0 0.0
      %2440 = vmatpush2.msra.mxu0 0.0
      %2441 = vmatprep.subr.mxu0 0.0
      %2442 = vmatpush2.msra.mxu0 0.0
      %2443 = vmatprep.subr.mxu0 0.0
      %2444 = vmatpush2.msra.mxu0 0.0
      %2445 = vmatprep.subr.mxu0 0.0
      %2446 = vmatpush2.msra.mxu0 0.0
      %2447 = vmatprep.subr.mxu0 0.0
      %2448 = vmatpush2.msra.mxu0 0.0
      %2449 = vmatprep.subr.mxu0 0.0
      %2450 = vmatpush2.msra.mxu0 0.0
      %2451 = vmatprep.subr.mxu0 0.0
      %2452 = vmatpush2.msra.mxu0 0.0
      %2453 = vmatprep.subr.mxu0 0.0
      %2454 = vmatpush2.msra.mxu0 0.0
      %2455 = vmatprep.subr.mxu0 0.0
      %2456 = vmatpush2.msra.mxu0 0.0
      %2457 = vmatprep.subr.mxu0 0.0
      %2458 = vmatpush2.msra.mxu0 0.0
      %2459 = vmatprep.mubr.f32.mxu0 0.0
      %2460 = vmatmul.mubr.f32.gmra.mxu0 %v2393
      %v2461 = vpop.f32.mrf.mxu0
      %v2462 = vadd.f32 0.0, %v2461
      %v2463 = vpop.f32.mrf.mxu0
      %2464 = vdwg.mxu0
      %2465 = vrot.lane.b32.xlu0 %v1955, 48
      %v2466 = vpop.permute.xlu0 %2465
      %v2469 = vsel %vm871, %v2311, 0
      %2471 = vmatprep.subr.mxu0 0.0
      %2472 = vmatpush1.msra.mxu0 0.0
      %2473 = vmatprep.subr.mxu0 0.0
      %2474 = vmatpush1.msra.mxu0 0.0
      %2475 = vmatprep.subr.mxu0 0.0
      %2476 = vmatpush1.msra.mxu0 0.0
      %2477 = vmatprep.subr.mxu0 0.0
      %2478 = vmatpush1.msra.mxu0 0.0
      %2479 = vmatprep.subr.mxu0 0.0
      %2480 = vmatpush1.msra.mxu0 0.0
      %2481 = vmatprep.subr.mxu0 0.0
      %2482 = vmatpush1.msra.mxu0 0.0
      %2483 = vmatprep.subr.mxu0 0.0
      %2484 = vmatpush1.msra.mxu0 0.0
      %2485 = vmatprep.subr.mxu0 0.0
      %2486 = vmatpush1.msra.mxu0 0.0
      %2487 = vmatprep.subr.mxu0 0.0
      %2488 = vmatpush1.msra.mxu0 0.0
      %2489 = vmatprep.subr.mxu0 0.0
      %2490 = vmatpush1.msra.mxu0 0.0
      %2491 = vmatprep.subr.mxu0 0.0
      %2492 = vmatpush1.msra.mxu0 0.0
      %2493 = vmatprep.subr.mxu0 0.0
      %2494 = vmatpush1.msra.mxu0 0.0
      %2495 = vmatprep.subr.mxu0 0.0
      %2496 = vmatpush1.msra.mxu0 0.0
      %2497 = vmatprep.subr.mxu0 0.0
      %2498 = vmatpush1.msra.mxu0 0.0
      %2499 = vmatprep.subr.mxu0 0.0
      %2500 = vmatpush1.msra.mxu0 0.0
      %2501 = vmatprep.subr.mxu0 0.0
      %2502 = vmatpush1.msra.mxu0 %v2466
      %2503 = vmatprep.subr.mxu0 0.0
      %2504 = vmatpush2.msra.mxu0 0.0
      %2505 = vmatprep.subr.mxu0 0.0
      %2506 = vmatpush2.msra.mxu0 0.0
      %2507 = vmatprep.subr.mxu0 0.0
      %2508 = vmatpush2.msra.mxu0 0.0
      %2509 = vmatprep.subr.mxu0 0.0
      %2510 = vmatpush2.msra.mxu0 0.0
      %2511 = vmatprep.subr.mxu0 0.0
      %2512 = vmatpush2.msra.mxu0 0.0
      %2513 = vmatprep.subr.mxu0 0.0
      %2514 = vmatpush2.msra.mxu0 0.0
      %2515 = vmatprep.subr.mxu0 0.0
      %2516 = vmatpush2.msra.mxu0 0.0
      %2517 = vmatprep.subr.mxu0 0.0
      %2518 = vmatpush2.msra.mxu0 0.0
      %2519 = vmatprep.subr.mxu0 0.0
      %2520 = vmatpush2.msra.mxu0 0.0
      %2521 = vmatprep.subr.mxu0 0.0
      %2522 = vmatpush2.msra.mxu0 0.0
      %2523 = vmatprep.subr.mxu0 0.0
      %2524 = vmatpush2.msra.mxu0 0.0
      %2525 = vmatprep.subr.mxu0 0.0
      %2526 = vmatpush2.msra.mxu0 0.0
      %2527 = vmatprep.subr.mxu0 0.0
      %2528 = vmatpush2.msra.mxu0 0.0
      %2529 = vmatprep.subr.mxu0 0.0
      %2530 = vmatpush2.msra.mxu0 0.0
      %2531 = vmatprep.subr.mxu0 0.0
      %2532 = vmatpush2.msra.mxu0 0.0
      %2533 = vmatprep.subr.mxu0 0.0
      %2534 = vmatpush2.msra.mxu0 0.0
      %2535 = vmatprep.mubr.f32.mxu0 0.0
      %2536 = vmatmul.mubr.f32.gmra.mxu0 %v2469
      %v2537 = vpop.f32.mrf.mxu0
      %v2538 = vadd.f32 0.0, %v2537
      %v2539 = vpop.f32.mrf.mxu0
      %2540 = vdwg.mxu0
      %2541 = vrot.lane.b32.xlu0 %v1955, 40
      %v2542 = vpop.permute.xlu0 %2541
      %v2545 = vsel %vm871, %v2312, 0
      %2547 = vmatprep.subr.mxu0 0.0
      %2548 = vmatpush1.msra.mxu0 0.0
      %2549 = vmatprep.subr.mxu0 0.0
      %2550 = vmatpush1.msra.mxu0 0.0
      %2551 = vmatprep.subr.mxu0 0.0
      %2552 = vmatpush1.msra.mxu0 0.0
      %2553 = vmatprep.subr.mxu0 0.0
      %2554 = vmatpush1.msra.mxu0 0.0
      %2555 = vmatprep.subr.mxu0 0.0
      %2556 = vmatpush1.msra.mxu0 0.0
      %2557 = vmatprep.subr.mxu0 0.0
      %2558 = vmatpush1.msra.mxu0 0.0
      %2559 = vmatprep.subr.mxu0 0.0
      %2560 = vmatpush1.msra.mxu0 0.0
      %2561 = vmatprep.subr.mxu0 0.0
      %2562 = vmatpush1.msra.mxu0 0.0
      %2563 = vmatprep.subr.mxu0 0.0
      %2564 = vmatpush1.msra.mxu0 0.0
      %2565 = vmatprep.subr.mxu0 0.0
      %2566 = vmatpush1.msra.mxu0 0.0
      %2567 = vmatprep.subr.mxu0 0.0
      %2568 = vmatpush1.msra.mxu0 0.0
      %2569 = vmatprep.subr.mxu0 0.0
      %2570 = vmatpush1.msra.mxu0 0.0
      %2571 = vmatprep.subr.mxu0 0.0
      %2572 = vmatpush1.msra.mxu0 0.0
      %2573 = vmatprep.subr.mxu0 0.0
      %2574 = vmatpush1.msra.mxu0 0.0
      %2575 = vmatprep.subr.mxu0 0.0
      %2576 = vmatpush1.msra.mxu0 0.0
      %2577 = vmatprep.subr.mxu0 0.0
      %2578 = vmatpush1.msra.mxu0 %v2542
      %2579 = vmatprep.subr.mxu0 0.0
      %2580 = vmatpush2.msra.mxu0 0.0
      %2581 = vmatprep.subr.mxu0 0.0
      %2582 = vmatpush2.msra.mxu0 0.0
      %2583 = vmatprep.subr.mxu0 0.0
      %2584 = vmatpush2.msra.mxu0 0.0
      %2585 = vmatprep.subr.mxu0 0.0
      %2586 = vmatpush2.msra.mxu0 0.0
      %2587 = vmatprep.subr.mxu0 0.0
      %2588 = vmatpush2.msra.mxu0 0.0
      %2589 = vmatprep.subr.mxu0 0.0
      %2590 = vmatpush2.msra.mxu0 0.0
      %2591 = vmatprep.subr.mxu0 0.0
      %2592 = vmatpush2.msra.mxu0 0.0
      %2593 = vmatprep.subr.mxu0 0.0
      %2594 = vmatpush2.msra.mxu0 0.0
      %2595 = vmatprep.subr.mxu0 0.0
      %2596 = vmatpush2.msra.mxu0 0.0
      %2597 = vmatprep.subr.mxu0 0.0
      %2598 = vmatpush2.msra.mxu0 0.0
      %2599 = vmatprep.subr.mxu0 0.0
      %2600 = vmatpush2.msra.mxu0 0.0
      %2601 = vmatprep.subr.mxu0 0.0
      %2602 = vmatpush2.msra.mxu0 0.0
      %2603 = vmatprep.subr.mxu0 0.0
      %2604 = vmatpush2.msra.mxu0 0.0
      %2605 = vmatprep.subr.mxu0 0.0
      %2606 = vmatpush2.msra.mxu0 0.0
      %2607 = vmatprep.subr.mxu0 0.0
      %2608 = vmatpush2.msra.mxu0 0.0
      %2609 = vmatprep.subr.mxu0 0.0
      %2610 = vmatpush2.msra.mxu0 0.0
      %2611 = vmatprep.mubr.f32.mxu0 0.0
      %2612 = vmatmul.mubr.f32.gmra.mxu0 %v2545
      %v2613 = vpop.f32.mrf.mxu0
      %v2614 = vadd.f32 0.0, %v2613
      %v2615 = vpop.f32.mrf.mxu0
      %2616 = vdwg.mxu0
      %2618 = vrot.lane.b32.xlu0 %v2462, 8
      %v2619 = vpop.permute.xlu0 %2618
      %2622 = vrot.lane.b32.xlu0 %v2538, 16
      %v2623 = vpop.permute.xlu0 %2622
      %2626 = vrot.lane.b32.xlu0 %v2614, 24
      %v2627 = vpop.permute.xlu0 %2626
      %v2629 = vsel %vm871, %v2386, %v2619
      %v2630 = vsel %vm1541, %v2629, %v2623
      %v2631 = vsel %vm1543, %v2630, %v2627
      %s2632 = scalar_lea.vmem %s8, 32
      %v2633 = vld [vmem:[%s2632] sm:$0xff]
      %v2634 = vld [vmem:[%s2632 + $0x8] sm:$0xff]
      %v2635 = vld [vmem:[%s2632 + $0x10] sm:$0xff]
      %v2636 = vld [vmem:[%s2632 + $0x18] sm:$0xff]
      %s2637 = scalar_lea.vmem %s9, 1
      %v2638 = vld [vmem:[%s2637] sm:$0x1]
      %v2640 = vlaneseq
      %v2641 = vshrl.u32 %v2640, 7
      %v2642 = vsub.s32 0, %v2641
      %v2643 = vrot.slane %v2638, %v2642
      %v2646 = vsel %vm692, %v2631, 0
      %2648 = vmatprep.subr.mxu0 0.0
      %2649 = vmatpush1.msra.mxu0 0.0
      %2650 = vmatprep.subr.mxu0 0.0
      %2651 = vmatpush1.msra.mxu0 0.0
      %2652 = vmatprep.subr.mxu0 0.0
      %2653 = vmatpush1.msra.mxu0 0.0
      %2654 = vmatprep.subr.mxu0 0.0
      %2655 = vmatpush1.msra.mxu0 0.0
      %2656 = vmatprep.subr.mxu0 0.0
      %2657 = vmatpush1.msra.mxu0 0.0
      %2658 = vmatprep.subr.mxu0 0.0
      %2659 = vmatpush1.msra.mxu0 0.0
      %2660 = vmatprep.subr.mxu0 0.0
      %2661 = vmatpush1.msra.mxu0 0.0
      %2662 = vmatprep.subr.mxu0 0.0
      %2663 = vmatpush1.msra.mxu0 0.0
      %2664 = vmatprep.subr.mxu0 0.0
      %2665 = vmatpush1.msra.mxu0 0.0
      %2666 = vmatprep.subr.mxu0 0.0
      %2667 = vmatpush1.msra.mxu0 0.0
      %2668 = vmatprep.subr.mxu0 0.0
      %2669 = vmatpush1.msra.mxu0 0.0
      %2670 = vmatprep.subr.mxu0 0.0
      %2671 = vmatpush1.msra.mxu0 0.0
      %2672 = vmatprep.subr.mxu0 0.0
      %2673 = vmatpush1.msra.mxu0 %v2636
      %2674 = vmatprep.subr.mxu0 0.0
      %2675 = vmatpush1.msra.mxu0 %v2635
      %2676 = vmatprep.subr.mxu0 0.0
      %2677 = vmatpush1.msra.mxu0 %v2634
      %2678 = vmatprep.subr.mxu0 0.0
      %2679 = vmatpush1.msra.mxu0 %v2633
      %2680 = vmatprep.subr.mxu0 0.0
      %2681 = vmatpush2.msra.mxu0 0.0
      %2682 = vmatprep.subr.mxu0 0.0
      %2683 = vmatpush2.msra.mxu0 0.0
      %2684 = vmatprep.subr.mxu0 0.0
      %2685 = vmatpush2.msra.mxu0 0.0
      %2686 = vmatprep.subr.mxu0 0.0
      %2687 = vmatpush2.msra.mxu0 0.0
      %2688 = vmatprep.subr.mxu0 0.0
      %2689 = vmatpush2.msra.mxu0 0.0
      %2690 = vmatprep.subr.mxu0 0.0
      %2691 = vmatpush2.msra.mxu0 0.0
      %2692 = vmatprep.subr.mxu0 0.0
      %2693 = vmatpush2.msra.mxu0 0.0
      %2694 = vmatprep.subr.mxu0 0.0
      %2695 = vmatpush2.msra.mxu0 0.0
      %2696 = vmatprep.subr.mxu0 0.0
      %2697 = vmatpush2.msra.mxu0 0.0
      %2698 = vmatprep.subr.mxu0 0.0
      %2699 = vmatpush2.msra.mxu0 0.0
      %2700 = vmatprep.subr.mxu0 0.0
      %2701 = vmatpush2.msra.mxu0 0.0
      %2702 = vmatprep.subr.mxu0 0.0
      %2703 = vmatpush2.msra.mxu0 0.0
      %2704 = vmatprep.subr.mxu0 0.0
      %2705 = vmatpush2.msra.mxu0 0.0
      %2706 = vmatprep.subr.mxu0 0.0
      %2707 = vmatpush2.msra.mxu0 0.0
      %2708 = vmatprep.subr.mxu0 0.0
      %2709 = vmatpush2.msra.mxu0 0.0
      %2710 = vmatprep.subr.mxu0 0.0
      %2711 = vmatpush2.msra.mxu0 0.0
      %2712 = vmatprep.mubr.f32.mxu0 0.0
      %2713 = vmatmul.mubr.f32.gmra.mxu0 %v2646
      %v2714 = vpop.f32.mrf.mxu0
      %v2715 = vadd.f32 %v2643, %v2714
      %v2716 = vpop.f32.mrf.mxu0
      %2717 = vdwg.mxu0
      %v2718 = vadd.f32 %v1871, %v2715
      %s2719 = scalar_lea.vmem %s14, 1
      %v2720 = vld [vmem:[%s2719] sm:$0x1]
      %s2721 = scalar_lea.vmem %s15, 1
      %v2722 = vld [vmem:[%s2721] sm:$0x1]
      %v2723 = vsel %vm692, %v2718, 0.0
      %2724 = vadd.xlane.f32.xlu0 %v2723
      %v2725 = vpop.xlane.xlu0 %2724
      %v2726 = vmul.f32 %v2725, %v1635
      %v2727 = vsub.f32 %v2718, %v2726
      %v2728 = vmul.f32 %v2727, %v2727
      %v2729 = vsel %vm692, %v2728, 0.0
      %2730 = vadd.xlane.f32.xlu0 %v2729
      %v2731 = vpop.xlane.xlu0 %2730
      %v2732 = vmul.f32 %v2731, %v1635
      %v2733 = vadd.f32 %v2732, 1e-05
      %v2734 = vrsqrt.pop %v2733
      %v2735 = vmul.f32 %v2727, %v2734
      %v2737 = vlaneseq
      %v2738 = vshrl.u32 %v2737, 7
      %v2739 = vsub.s32 0, %v2738
      %v2740 = vrot.slane %v2720, %v2739
      %v2742 = vmul.f32 %v2735, %v2740
      %v2744 = vlaneseq
      %v2745 = vshrl.u32 %v2744, 7
      %v2746 = vsub.s32 0, %v2745
      %v2747 = vrot.slane %v2722, %v2746
      %v2749 = vadd.f32 %v2742, %v2747
      %s2750 = scalar_lea.vmem %s10, 32
      %v2751 = vld [vmem:[%s2750] sm:$0xff]
      %v2752 = vld [vmem:[%s2750 + $0x8] sm:$0xff]
      %v2753 = vld [vmem:[%s2750 + $0x10] sm:$0xff]
      %v2754 = vld [vmem:[%s2750 + $0x18] sm:$0xff]
      %s2755 = scalar_lea.vmem %s11, 1
      %v2756 = vld [vmem:[%s2755] sm:$0x1]
      %v2758 = vlaneseq
      %v2759 = vshrl.u32 %v2758, 7
      %v2760 = vsub.s32 0, %v2759
      %v2761 = vrot.slane %v2756, %v2760
      %v2764 = vsel %vm692, %v2749, 0
      %2766 = vmatprep.subr.mxu0 0.0
      %2767 = vmatpush1.msra.mxu0 0.0
      %2768 = vmatprep.subr.mxu0 0.0
      %2769 = vmatpush1.msra.mxu0 0.0
      %2770 = vmatprep.subr.mxu0 0.0
      %2771 = vmatpush1.msra.mxu0 0.0
      %2772 = vmatprep.subr.mxu0 0.0
      %2773 = vmatpush1.msra.mxu0 0.0
      %2774 = vmatprep.subr.mxu0 0.0
      %2775 = vmatpush1.msra.mxu0 0.0
      %2776 = vmatprep.subr.mxu0 0.0
      %2777 = vmatpush1.msra.mxu0 0.0
      %2778 = vmatprep.subr.mxu0 0.0
      %2779 = vmatpush1.msra.mxu0 0.0
      %2780 = vmatprep.subr.mxu0 0.0
      %2781 = vmatpush1.msra.mxu0 0.0
      %2782 = vmatprep.subr.mxu0 0.0
      %2783 = vmatpush1.msra.mxu0 0.0
      %2784 = vmatprep.subr.mxu0 0.0
      %2785 = vmatpush1.msra.mxu0 0.0
      %2786 = vmatprep.subr.mxu0 0.0
      %2787 = vmatpush1.msra.mxu0 0.0
      %2788 = vmatprep.subr.mxu0 0.0
      %2789 = vmatpush1.msra.mxu0 0.0
      %2790 = vmatprep.subr.mxu0 0.0
      %2791 = vmatpush1.msra.mxu0 %v2754
      %2792 = vmatprep.subr.mxu0 0.0
      %2793 = vmatpush1.msra.mxu0 %v2753
      %2794 = vmatprep.subr.mxu0 0.0
      %2795 = vmatpush1.msra.mxu0 %v2752
      %2796 = vmatprep.subr.mxu0 0.0
      %2797 = vmatpush1.msra.mxu0 %v2751
      %2798 = vmatprep.subr.mxu0 0.0
      %2799 = vmatpush2.msra.mxu0 0.0
      %2800 = vmatprep.subr.mxu0 0.0
      %2801 = vmatpush2.msra.mxu0 0.0
      %2802 = vmatprep.subr.mxu0 0.0
      %2803 = vmatpush2.msra.mxu0 0.0
      %2804 = vmatprep.subr.mxu0 0.0
      %2805 = vmatpush2.msra.mxu0 0.0
      %2806 = vmatprep.subr.mxu0 0.0
      %2807 = vmatpush2.msra.mxu0 0.0
      %2808 = vmatprep.subr.mxu0 0.0
      %2809 = vmatpush2.msra.mxu0 0.0
      %2810 = vmatprep.subr.mxu0 0.0
      %2811 = vmatpush2.msra.mxu0 0.0
      %2812 = vmatprep.subr.mxu0 0.0
      %2813 = vmatpush2.msra.mxu0 0.0
      %2814 = vmatprep.subr.mxu0 0.0
      %2815 = vmatpush2.msra.mxu0 0.0
      %2816 = vmatprep.subr.mxu0 0.0
      %2817 = vmatpush2.msra.mxu0 0.0
      %2818 = vmatprep.subr.mxu0 0.0
      %2819 = vmatpush2.msra.mxu0 0.0
      %2820 = vmatprep.subr.mxu0 0.0
      %2821 = vmatpush2.msra.mxu0 0.0
      %2822 = vmatprep.subr.mxu0 0.0
      %2823 = vmatpush2.msra.mxu0 0.0
      %2824 = vmatprep.subr.mxu0 0.0
      %2825 = vmatpush2.msra.mxu0 0.0
      %2826 = vmatprep.subr.mxu0 0.0
      %2827 = vmatpush2.msra.mxu0 0.0
      %2828 = vmatprep.subr.mxu0 0.0
      %2829 = vmatpush2.msra.mxu0 0.0
      %2830 = vmatprep.mubr.f32.mxu0 0.0
      %2831 = vmatmul.mubr.f32.gmra.mxu0 %v2764
      %v2832 = vpop.f32.mrf.mxu0
      %v2833 = vadd.f32 %v2761, %v2832
      %v2834 = vpop.f32.mrf.mxu0
      %2835 = vdwg.mxu0
      %v2836 = vmul.f32 %v2833, %v2833
      %v2837 = vmul.f32 %v2833, %v2836
      %v2838 = vmul.f32 %v2837, 0.044715
      %v2839 = vadd.f32 %v2833, %v2838
      %v2840 = vmul.f32 %v2839, 0.7978846
      %v2841 = vtanh.pop %v2840
      %v2842 = vadd.f32 %v2841, 1.0
      %v2843 = vmul.f32 %v2842, 0.5
      %v2844 = vmul.f32 %v2833, %v2843
      %s2845 = scalar_lea.vmem %s12, 64
      %v2846 = vld [vmem:[%s2845] sm:$0xff]
      %v2847 = vld [vmem:[%s2845 + $0x8] sm:$0xff]
      %v2848 = vld [vmem:[%s2845 + $0x10] sm:$0xff]
      %v2849 = vld [vmem:[%s2845 + $0x18] sm:$0xff]
      %v2850 = vld [vmem:[%s2845 + $0x20] sm:$0xff]
      %v2851 = vld [vmem:[%s2845 + $0x28] sm:$0xff]
      %v2852 = vld [vmem:[%s2845 + $0x30] sm:$0xff]
      %v2853 = vld [vmem:[%s2845 + $0x38] sm:$0xff]
      %s2854 = scalar_lea.vmem %s13, 1
      %v2855 = vld [vmem:[%s2854] sm:$0x1]
      %v2857 = vlaneseq
      %v2858 = vshrl.u32 %v2857, 7
      %v2859 = vsub.s32 0, %v2858
      %v2860 = vrot.slane %v2855, %v2859
      %v2863 = vsel %vm1768, %v2844, 0
      %2865 = vmatprep.subr.mxu0 0.0
      %2866 = vmatpush1.msra.mxu0 0.0
      %2867 = vmatprep.subr.mxu0 0.0
      %2868 = vmatpush1.msra.mxu0 0.0
      %2869 = vmatprep.subr.mxu0 0.0
      %2870 = vmatpush1.msra.mxu0 0.0
      %2871 = vmatprep.subr.mxu0 0.0
      %2872 = vmatpush1.msra.mxu0 0.0
      %2873 = vmatprep.subr.mxu0 0.0
      %2874 = vmatpush1.msra.mxu0 0.0
      %2875 = vmatprep.subr.mxu0 0.0
      %2876 = vmatpush1.msra.mxu0 0.0
      %2877 = vmatprep.subr.mxu0 0.0
      %2878 = vmatpush1.msra.mxu0 0.0
      %2879 = vmatprep.subr.mxu0 0.0
      %2880 = vmatpush1.msra.mxu0 0.0
      %2881 = vmatprep.subr.mxu0 0.0
      %2882 = vmatpush1.msra.mxu0 %v2853
      %2883 = vmatprep.subr.mxu0 0.0
      %2884 = vmatpush1.msra.mxu0 %v2852
      %2885 = vmatprep.subr.mxu0 0.0
      %2886 = vmatpush1.msra.mxu0 %v2851
      %2887 = vmatprep.subr.mxu0 0.0
      %2888 = vmatpush1.msra.mxu0 %v2850
      %2889 = vmatprep.subr.mxu0 0.0
      %2890 = vmatpush1.msra.mxu0 %v2849
      %2891 = vmatprep.subr.mxu0 0.0
      %2892 = vmatpush1.msra.mxu0 %v2848
      %2893 = vmatprep.subr.mxu0 0.0
      %2894 = vmatpush1.msra.mxu0 %v2847
      %2895 = vmatprep.subr.mxu0 0.0
      %2896 = vmatpush1.msra.mxu0 %v2846
      %2897 = vmatprep.subr.mxu0 0.0
      %2898 = vmatpush2.msra.mxu0 0.0
      %2899 = vmatprep.subr.mxu0 0.0
      %2900 = vmatpush2.msra.mxu0 0.0
      %2901 = vmatprep.subr.mxu0 0.0
      %2902 = vmatpush2.msra.mxu0 0.0
      %2903 = vmatprep.subr.mxu0 0.0
      %2904 = vmatpush2.msra.mxu0 0.0
      %2905 = vmatprep.subr.mxu0 0.0
      %2906 = vmatpush2.msra.mxu0 0.0
      %2907 = vmatprep.subr.mxu0 0.0
      %2908 = vmatpush2.msra.mxu0 0.0
      %2909 = vmatprep.subr.mxu0 0.0
      %2910 = vmatpush2.msra.mxu0 0.0
      %2911 = vmatprep.subr.mxu0 0.0
      %2912 = vmatpush2.msra.mxu0 0.0
      %2913 = vmatprep.subr.mxu0 0.0
      %2914 = vmatpush2.msra.mxu0 0.0
      %2915 = vmatprep.subr.mxu0 0.0
      %2916 = vmatpush2.msra.mxu0 0.0
      %2917 = vmatprep.subr.mxu0 0.0
      %2918 = vmatpush2.msra.mxu0 0.0
      %2919 = vmatprep.subr.mxu0 0.0
      %2920 = vmatpush2.msra.mxu0 0.0
      %2921 = vmatprep.subr.mxu0 0.0
      %2922 = vmatpush2.msra.mxu0 0.0
      %2923 = vmatprep.subr.mxu0 0.0
      %2924 = vmatpush2.msra.mxu0 0.0
      %2925 = vmatprep.subr.mxu0 0.0
      %2926 = vmatpush2.msra.mxu0 0.0
      %2927 = vmatprep.subr.mxu0 0.0
      %2928 = vmatpush2.msra.mxu0 0.0
      %2929 = vmatprep.mubr.f32.mxu0 0.0
      %2930 = vmatmul.mubr.f32.gmra.mxu0 %v2863
      %v2931 = vpop.f32.mrf.mxu0
      %v2932 = vadd.f32 %v2860, %v2931
      %v2933 = vpop.f32.mrf.mxu0
      %2934 = vdwg.mxu0
      %v2935 = vadd.f32 %v2749, %v2932
      %s2936 = scalar_lea.vmem %s16, 1
      %v2937 = vld [vmem:[%s2936] sm:$0x1]
      %s2938 = scalar_lea.vmem %s17, 1
      %v2939 = vld [vmem:[%s2938] sm:$0x1]
      %v2940 = vsel %vm692, %v2935, 0.0
      %2941 = vadd.xlane.f32.xlu0 %v2940
      %v2942 = vpop.xlane.xlu0 %2941
      %v2943 = vmul.f32 %v2942, %v1635
      %v2944 = vsub.f32 %v2935, %v2943
      %v2945 = vmul.f32 %v2944, %v2944
      %v2946 = vsel %vm692, %v2945, 0.0
      %2947 = vadd.xlane.f32.xlu0 %v2946
      %v2948 = vpop.xlane.xlu0 %2947
      %v2949 = vmul.f32 %v2948, %v1635
      %v2950 = vadd.f32 %v2949, 1e-05
      %v2951 = vrsqrt.pop %v2950
      %v2952 = vmul.f32 %v2944, %v2951
      %v2954 = vlaneseq
      %v2955 = vshrl.u32 %v2954, 7
      %v2956 = vsub.s32 0, %v2955
      %v2957 = vrot.slane %v2937, %v2956
      %v2959 = vmul.f32 %v2952, %v2957
      %v2961 = vlaneseq
      %v2962 = vshrl.u32 %v2961, 7
      %v2963 = vsub.s32 0, %v2962
      %v2964 = vrot.slane %v2939, %v2963
      %v2966 = vadd.f32 %v2959, %v2964
      %v2967 = vadd.f32 %v2966, %v767
      %s2968 = scalar_lea.vmem %s6, 64
      %v2969 = vld [vmem:[%s2968] sm:$0xff]
      %v2970 = vld [vmem:[%s2968 + $0x8] sm:$0xff]
      %v2971 = vld [vmem:[%s2968 + $0x10] sm:$0xff]
      %v2972 = vld [vmem:[%s2968 + $0x18] sm:$0xff]
      %s2973 = scalar_lea.vmem %s7, 2
      %v2974 = vld [vmem:[%s2973] sm:$0x1]
      %v2976 = vlaneseq
      %v2977 = vshrl.u32 %v2976, 7
      %v2978 = vsub.s32 0, %v2977
      %v2979 = vrot.slane %v2974, %v2978
      %v2982 = vsel %vm692, %v2967, 0
      %2984 = vmatprep.subr.mxu0 0.0
      %2985 = vmatpush1.msra.mxu0 0.0
      %2986 = vmatprep.subr.mxu0 0.0
      %2987 = vmatpush1.msra.mxu0 0.0
      %2988 = vmatprep.subr.mxu0 0.0
      %2989 = vmatpush1.msra.mxu0 0.0
      %2990 = vmatprep.subr.mxu0 0.0
      %2991 = vmatpush1.msra.mxu0 0.0
      %2992 = vmatprep.subr.mxu0 0.0
      %2993 = vmatpush1.msra.mxu0 0.0
      %2994 = vmatprep.subr.mxu0 0.0
      %2995 = vmatpush1.msra.mxu0 0.0
      %2996 = vmatprep.subr.mxu0 0.0
      %2997 = vmatpush1.msra.mxu0 0.0
      %2998 = vmatprep.subr.mxu0 0.0
      %2999 = vmatpush1.msra.mxu0 0.0
      %3000 = vmatprep.subr.mxu0 0.0
      %3001 = vmatpush1.msra.mxu0 0.0
      %3002 = vmatprep.subr.mxu0 0.0
      %3003 = vmatpush1.msra.mxu0 0.0
      %3004 = vmatprep.subr.mxu0 0.0
      %3005 = vmatpush1.msra.mxu0 0.0
      %3006 = vmatprep.subr.mxu0 0.0
      %3007 = vmatpush1.msra.mxu0 0.0
      %3008 = vmatprep.subr.mxu0 0.0
      %3009 = vmatpush1.msra.mxu0 %v2972
      %3010 = vmatprep.subr.mxu0 0.0
      %3011 = vmatpush1.msra.mxu0 %v2971
      %3012 = vmatprep.subr.mxu0 0.0
      %3013 = vmatpush1.msra.mxu0 %v2970
      %3014 = vmatprep.subr.mxu0 0.0
      %3015 = vmatpush1.msra.mxu0 %v2969
      %3016 = vmatprep.subr.mxu0 0.0
      %3017 = vmatpush2.msra.mxu0 0.0
      %3018 = vmatprep.subr.mxu0 0.0
      %3019 = vmatpush2.msra.mxu0 0.0
      %3020 = vmatprep.subr.mxu0 0.0
      %3021 = vmatpush2.msra.mxu0 0.0
      %3022 = vmatprep.subr.mxu0 0.0
      %3023 = vmatpush2.msra.mxu0 0.0
      %3024 = vmatprep.subr.mxu0 0.0
      %3025 = vmatpush2.msra.mxu0 0.0
      %3026 = vmatprep.subr.mxu0 0.0
      %3027 = vmatpush2.msra.mxu0 0.0
      %3028 = vmatprep.subr.mxu0 0.0
      %3029 = vmatpush2.msra.mxu0 0.0
      %3030 = vmatprep.subr.mxu0 0.0
      %3031 = vmatpush2.msra.mxu0 0.0
      %3032 = vmatprep.subr.mxu0 0.0
      %3033 = vmatpush2.msra.mxu0 0.0
      %3034 = vmatprep.subr.mxu0 0.0
      %3035 = vmatpush2.msra.mxu0 0.0
      %3036 = vmatprep.subr.mxu0 0.0
      %3037 = vmatpush2.msra.mxu0 0.0
      %3038 = vmatprep.subr.mxu0 0.0
      %3039 = vmatpush2.msra.mxu0 0.0
      %3040 = vmatprep.subr.mxu0 0.0
      %3041 = vmatpush2.msra.mxu0 0.0
      %3042 = vmatprep.subr.mxu0 0.0
      %3043 = vmatpush2.msra.mxu0 0.0
      %3044 = vmatprep.subr.mxu0 0.0
      %3045 = vmatpush2.msra.mxu0 0.0
      %3046 = vmatprep.subr.mxu0 0.0
      %3047 = vmatpush2.msra.mxu0 0.0
      %3048 = vmatprep.mubr.f32.mxu0 0.0
      %3049 = vmatmul.mubr.f32.gmra.mxu0 %v2982
      %v3050 = vpop.f32.mrf.mxu0
      %v3051 = vadd.f32 %v2979, %v3050
      %v3052 = vpop.f32.mrf.mxu0
      %3053 = vdwg.mxu0
      %3055 = vrot.lane.b32.xlu0 %v3051, 96
      %v3056 = vpop.permute.xlu0 %3055
      %v3057 = vsel %vm871, %v3051, 0
      %v3059 = vsel %vm871, %v3056, 0
      %3061 = vmatprep.subr.mxu0 0.0
      %3062 = vmatpush1.xpose.msra.mxu0 0.0
      %3063 = vmatprep.subr.mxu0 0.0
      %3064 = vmatpush1.xpose.msra.mxu0 0.0
      %3065 = vmatprep.subr.mxu0 0.0
      %3066 = vmatpush1.xpose.msra.mxu0 0.0
      %3067 = vmatprep.subr.mxu0 0.0
      %3068 = vmatpush1.xpose.msra.mxu0 0.0
      %3069 = vmatprep.subr.mxu0 0.0
      %3070 = vmatpush1.xpose.msra.mxu0 0.0
      %3071 = vmatprep.subr.mxu0 0.0
      %3072 = vmatpush1.xpose.msra.mxu0 0.0
      %3073 = vmatprep.subr.mxu0 0.0
      %3074 = vmatpush1.xpose.msra.mxu0 0.0
      %3075 = vmatprep.subr.mxu0 0.0
      %3076 = vmatpush1.xpose.msra.mxu0 0.0
      %3077 = vmatprep.subr.mxu0 0.0
      %3078 = vmatpush1.xpose.msra.mxu0 0.0
      %3079 = vmatprep.subr.mxu0 0.0
      %3080 = vmatpush1.xpose.msra.mxu0 0.0
      %3081 = vmatprep.subr.mxu0 0.0
      %3082 = vmatpush1.xpose.msra.mxu0 0.0
      %3083 = vmatprep.subr.mxu0 0.0
      %3084 = vmatpush1.xpose.msra.mxu0 0.0
      %3085 = vmatprep.subr.mxu0 0.0
      %3086 = vmatpush1.xpose.msra.mxu0 0.0
      %3087 = vmatprep.subr.mxu0 0.0
      %3088 = vmatpush1.xpose.msra.mxu0 0.0
      %3089 = vmatprep.subr.mxu0 0.0
      %3090 = vmatpush1.xpose.msra.mxu0 0.0
      %3091 = vmatprep.subr.mxu0 0.0
      %3092 = vmatpush1.xpose.msra.mxu0 %v3059
      %3093 = vmatprep.subr.mxu0 0.0
      %3094 = vmatpush2.xpose.msra.mxu0 0.0
      %3095 = vmatprep.subr.mxu0 0.0
      %3096 = vmatpush2.xpose.msra.mxu0 0.0
      %3097 = vmatprep.subr.mxu0 0.0
      %3098 = vmatpush2.xpose.msra.mxu0 0.0
      %3099 = vmatprep.subr.mxu0 0.0
      %3100 = vmatpush2.xpose.msra.mxu0 0.0
      %3101 = vmatprep.subr.mxu0 0.0
      %3102 = vmatpush2.xpose.msra.mxu0 0.0
      %3103 = vmatprep.subr.mxu0 0.0
      %3104 = vmatpush2.xpose.msra.mxu0 0.0
      %3105 = vmatprep.subr.mxu0 0.0
      %3106 = vmatpush2.xpose.msra.mxu0 0.0
      %3107 = vmatprep.subr.mxu0 0.0
      %3108 = vmatpush2.xpose.msra.mxu0 0.0
      %3109 = vmatprep.subr.mxu0 0.0
      %3110 = vmatpush2.xpose.msra.mxu0 0.0
      %3111 = vmatprep.subr.mxu0 0.0
      %3112 = vmatpush2.xpose.msra.mxu0 0.0
      %3113 = vmatprep.subr.mxu0 0.0
      %3114 = vmatpush2.xpose.msra.mxu0 0.0
      %3115 = vmatprep.subr.mxu0 0.0
      %3116 = vmatpush2.xpose.msra.mxu0 0.0
      %3117 = vmatprep.subr.mxu0 0.0
      %3118 = vmatpush2.xpose.msra.mxu0 0.0
      %3119 = vmatprep.subr.mxu0 0.0
      %3120 = vmatpush2.xpose.msra.mxu0 0.0
      %3121 = vmatprep.subr.mxu0 0.0
      %3122 = vmatpush2.xpose.msra.mxu0 0.0
      %3123 = vmatprep.subr.mxu0 0.0
      %3124 = vmatpush2.xpose.msra.mxu0 0.0
      %3125 = vmatprep.mubr.f32.mxu0 0.0
      %3126 = vmatmul.mubr.f32.gmra.mxu0 %v3057
      %v3127 = vpop.f32.mrf.mxu0
      %v3128 = vadd.f32 0.0, %v3127
      %v3129 = vpop.f32.mrf.mxu0
      %3130 = vdwg.mxu0
      %3131 = vrot.lane.b32.xlu0 %v3051, 120
      %v3132 = vpop.permute.xlu0 %3131
      %3133 = vrot.lane.b32.xlu0 %v3051, 88
      %v3134 = vpop.permute.xlu0 %3133
      %v3135 = vsel %vm871, %v3132, 0
      %v3137 = vsel %vm871, %v3134, 0
      %3139 = vmatprep.subr.mxu0 0.0
      %3140 = vmatpush1.xpose.msra.mxu0 0.0
      %3141 = vmatprep.subr.mxu0 0.0
      %3142 = vmatpush1.xpose.msra.mxu0 0.0
      %3143 = vmatprep.subr.mxu0 0.0
      %3144 = vmatpush1.xpose.msra.mxu0 0.0
      %3145 = vmatprep.subr.mxu0 0.0
      %3146 = vmatpush1.xpose.msra.mxu0 0.0
      %3147 = vmatprep.subr.mxu0 0.0
      %3148 = vmatpush1.xpose.msra.mxu0 0.0
      %3149 = vmatprep.subr.mxu0 0.0
      %3150 = vmatpush1.xpose.msra.mxu0 0.0
      %3151 = vmatprep.subr.mxu0 0.0
      %3152 = vmatpush1.xpose.msra.mxu0 0.0
      %3153 = vmatprep.subr.mxu0 0.0
      %3154 = vmatpush1.xpose.msra.mxu0 0.0
      %3155 = vmatprep.subr.mxu0 0.0
      %3156 = vmatpush1.xpose.msra.mxu0 0.0
      %3157 = vmatprep.subr.mxu0 0.0
      %3158 = vmatpush1.xpose.msra.mxu0 0.0
      %3159 = vmatprep.subr.mxu0 0.0
      %3160 = vmatpush1.xpose.msra.mxu0 0.0
      %3161 = vmatprep.subr.mxu0 0.0
      %3162 = vmatpush1.xpose.msra.mxu0 0.0
      %3163 = vmatprep.subr.mxu0 0.0
      %3164 = vmatpush1.xpose.msra.mxu0 0.0
      %3165 = vmatprep.subr.mxu0 0.0
      %3166 = vmatpush1.xpose.msra.mxu0 0.0
      %3167 = vmatprep.subr.mxu0 0.0
      %3168 = vmatpush1.xpose.msra.mxu0 0.0
      %3169 = vmatprep.subr.mxu0 0.0
      %3170 = vmatpush1.xpose.msra.mxu0 %v3137
      %3171 = vmatprep.subr.mxu0 0.0
      %3172 = vmatpush2.xpose.msra.mxu0 0.0
      %3173 = vmatprep.subr.mxu0 0.0
      %3174 = vmatpush2.xpose.msra.mxu0 0.0
      %3175 = vmatprep.subr.mxu0 0.0
      %3176 = vmatpush2.xpose.msra.mxu0 0.0
      %3177 = vmatprep.subr.mxu0 0.0
      %3178 = vmatpush2.xpose.msra.mxu0 0.0
      %3179 = vmatprep.subr.mxu0 0.0
      %3180 = vmatpush2.xpose.msra.mxu0 0.0
      %3181 = vmatprep.subr.mxu0 0.0
      %3182 = vmatpush2.xpose.msra.mxu0 0.0
      %3183 = vmatprep.subr.mxu0 0.0
      %3184 = vmatpush2.xpose.msra.mxu0 0.0
      %3185 = vmatprep.subr.mxu0 0.0
      %3186 = vmatpush2.xpose.msra.mxu0 0.0
      %3187 = vmatprep.subr.mxu0 0.0
      %3188 = vmatpush2.xpose.msra.mxu0 0.0
      %3189 = vmatprep.subr.mxu0 0.0
      %3190 = vmatpush2.xpose.msra.mxu0 0.0
      %3191 = vmatprep.subr.mxu0 0.0
      %3192 = vmatpush2.xpose.msra.mxu0 0.0
      %3193 = vmatprep.subr.mxu0 0.0
      %3194 = vmatpush2.xpose.msra.mxu0 0.0
      %3195 = vmatprep.subr.mxu0 0.0
      %3196 = vmatpush2.xpose.msra.mxu0 0.0
      %3197 = vmatprep.subr.mxu0 0.0
      %3198 = vmatpush2.xpose.msra.mxu0 0.0
      %3199 = vmatprep.subr.mxu0 0.0
      %3200 = vmatpush2.xpose.msra.mxu0 0.0
      %3201 = vmatprep.subr.mxu0 0.0
      %3202 = vmatpush2.xpose.msra.mxu0 0.0
      %3203 = vmatprep.mubr.f32.mxu0 0.0
      %3204 = vmatmul.mubr.f32.gmra.mxu0 %v3135
      %v3205 = vpop.f32.mrf.mxu0
      %v3206 = vadd.f32 0.0, %v3205
      %v3207 = vpop.f32.mrf.mxu0
      %3208 = vdwg.mxu0
      %3209 = vrot.lane.b32.xlu0 %v3051, 112
      %v3210 = vpop.permute.xlu0 %3209
      %3211 = vrot.lane.b32.xlu0 %v3051, 80
      %v3212 = vpop.permute.xlu0 %3211
      %v3213 = vsel %vm871, %v3210, 0
      %v3215 = vsel %vm871, %v3212, 0
      %3217 = vmatprep.subr.mxu0 0.0
      %3218 = vmatpush1.xpose.msra.mxu0 0.0
      %3219 = vmatprep.subr.mxu0 0.0
      %3220 = vmatpush1.xpose.msra.mxu0 0.0
      %3221 = vmatprep.subr.mxu0 0.0
      %3222 = vmatpush1.xpose.msra.mxu0 0.0
      %3223 = vmatprep.subr.mxu0 0.0
      %3224 = vmatpush1.xpose.msra.mxu0 0.0
      %3225 = vmatprep.subr.mxu0 0.0
      %3226 = vmatpush1.xpose.msra.mxu0 0.0
      %3227 = vmatprep.subr.mxu0 0.0
      %3228 = vmatpush1.xpose.msra.mxu0 0.0
      %3229 = vmatprep.subr.mxu0 0.0
      %3230 = vmatpush1.xpose.msra.mxu0 0.0
      %3231 = vmatprep.subr.mxu0 0.0
      %3232 = vmatpush1.xpose.msra.mxu0 0.0
      %3233 = vmatprep.subr.mxu0 0.0
      %3234 = vmatpush1.xpose.msra.mxu0 0.0
      %3235 = vmatprep.subr.mxu0 0.0
      %3236 = vmatpush1.xpose.msra.mxu0 0.0
      %3237 = vmatprep.subr.mxu0 0.0
      %3238 = vmatpush1.xpose.msra.mxu0 0.0
      %3239 = vmatprep.subr.mxu0 0.0
      %3240 = vmatpush1.xpose.msra.mxu0 0.0
      %3241 = vmatprep.subr.mxu0 0.0
      %3242 = vmatpush1.xpose.msra.mxu0 0.0
      %3243 = vmatprep.subr.mxu0 0.0
      %3244 = vmatpush1.xpose.msra.mxu0 0.0
      %3245 = vmatprep.subr.mxu0 0.0
      %3246 = vmatpush1.xpose.msra.mxu0 0.0
      %3247 = vmatprep.subr.mxu0 0.0
      %3248 = vmatpush1.xpose.msra.mxu0 %v3215
      %3249 = vmatprep.subr.mxu0 0.0
      %3250 = vmatpush2.xpose.msra.mxu0 0.0
      %3251 = vmatprep.subr.mxu0 0.0
      %3252 = vmatpush2.xpose.msra.mxu0 0.0
      %3253 = vmatprep.subr.mxu0 0.0
      %3254 = vmatpush2.xpose.msra.mxu0 0.0
      %3255 = vmatprep.subr.mxu0 0.0
      %3256 = vmatpush2.xpose.msra.mxu0 0.0
      %3257 = vmatprep.subr.mxu0 0.0
      %3258 = vmatpush2.xpose.msra.mxu0 0.0
      %3259 = vmatprep.subr.mxu0 0.0
      %3260 = vmatpush2.xpose.msra.mxu0 0.0
      %3261 = vmatprep.subr.mxu0 0.0
      %3262 = vmatpush2.xpose.msra.mxu0 0.0
      %3263 = vmatprep.subr.mxu0 0.0
      %3264 = vmatpush2.xpose.msra.mxu0 0.0
      %3265 = vmatprep.subr.mxu0 0.0
      %3266 = vmatpush2.xpose.msra.mxu0 0.0
      %3267 = vmatprep.subr.mxu0 0.0
      %3268 = vmatpush2.xpose.msra.mxu0 0.0
      %3269 = vmatprep.subr.mxu0 0.0
      %3270 = vmatpush2.xpose.msra.mxu0 0.0
      %3271 = vmatprep.subr.mxu0 0.0
      %3272 = vmatpush2.xpose.msra.mxu0 0.0
      %3273 = vmatprep.subr.mxu0 0.0
      %3274 = vmatpush2.xpose.msra.mxu0 0.0
      %3275 = vmatprep.subr.mxu0 0.0
      %3276 = vmatpush2.xpose.msra.mxu0 0.0
      %3277 = vmatprep.subr.mxu0 0.0
      %3278 = vmatpush2.xpose.msra.mxu0 0.0
      %3279 = vmatprep.subr.mxu0 0.0
      %3280 = vmatpush2.xpose.msra.mxu0 0.0
      %3281 = vmatprep.mubr.f32.mxu0 0.0
      %3282 = vmatmul.mubr.f32.gmra.mxu0 %v3213
      %v3283 = vpop.f32.mrf.mxu0
      %v3284 = vadd.f32 0.0, %v3283
      %v3285 = vpop.f32.mrf.mxu0
      %3286 = vdwg.mxu0
      %3287 = vrot.lane.b32.xlu0 %v3051, 104
      %v3288 = vpop.permute.xlu0 %3287
      %3289 = vrot.lane.b32.xlu0 %v3051, 72
      %v3290 = vpop.permute.xlu0 %3289
      %v3291 = vsel %vm871, %v3288, 0
      %v3293 = vsel %vm871, %v3290, 0
      %3295 = vmatprep.subr.mxu0 0.0
      %3296 = vmatpush1.xpose.msra.mxu0 0.0
      %3297 = vmatprep.subr.mxu0 0.0
      %3298 = vmatpush1.xpose.msra.mxu0 0.0
      %3299 = vmatprep.subr.mxu0 0.0
      %3300 = vmatpush1.xpose.msra.mxu0 0.0
      %3301 = vmatprep.subr.mxu0 0.0
      %3302 = vmatpush1.xpose.msra.mxu0 0.0
      %3303 = vmatprep.subr.mxu0 0.0
      %3304 = vmatpush1.xpose.msra.mxu0 0.0
      %3305 = vmatprep.subr.mxu0 0.0
      %3306 = vmatpush1.xpose.msra.mxu0 0.0
      %3307 = vmatprep.subr.mxu0 0.0
      %3308 = vmatpush1.xpose.msra.mxu0 0.0
      %3309 = vmatprep.subr.mxu0 0.0
      %3310 = vmatpush1.xpose.msra.mxu0 0.0
      %3311 = vmatprep.subr.mxu0 0.0
      %3312 = vmatpush1.xpose.msra.mxu0 0.0
      %3313 = vmatprep.subr.mxu0 0.0
      %3314 = vmatpush1.xpose.msra.mxu0 0.0
      %3315 = vmatprep.subr.mxu0 0.0
      %3316 = vmatpush1.xpose.msra.mxu0 0.0
      %3317 = vmatprep.subr.mxu0 0.0
      %3318 = vmatpush1.xpose.msra.mxu0 0.0
      %3319 = vmatprep.subr.mxu0 0.0
      %3320 = vmatpush1.xpose.msra.mxu0 0.0
      %3321 = vmatprep.subr.mxu0 0.0
      %3322 = vmatpush1.xpose.msra.mxu0 0.0
      %3323 = vmatprep.subr.mxu0 0.0
      %3324 = vmatpush1.xpose.msra.mxu0 0.0
      %3325 = vmatprep.subr.mxu0 0.0
      %3326 = vmatpush1.xpose.msra.mxu0 %v3293
      %3327 = vmatprep.subr.mxu0 0.0
      %3328 = vmatpush2.xpose.msra.mxu0 0.0
      %3329 = vmatprep.subr.mxu0 0.0
      %3330 = vmatpush2.xpose.msra.mxu0 0.0
      %3331 = vmatprep.subr.mxu0 0.0
      %3332 = vmatpush2.xpose.msra.mxu0 0.0
      %3333 = vmatprep.subr.mxu0 0.0
      %3334 = vmatpush2.xpose.msra.mxu0 0.0
      %3335 = vmatprep.subr.mxu0 0.0
      %3336 = vmatpush2.xpose.msra.mxu0 0.0
      %3337 = vmatprep.subr.mxu0 0.0
      %3338 = vmatpush2.xpose.msra.mxu0 0.0
      %3339 = vmatprep.subr.mxu0 0.0
      %3340 = vmatpush2.xpose.msra.mxu0 0.0
      %3341 = vmatprep.subr.mxu0 0.0
      %3342 = vmatpush2.xpose.msra.mxu0 0.0
      %3343 = vmatprep.subr.mxu0 0.0
      %3344 = vmatpush2.xpose.msra.mxu0 0.0
      %3345 = vmatprep.subr.mxu0 0.0
      %3346 = vmatpush2.xpose.msra.mxu0 0.0
      %3347 = vmatprep.subr.mxu0 0.0
      %3348 = vmatpush2.xpose.msra.mxu0 0.0
      %3349 = vmatprep.subr.mxu0 0.0
      %3350 = vmatpush2.xpose.msra.mxu0 0.0
      %3351 = vmatprep.subr.mxu0 0.0
      %3352 = vmatpush2.xpose.msra.mxu0 0.0
      %3353 = vmatprep.subr.mxu0 0.0
      %3354 = vmatpush2.xpose.msra.mxu0 0.0
      %3355 = vmatprep.subr.mxu0 0.0
      %3356 = vmatpush2.xpose.msra.mxu0 0.0
      %3357 = vmatprep.subr.mxu0 0.0
      %3358 = vmatpush2.xpose.msra.mxu0 0.0
      %3359 = vmatprep.mubr.f32.mxu0 0.0
      %3360 = vmatmul.mubr.f32.gmra.mxu0 %v3291
      %v3361 = vpop.f32.mrf.mxu0
      %v3362 = vadd.f32 0.0, %v3361
      %v3363 = vpop.f32.mrf.mxu0
      %3364 = vdwg.mxu0
      %v3365 = vsel %vm871, %v3128, -inf
      %3366 = vmax.xlane.f32.xlu0 %v3365
      %v3367 = vpop.xlane.xlu0 %3366
      %v3368 = vsel %vm871, %v3206, -inf
      %3369 = vmax.xlane.f32.xlu0 %v3368
      %v3370 = vpop.xlane.xlu0 %3369
      %v3371 = vsel %vm871, %v3284, -inf
      %3372 = vmax.xlane.f32.xlu0 %v3371
      %v3373 = vpop.xlane.xlu0 %3372
      %v3374 = vsel %vm871, %v3362, -inf
      %3375 = vmax.xlane.f32.xlu0 %v3374
      %v3376 = vpop.xlane.xlu0 %3375
      %v3377 = vsub.f32 %v3128, %v3367
      %v3378 = vsub.f32 %v3206, %v3370
      %v3379 = vsub.f32 %v3284, %v3373
      %v3380 = vsub.f32 %v3362, %v3376
      %v3381 = vmul.f32 %v3377, 1.442695
      %v3382 = vpow.pop %v3381
      %v3383 = vmul.f32 %v3378, 1.442695
      %v3384 = vpow.pop %v3383
      %v3385 = vmul.f32 %v3379, 1.442695
      %v3386 = vpow.pop %v3385
      %v3387 = vmul.f32 %v3380, 1.442695
      %v3388 = vpow.pop %v3387
      %v3389 = vsel %vm871, %v3382, 0.0
      %3390 = vadd.xlane.f32.xlu0 %v3389
      %v3391 = vpop.xlane.xlu0 %3390
      %v3392 = vsel %vm871, %v3384, 0.0
      %3393 = vadd.xlane.f32.xlu0 %v3392
      %v3394 = vpop.xlane.xlu0 %3393
      %v3395 = vsel %vm871, %v3386, 0.0
      %3396 = vadd.xlane.f32.xlu0 %v3395
      %v3397 = vpop.xlane.xlu0 %3396
      %v3398 = vsel %vm871, %v3388, 0.0
      %3399 = vadd.xlane.f32.xlu0 %v3398
      %v3400 = vpop.xlane.xlu0 %3399
      %v3401 = vrcp.pop %v3391
      %v3402 = vrcp.pop %v3394
      %v3403 = vrcp.pop %v3397
      %v3404 = vrcp.pop %v3400
      %v3405 = vmul.f32 %v3382, %v3401
      %v3406 = vmul.f32 %v3384, %v3402
      %v3407 = vmul.f32 %v3386, %v3403
      %v3408 = vmul.f32 %v3388, %v3404
      %3409 = vrot.lane.b32.xlu0 %v3051, 64
      %v3410 = vpop.permute.xlu0 %3409
      %v3413 = vsel %vm871, %v3405, 0
      %3415 = vmatprep.subr.mxu0 0.0
      %3416 = vmatpush1.msra.mxu0 0.0
      %3417 = vmatprep.subr.mxu0 0.0
      %3418 = vmatpush1.msra.mxu0 0.0
      %3419 = vmatprep.subr.mxu0 0.0
      %3420 = vmatpush1.msra.mxu0 0.0
      %3421 = vmatprep.subr.mxu0 0.0
      %3422 = vmatpush1.msra.mxu0 0.0
      %3423 = vmatprep.subr.mxu0 0.0
      %3424 = vmatpush1.msra.mxu0 0.0
      %3425 = vmatprep.subr.mxu0 0.0
      %3426 = vmatpush1.msra.mxu0 0.0
      %3427 = vmatprep.subr.mxu0 0.0
      %3428 = vmatpush1.msra.mxu0 0.0
      %3429 = vmatprep.subr.mxu0 0.0
      %3430 = vmatpush1.msra.mxu0 0.0
      %3431 = vmatprep.subr.mxu0 0.0
      %3432 = vmatpush1.msra.mxu0 0.0
      %3433 = vmatprep.subr.mxu0 0.0
      %3434 = vmatpush1.msra.mxu0 0.0
      %3435 = vmatprep.subr.mxu0 0.0
      %3436 = vmatpush1.msra.mxu0 0.0
      %3437 = vmatprep.subr.mxu0 0.0
      %3438 = vmatpush1.msra.mxu0 0.0
      %3439 = vmatprep.subr.mxu0 0.0
      %3440 = vmatpush1.msra.mxu0 0.0
      %3441 = vmatprep.subr.mxu0 0.0
      %3442 = vmatpush1.msra.mxu0 0.0
      %3443 = vmatprep.subr.mxu0 0.0
      %3444 = vmatpush1.msra.mxu0 0.0
      %3445 = vmatprep.subr.mxu0 0.0
      %3446 = vmatpush1.msra.mxu0 %v3410
      %3447 = vmatprep.subr.mxu0 0.0
      %3448 = vmatpush2.msra.mxu0 0.0
      %3449 = vmatprep.subr.mxu0 0.0
      %3450 = vmatpush2.msra.mxu0 0.0
      %3451 = vmatprep.subr.mxu0 0.0
      %3452 = vmatpush2.msra.mxu0 0.0
      %3453 = vmatprep.subr.mxu0 0.0
      %3454 = vmatpush2.msra.mxu0 0.0
      %3455 = vmatprep.subr.mxu0 0.0
      %3456 = vmatpush2.msra.mxu0 0.0
      %3457 = vmatprep.subr.mxu0 0.0
      %3458 = vmatpush2.msra.mxu0 0.0
      %3459 = vmatprep.subr.mxu0 0.0
      %3460 = vmatpush2.msra.mxu0 0.0
      %3461 = vmatprep.subr.mxu0 0.0
      %3462 = vmatpush2.msra.mxu0 0.0
      %3463 = vmatprep.subr.mxu0 0.0
      %3464 = vmatpush2.msra.mxu0 0.0
      %3465 = vmatprep.subr.mxu0 0.0
      %3466 = vmatpush2.msra.mxu0 0.0
      %3467 = vmatprep.subr.mxu0 0.0
      %3468 = vmatpush2.msra.mxu0 0.0
      %3469 = vmatprep.subr.mxu0 0.0
      %3470 = vmatpush2.msra.mxu0 0.0
      %3471 = vmatprep.subr.mxu0 0.0
      %3472 = vmatpush2.msra.mxu0 0.0
      %3473 = vmatprep.subr.mxu0 0.0
      %3474 = vmatpush2.msra.mxu0 0.0
      %3475 = vmatprep.subr.mxu0 0.0
      %3476 = vmatpush2.msra.mxu0 0.0
      %3477 = vmatprep.subr.mxu0 0.0
      %3478 = vmatpush2.msra.mxu0 0.0
      %3479 = vmatprep.mubr.f32.mxu0 0.0
      %3480 = vmatmul.mubr.f32.gmra.mxu0 %v3413
      %v3481 = vpop.f32.mrf.mxu0
      %v3482 = vadd.f32 0.0, %v3481
      %v3483 = vpop.f32.mrf.mxu0
      %3484 = vdwg.mxu0
      %3485 = vrot.lane.b32.xlu0 %v3051, 56
      %v3486 = vpop.permute.xlu0 %3485
      %v3489 = vsel %vm871, %v3406, 0
      %3491 = vmatprep.subr.mxu0 0.0
      %3492 = vmatpush1.msra.mxu0 0.0
      %3493 = vmatprep.subr.mxu0 0.0
      %3494 = vmatpush1.msra.mxu0 0.0
      %3495 = vmatprep.subr.mxu0 0.0
      %3496 = vmatpush1.msra.mxu0 0.0
      %3497 = vmatprep.subr.mxu0 0.0
      %3498 = vmatpush1.msra.mxu0 0.0
      %3499 = vmatprep.subr.mxu0 0.0
      %3500 = vmatpush1.msra.mxu0 0.0
      %3501 = vmatprep.subr.mxu0 0.0
      %3502 = vmatpush1.msra.mxu0 0.0
      %3503 = vmatprep.subr.mxu0 0.0
      %3504 = vmatpush1.msra.mxu0 0.0
      %3505 = vmatprep.subr.mxu0 0.0
      %3506 = vmatpush1.msra.mxu0 0.0
      %3507 = vmatprep.subr.mxu0 0.0
      %3508 = vmatpush1.msra.mxu0 0.0
      %3509 = vmatprep.subr.mxu0 0.0
      %3510 = vmatpush1.msra.mxu0 0.0
      %3511 = vmatprep.subr.mxu0 0.0
      %3512 = vmatpush1.msra.mxu0 0.0
      %3513 = vmatprep.subr.mxu0 0.0
      %3514 = vmatpush1.msra.mxu0 0.0
      %3515 = vmatprep.subr.mxu0 0.0
      %3516 = vmatpush1.msra.mxu0 0.0
      %3517 = vmatprep.subr.mxu0 0.0
      %3518 = vmatpush1.msra.mxu0 0.0
      %3519 = vmatprep.subr.mxu0 0.0
      %3520 = vmatpush1.msra.mxu0 0.0
      %3521 = vmatprep.subr.mxu0 0.0
      %3522 = vmatpush1.msra.mxu0 %v3486
      %3523 = vmatprep.subr.mxu0 0.0
      %3524 = vmatpush2.msra.mxu0 0.0
      %3525 = vmatprep.subr.mxu0 0.0
      %3526 = vmatpush2.msra.mxu0 0.0
      %3527 = vmatprep.subr.mxu0 0.0
      %3528 = vmatpush2.msra.mxu0 0.0
      %3529 = vmatprep.subr.mxu0 0.0
      %3530 = vmatpush2.msra.mxu0 0.0
      %3531 = vmatprep.subr.mxu0 0.0
      %3532 = vmatpush2.msra.mxu0 0.0
      %3533 = vmatprep.subr.mxu0 0.0
      %3534 = vmatpush2.msra.mxu0 0.0
      %3535 = vmatprep.subr.mxu0 0.0
      %3536 = vmatpush2.msra.mxu0 0.0
      %3537 = vmatprep.subr.mxu0 0.0
      %3538 = vmatpush2.msra.mxu0 0.0
      %3539 = vmatprep.subr.mxu0 0.0
      %3540 = vmatpush2.msra.mxu0 0.0
      %3541 = vmatprep.subr.mxu0 0.0
      %3542 = vmatpush2.msra.mxu0 0.0
      %3543 = vmatprep.subr.mxu0 0.0
      %3544 = vmatpush2.msra.mxu0 0.0
      %3545 = vmatprep.subr.mxu0 0.0
      %3546 = vmatpush2.msra.mxu0 0.0
      %3547 = vmatprep.subr.mxu0 0.0
      %3548 = vmatpush2.msra.mxu0 0.0
      %3549 = vmatprep.subr.mxu0 0.0
      %3550 = vmatpush2.msra.mxu0 0.0
      %3551 = vmatprep.subr.mxu0 0.0
      %3552 = vmatpush2.msra.mxu0 0.0
      %3553 = vmatprep.subr.mxu0 0.0
      %3554 = vmatpush2.msra.mxu0 0.0
      %3555 = vmatprep.mubr.f32.mxu0 0.0
      %3556 = vmatmul.mubr.f32.gmra.mxu0 %v3489
      %v3557 = vpop.f32.mrf.mxu0
      %v3558 = vadd.f32 0.0, %v3557
      %v3559 = vpop.f32.mrf.mxu0
      %3560 = vdwg.mxu0
      %3561 = vrot.lane.b32.xlu0 %v3051, 48
      %v3562 = vpop.permute.xlu0 %3561
      %v3565 = vsel %vm871, %v3407, 0
      %3567 = vmatprep.subr.mxu0 0.0
      %3568 = vmatpush1.msra.mxu0 0.0
      %3569 = vmatprep.subr.mxu0 0.0
      %3570 = vmatpush1.msra.mxu0 0.0
      %3571 = vmatprep.subr.mxu0 0.0
      %3572 = vmatpush1.msra.mxu0 0.0
      %3573 = vmatprep.subr.mxu0 0.0
      %3574 = vmatpush1.msra.mxu0 0.0
      %3575 = vmatprep.subr.mxu0 0.0
      %3576 = vmatpush1.msra.mxu0 0.0
      %3577 = vmatprep.subr.mxu0 0.0
      %3578 = vmatpush1.msra.mxu0 0.0
      %3579 = vmatprep.subr.mxu0 0.0
      %3580 = vmatpush1.msra.mxu0 0.0
      %3581 = vmatprep.subr.mxu0 0.0
      %3582 = vmatpush1.msra.mxu0 0.0
      %3583 = vmatprep.subr.mxu0 0.0
      %3584 = vmatpush1.msra.mxu0 0.0
      %3585 = vmatprep.subr.mxu0 0.0
      %3586 = vmatpush1.msra.mxu0 0.0
      %3587 = vmatprep.subr.mxu0 0.0
      %3588 = vmatpush1.msra.mxu0 0.0
      %3589 = vmatprep.subr.mxu0 0.0
      %3590 = vmatpush1.msra.mxu0 0.0
      %3591 = vmatprep.subr.mxu0 0.0
      %3592 = vmatpush1.msra.mxu0 0.0
      %3593 = vmatprep.subr.mxu0 0.0
      %3594 = vmatpush1.msra.mxu0 0.0
      %3595 = vmatprep.subr.mxu0 0.0
      %3596 = vmatpush1.msra.mxu0 0.0
      %3597 = vmatprep.subr.mxu0 0.0
      %3598 = vmatpush1.msra.mxu0 %v3562
      %3599 = vmatprep.subr.mxu0 0.0
      %3600 = vmatpush2.msra.mxu0 0.0
      %3601 = vmatprep.subr.mxu0 0.0
      %3602 = vmatpush2.msra.mxu0 0.0
      %3603 = vmatprep.subr.mxu0 0.0
      %3604 = vmatpush2.msra.mxu0 0.0
      %3605 = vmatprep.subr.mxu0 0.0
      %3606 = vmatpush2.msra.mxu0 0.0
      %3607 = vmatprep.subr.mxu0 0.0
      %3608 = vmatpush2.msra.mxu0 0.0
      %3609 = vmatprep.subr.mxu0 0.0
      %3610 = vmatpush2.msra.mxu0 0.0
      %3611 = vmatprep.subr.mxu0 0.0
      %3612 = vmatpush2.msra.mxu0 0.0
      %3613 = vmatprep.subr.mxu0 0.0
      %3614 = vmatpush2.msra.mxu0 0.0
      %3615 = vmatprep.subr.mxu0 0.0
      %3616 = vmatpush2.msra.mxu0 0.0
      %3617 = vmatprep.subr.mxu0 0.0
      %3618 = vmatpush2.msra.mxu0 0.0
      %3619 = vmatprep.subr.mxu0 0.0
      %3620 = vmatpush2.msra.mxu0 0.0
      %3621 = vmatprep.subr.mxu0 0.0
      %3622 = vmatpush2.msra.mxu0 0.0
      %3623 = vmatprep.subr.mxu0 0.0
      %3624 = vmatpush2.msra.mxu0 0.0
      %3625 = vmatprep.subr.mxu0 0.0
      %3626 = vmatpush2.msra.mxu0 0.0
      %3627 = vmatprep.subr.mxu0 0.0
      %3628 = vmatpush2.msra.mxu0 0.0
      %3629 = vmatprep.subr.mxu0 0.0
      %3630 = vmatpush2.msra.mxu0 0.0
      %3631 = vmatprep.mubr.f32.mxu0 0.0
      %3632 = vmatmul.mubr.f32.gmra.mxu0 %v3565
      %v3633 = vpop.f32.mrf.mxu0
      %v3634 = vadd.f32 0.0, %v3633
      %v3635 = vpop.f32.mrf.mxu0
      %3636 = vdwg.mxu0
      %3637 = vrot.lane.b32.xlu0 %v3051, 40
      %v3638 = vpop.permute.xlu0 %3637
      %v3641 = vsel %vm871, %v3408, 0
      %3643 = vmatprep.subr.mxu0 0.0
      %3644 = vmatpush1.msra.mxu0 0.0
      %3645 = vmatprep.subr.mxu0 0.0
      %3646 = vmatpush1.msra.mxu0 0.0
      %3647 = vmatprep.subr.mxu0 0.0
      %3648 = vmatpush1.msra.mxu0 0.0
      %3649 = vmatprep.subr.mxu0 0.0
      %3650 = vmatpush1.msra.mxu0 0.0
      %3651 = vmatprep.subr.mxu0 0.0
      %3652 = vmatpush1.msra.mxu0 0.0
      %3653 = vmatprep.subr.mxu0 0.0
      %3654 = vmatpush1.msra.mxu0 0.0
      %3655 = vmatprep.subr.mxu0 0.0
      %3656 = vmatpush1.msra.mxu0 0.0
      %3657 = vmatprep.subr.mxu0 0.0
      %3658 = vmatpush1.msra.mxu0 0.0
      %3659 = vmatprep.subr.mxu0 0.0
      %3660 = vmatpush1.msra.mxu0 0.0
      %3661 = vmatprep.subr.mxu0 0.0
      %3662 = vmatpush1.msra.mxu0 0.0
      %3663 = vmatprep.subr.mxu0 0.0
      %3664 = vmatpush1.msra.mxu0 0.0
      %3665 = vmatprep.subr.mxu0 0.0
      %3666 = vmatpush1.msra.mxu0 0.0
      %3667 = vmatprep.subr.mxu0 0.0
      %3668 = vmatpush1.msra.mxu0 0.0
      %3669 = vmatprep.subr.mxu0 0.0
      %3670 = vmatpush1.msra.mxu0 0.0
      %3671 = vmatprep.subr.mxu0 0.0
      %3672 = vmatpush1.msra.mxu0 0.0
      %3673 = vmatprep.subr.mxu0 0.0
      %3674 = vmatpush1.msra.mxu0 %v3638
      %3675 = vmatprep.subr.mxu0 0.0
      %3676 = vmatpush2.msra.mxu0 0.0
      %3677 = vmatprep.subr.mxu0 0.0
      %3678 = vmatpush2.msra.mxu0 0.0
      %3679 = vmatprep.subr.mxu0 0.0
      %3680 = vmatpush2.msra.mxu0 0.0
      %3681 = vmatprep.subr.mxu0 0.0
      %3682 = vmatpush2.msra.mxu0 0.0
      %3683 = vmatprep.subr.mxu0 0.0
      %3684 = vmatpush2.msra.mxu0 0.0
      %3685 = vmatprep.subr.mxu0 0.0
      %3686 = vmatpush2.msra.mxu0 0.0
      %3687 = vmatprep.subr.mxu0 0.0
      %3688 = vmatpush2.msra.mxu0 0.0
      %3689 = vmatprep.subr.mxu0 0.0
      %3690 = vmatpush2.msra.mxu0 0.0
      %3691 = vmatprep.subr.mxu0 0.0
      %3692 = vmatpush2.msra.mxu0 0.0
      %3693 = vmatprep.subr.mxu0 0.0
      %3694 = vmatpush2.msra.mxu0 0.0
      %3695 = vmatprep.subr.mxu0 0.0
      %3696 = vmatpush2.msra.mxu0 0.0
      %3697 = vmatprep.subr.mxu0 0.0
      %3698 = vmatpush2.msra.mxu0 0.0
      %3699 = vmatprep.subr.mxu0 0.0
      %3700 = vmatpush2.msra.mxu0 0.0
      %3701 = vmatprep.subr.mxu0 0.0
      %3702 = vmatpush2.msra.mxu0 0.0
      %3703 = vmatprep.subr.mxu0 0.0
      %3704 = vmatpush2.msra.mxu0 0.0
      %3705 = vmatprep.subr.mxu0 0.0
      %3706 = vmatpush2.msra.mxu0 0.0
      %3707 = vmatprep.mubr.f32.mxu0 0.0
      %3708 = vmatmul.mubr.f32.gmra.mxu0 %v3641
      %v3709 = vpop.f32.mrf.mxu0
      %v3710 = vadd.f32 0.0, %v3709
      %v3711 = vpop.f32.mrf.mxu0
      %3712 = vdwg.mxu0
      %3714 = vrot.lane.b32.xlu0 %v3558, 8
      %v3715 = vpop.permute.xlu0 %3714
      %3718 = vrot.lane.b32.xlu0 %v3634, 16
      %v3719 = vpop.permute.xlu0 %3718
      %3722 = vrot.lane.b32.xlu0 %v3710, 24
      %v3723 = vpop.permute.xlu0 %3722
      %v3725 = vsel %vm871, %v3482, %v3715
      %v3726 = vsel %vm1541, %v3725, %v3719
      %v3727 = vsel %vm1543, %v3726, %v3723
      %s3728 = scalar_lea.vmem %s8, 64
      %v3729 = vld [vmem:[%s3728] sm:$0xff]
      %v3730 = vld [vmem:[%s3728 + $0x8] sm:$0xff]
      %v3731 = vld [vmem:[%s3728 + $0x10] sm:$0xff]
      %v3732 = vld [vmem:[%s3728 + $0x18] sm:$0xff]
      %s3733 = scalar_lea.vmem %s9, 2
      %v3734 = vld [vmem:[%s3733] sm:$0x1]
      %v3736 = vlaneseq
      %v3737 = vshrl.u32 %v3736, 7
      %v3738 = vsub.s32 0, %v3737
      %v3739 = vrot.slane %v3734, %v3738
      %v3742 = vsel %vm692, %v3727, 0
      %3744 = vmatprep.subr.mxu0 0.0
      %3745 = vmatpush1.msra.mxu0 0.0
      %3746 = vmatprep.subr.mxu0 0.0
      %3747 = vmatpush1.msra.mxu0 0.0
      %3748 = vmatprep.subr.mxu0 0.0
      %3749 = vmatpush1.msra.mxu0 0.0
      %3750 = vmatprep.subr.mxu0 0.0
      %3751 = vmatpush1.msra.mxu0 0.0
      %3752 = vmatprep.subr.mxu0 0.0
      %3753 = vmatpush1.msra.mxu0 0.0
      %3754 = vmatprep.subr.mxu0 0.0
      %3755 = vmatpush1.msra.mxu0 0.0
      %3756 = vmatprep.subr.mxu0 0.0
      %3757 = vmatpush1.msra.mxu0 0.0
      %3758 = vmatprep.subr.mxu0 0.0
      %3759 = vmatpush1.msra.mxu0 0.0
      %3760 = vmatprep.subr.mxu0 0.0
      %3761 = vmatpush1.msra.mxu0 0.0
      %3762 = vmatprep.subr.mxu0 0.0
      %3763 = vmatpush1.msra.mxu0 0.0
      %3764 = vmatprep.subr.mxu0 0.0
      %3765 = vmatpush1.msra.mxu0 0.0
      %3766 = vmatprep.subr.mxu0 0.0
      %3767 = vmatpush1.msra.mxu0 0.0
      %3768 = vmatprep.subr.mxu0 0.0
      %3769 = vmatpush1.msra.mxu0 %v3732
      %3770 = vmatprep.subr.mxu0 0.0
      %3771 = vmatpush1.msra.mxu0 %v3731
      %3772 = vmatprep.subr.mxu0 0.0
      %3773 = vmatpush1.msra.mxu0 %v3730
      %3774 = vmatprep.subr.mxu0 0.0
      %3775 = vmatpush1.msra.mxu0 %v3729
      %3776 = vmatprep.subr.mxu0 0.0
      %3777 = vmatpush2.msra.mxu0 0.0
      %3778 = vmatprep.subr.mxu0 0.0
      %3779 = vmatpush2.msra.mxu0 0.0
      %3780 = vmatprep.subr.mxu0 0.0
      %3781 = vmatpush2.msra.mxu0 0.0
      %3782 = vmatprep.subr.mxu0 0.0
      %3783 = vmatpush2.msra.mxu0 0.0
      %3784 = vmatprep.subr.mxu0 0.0
      %3785 = vmatpush2.msra.mxu0 0.0
      %3786 = vmatprep.subr.mxu0 0.0
      %3787 = vmatpush2.msra.mxu0 0.0
      %3788 = vmatprep.subr.mxu0 0.0
      %3789 = vmatpush2.msra.mxu0 0.0
      %3790 = vmatprep.subr.mxu0 0.0
      %3791 = vmatpush2.msra.mxu0 0.0
      %3792 = vmatprep.subr.mxu0 0.0
      %3793 = vmatpush2.msra.mxu0 0.0
      %3794 = vmatprep.subr.mxu0 0.0
      %3795 = vmatpush2.msra.mxu0 0.0
      %3796 = vmatprep.subr.mxu0 0.0
      %3797 = vmatpush2.msra.mxu0 0.0
      %3798 = vmatprep.subr.mxu0 0.0
      %3799 = vmatpush2.msra.mxu0 0.0
      %3800 = vmatprep.subr.mxu0 0.0
      %3801 = vmatpush2.msra.mxu0 0.0
      %3802 = vmatprep.subr.mxu0 0.0
      %3803 = vmatpush2.msra.mxu0 0.0
      %3804 = vmatprep.subr.mxu0 0.0
      %3805 = vmatpush2.msra.mxu0 0.0
      %3806 = vmatprep.subr.mxu0 0.0
      %3807 = vmatpush2.msra.mxu0 0.0
      %3808 = vmatprep.mubr.f32.mxu0 0.0
      %3809 = vmatmul.mubr.f32.gmra.mxu0 %v3742
      %v3810 = vpop.f32.mrf.mxu0
      %v3811 = vadd.f32 %v3739, %v3810
      %v3812 = vpop.f32.mrf.mxu0
      %3813 = vdwg.mxu0
      %v3814 = vadd.f32 %v2967, %v3811
      %s3815 = scalar_lea.vmem %s14, 2
      %v3816 = vld [vmem:[%s3815] sm:$0x1]
      %s3817 = scalar_lea.vmem %s15, 2
      %v3818 = vld [vmem:[%s3817] sm:$0x1]
      %v3819 = vsel %vm692, %v3814, 0.0
      %3820 = vadd.xlane.f32.xlu0 %v3819
      %v3821 = vpop.xlane.xlu0 %3820
      %v3822 = vmul.f32 %v3821, %v1635
      %v3823 = vsub.f32 %v3814, %v3822
      %v3824 = vmul.f32 %v3823, %v3823
      %v3825 = vsel %vm692, %v3824, 0.0
      %3826 = vadd.xlane.f32.xlu0 %v3825
      %v3827 = vpop.xlane.xlu0 %3826
      %v3828 = vmul.f32 %v3827, %v1635
      %v3829 = vadd.f32 %v3828, 1e-05
      %v3830 = vrsqrt.pop %v3829
      %v3831 = vmul.f32 %v3823, %v3830
      %v3833 = vlaneseq
      %v3834 = vshrl.u32 %v3833, 7
      %v3835 = vsub.s32 0, %v3834
      %v3836 = vrot.slane %v3816, %v3835
      %v3838 = vmul.f32 %v3831, %v3836
      %v3840 = vlaneseq
      %v3841 = vshrl.u32 %v3840, 7
      %v3842 = vsub.s32 0, %v3841
      %v3843 = vrot.slane %v3818, %v3842
      %v3845 = vadd.f32 %v3838, %v3843
      %s3846 = scalar_lea.vmem %s10, 64
      %v3847 = vld [vmem:[%s3846] sm:$0xff]
      %v3848 = vld [vmem:[%s3846 + $0x8] sm:$0xff]
      %v3849 = vld [vmem:[%s3846 + $0x10] sm:$0xff]
      %v3850 = vld [vmem:[%s3846 + $0x18] sm:$0xff]
      %s3851 = scalar_lea.vmem %s11, 2
      %v3852 = vld [vmem:[%s3851] sm:$0x1]
      %v3854 = vlaneseq
      %v3855 = vshrl.u32 %v3854, 7
      %v3856 = vsub.s32 0, %v3855
      %v3857 = vrot.slane %v3852, %v3856
      %v3860 = vsel %vm692, %v3845, 0
      %3862 = vmatprep.subr.mxu0 0.0
      %3863 = vmatpush1.msra.mxu0 0.0
      %3864 = vmatprep.subr.mxu0 0.0
      %3865 = vmatpush1.msra.mxu0 0.0
      %3866 = vmatprep.subr.mxu0 0.0
      %3867 = vmatpush1.msra.mxu0 0.0
      %3868 = vmatprep.subr.mxu0 0.0
      %3869 = vmatpush1.msra.mxu0 0.0
      %3870 = vmatprep.subr.mxu0 0.0
      %3871 = vmatpush1.msra.mxu0 0.0
      %3872 = vmatprep.subr.mxu0 0.0
      %3873 = vmatpush1.msra.mxu0 0.0
      %3874 = vmatprep.subr.mxu0 0.0
      %3875 = vmatpush1.msra.mxu0 0.0
      %3876 = vmatprep.subr.mxu0 0.0
      %3877 = vmatpush1.msra.mxu0 0.0
      %3878 = vmatprep.subr.mxu0 0.0
      %3879 = vmatpush1.msra.mxu0 0.0
      %3880 = vmatprep.subr.mxu0 0.0
      %3881 = vmatpush1.msra.mxu0 0.0
      %3882 = vmatprep.subr.mxu0 0.0
      %3883 = vmatpush1.msra.mxu0 0.0
      %3884 = vmatprep.subr.mxu0 0.0
      %3885 = vmatpush1.msra.mxu0 0.0
      %3886 = vmatprep.subr.mxu0 0.0
      %3887 = vmatpush1.msra.mxu0 %v3850
      %3888 = vmatprep.subr.mxu0 0.0
      %3889 = vmatpush1.msra.mxu0 %v3849
      %3890 = vmatprep.subr.mxu0 0.0
      %3891 = vmatpush1.msra.mxu0 %v3848
      %3892 = vmatprep.subr.mxu0 0.0
      %3893 = vmatpush1.msra.mxu0 %v3847
      %3894 = vmatprep.subr.mxu0 0.0
      %3895 = vmatpush2.msra.mxu0 0.0
      %3896 = vmatprep.subr.mxu0 0.0
      %3897 = vmatpush2.msra.mxu0 0.0
      %3898 = vmatprep.subr.mxu0 0.0
      %3899 = vmatpush2.msra.mxu0 0.0
      %3900 = vmatprep.subr.mxu0 0.0
      %3901 = vmatpush2.msra.mxu0 0.0
      %3902 = vmatprep.subr.mxu0 0.0
      %3903 = vmatpush2.msra.mxu0 0.0
      %3904 = vmatprep.subr.mxu0 0.0
      %3905 = vmatpush2.msra.mxu0 0.0
      %3906 = vmatprep.subr.mxu0 0.0
      %3907 = vmatpush2.msra.mxu0 0.0
      %3908 = vmatprep.subr.mxu0 0.0
      %3909 = vmatpush2.msra.mxu0 0.0
      %3910 = vmatprep.subr.mxu0 0.0
      %3911 = vmatpush2.msra.mxu0 0.0
      %3912 = vmatprep.subr.mxu0 0.0
      %3913 = vmatpush2.msra.mxu0 0.0
      %3914 = vmatprep.subr.mxu0 0.0
      %3915 = vmatpush2.msra.mxu0 0.0
      %3916 = vmatprep.subr.mxu0 0.0
      %3917 = vmatpush2.msra.mxu0 0.0
      %3918 = vmatprep.subr.mxu0 0.0
      %3919 = vmatpush2.msra.mxu0 0.0
      %3920 = vmatprep.subr.mxu0 0.0
      %3921 = vmatpush2.msra.mxu0 0.0
      %3922 = vmatprep.subr.mxu0 0.0
      %3923 = vmatpush2.msra.mxu0 0.0
      %3924 = vmatprep.subr.mxu0 0.0
      %3925 = vmatpush2.msra.mxu0 0.0
      %3926 = vmatprep.mubr.f32.mxu0 0.0
      %3927 = vmatmul.mubr.f32.gmra.mxu0 %v3860
      %v3928 = vpop.f32.mrf.mxu0
      %v3929 = vadd.f32 %v3857, %v3928
      %v3930 = vpop.f32.mrf.mxu0
      %3931 = vdwg.mxu0
      %v3932 = vmul.f32 %v3929, %v3929
      %v3933 = vmul.f32 %v3929, %v3932
      %v3934 = vmul.f32 %v3933, 0.044715
      %v3935 = vadd.f32 %v3929, %v3934
      %v3936 = vmul.f32 %v3935, 0.7978846
      %v3937 = vtanh.pop %v3936
      %v3938 = vadd.f32 %v3937, 1.0
      %v3939 = vmul.f32 %v3938, 0.5
      %v3940 = vmul.f32 %v3929, %v3939
      %s3941 = scalar_lea.vmem %s12, 128
      %v3942 = vld [vmem:[%s3941] sm:$0xff]
      %v3943 = vld [vmem:[%s3941 + $0x8] sm:$0xff]
      %v3944 = vld [vmem:[%s3941 + $0x10] sm:$0xff]
      %v3945 = vld [vmem:[%s3941 + $0x18] sm:$0xff]
      %v3946 = vld [vmem:[%s3941 + $0x20] sm:$0xff]
      %v3947 = vld [vmem:[%s3941 + $0x28] sm:$0xff]
      %v3948 = vld [vmem:[%s3941 + $0x30] sm:$0xff]
      %v3949 = vld [vmem:[%s3941 + $0x38] sm:$0xff]
      %s3950 = scalar_lea.vmem %s13, 2
      %v3951 = vld [vmem:[%s3950] sm:$0x1]
      %v3953 = vlaneseq
      %v3954 = vshrl.u32 %v3953, 7
      %v3955 = vsub.s32 0, %v3954
      %v3956 = vrot.slane %v3951, %v3955
      %v3959 = vsel %vm1768, %v3940, 0
      %3961 = vmatprep.subr.mxu0 0.0
      %3962 = vmatpush1.msra.mxu0 0.0
      %3963 = vmatprep.subr.mxu0 0.0
      %3964 = vmatpush1.msra.mxu0 0.0
      %3965 = vmatprep.subr.mxu0 0.0
      %3966 = vmatpush1.msra.mxu0 0.0
      %3967 = vmatprep.subr.mxu0 0.0
      %3968 = vmatpush1.msra.mxu0 0.0
      %3969 = vmatprep.subr.mxu0 0.0
      %3970 = vmatpush1.msra.mxu0 0.0
      %3971 = vmatprep.subr.mxu0 0.0
      %3972 = vmatpush1.msra.mxu0 0.0
      %3973 = vmatprep.subr.mxu0 0.0
      %3974 = vmatpush1.msra.mxu0 0.0
      %3975 = vmatprep.subr.mxu0 0.0
      %3976 = vmatpush1.msra.mxu0 0.0
      %3977 = vmatprep.subr.mxu0 0.0
      %3978 = vmatpush1.msra.mxu0 %v3949
      %3979 = vmatprep.subr.mxu0 0.0
      %3980 = vmatpush1.msra.mxu0 %v3948
      %3981 = vmatprep.subr.mxu0 0.0
      %3982 = vmatpush1.msra.mxu0 %v3947
      %3983 = vmatprep.subr.mxu0 0.0
      %3984 = vmatpush1.msra.mxu0 %v3946
      %3985 = vmatprep.subr.mxu0 0.0
      %3986 = vmatpush1.msra.mxu0 %v3945
      %3987 = vmatprep.subr.mxu0 0.0
      %3988 = vmatpush1.msra.mxu0 %v3944
      %3989 = vmatprep.subr.mxu0 0.0
      %3990 = vmatpush1.msra.mxu0 %v3943
      %3991 = vmatprep.subr.mxu0 0.0
      %3992 = vmatpush1.msra.mxu0 %v3942
      %3993 = vmatprep.subr.mxu0 0.0
      %3994 = vmatpush2.msra.mxu0 0.0
      %3995 = vmatprep.subr.mxu0 0.0
      %3996 = vmatpush2.msra.mxu0 0.0
      %3997 = vmatprep.subr.mxu0 0.0
      %3998 = vmatpush2.msra.mxu0 0.0
      %3999 = vmatprep.subr.mxu0 0.0
      %4000 = vmatpush2.msra.mxu0 0.0
      %4001 = vmatprep.subr.mxu0 0.0
      %4002 = vmatpush2.msra.mxu0 0.0
      %4003 = vmatprep.subr.mxu0 0.0
      %4004 = vmatpush2.msra.mxu0 0.0
      %4005 = vmatprep.subr.mxu0 0.0
      %4006 = vmatpush2.msra.mxu0 0.0
      %4007 = vmatprep.subr.mxu0 0.0
      %4008 = vmatpush2.msra.mxu0 0.0
      %4009 = vmatprep.subr.mxu0 0.0
      %4010 = vmatpush2.msra.mxu0 0.0
      %4011 = vmatprep.subr.mxu0 0.0
      %4012 = vmatpush2.msra.mxu0 0.0
      %4013 = vmatprep.subr.mxu0 0.0
      %4014 = vmatpush2.msra.mxu0 0.0
      %4015 = vmatprep.subr.mxu0 0.0
      %4016 = vmatpush2.msra.mxu0 0.0
      %4017 = vmatprep.subr.mxu0 0.0
      %4018 = vmatpush2.msra.mxu0 0.0
      %4019 = vmatprep.subr.mxu0 0.0
      %4020 = vmatpush2.msra.mxu0 0.0
      %4021 = vmatprep.subr.mxu0 0.0
      %4022 = vmatpush2.msra.mxu0 0.0
      %4023 = vmatprep.subr.mxu0 0.0
      %4024 = vmatpush2.msra.mxu0 0.0
      %4025 = vmatprep.mubr.f32.mxu0 0.0
      %4026 = vmatmul.mubr.f32.gmra.mxu0 %v3959
      %v4027 = vpop.f32.mrf.mxu0
      %v4028 = vadd.f32 %v3956, %v4027
      %v4029 = vpop.f32.mrf.mxu0
      %4030 = vdwg.mxu0
      %v4031 = vadd.f32 %v3845, %v4028
      %s4032 = scalar_lea.vmem %s16, 2
      %v4033 = vld [vmem:[%s4032] sm:$0x1]
      %s4034 = scalar_lea.vmem %s17, 2
      %v4035 = vld [vmem:[%s4034] sm:$0x1]
      %v4036 = vsel %vm692, %v4031, 0.0
      %4037 = vadd.xlane.f32.xlu0 %v4036
      %v4038 = vpop.xlane.xlu0 %4037
      %v4039 = vmul.f32 %v4038, %v1635
      %v4040 = vsub.f32 %v4031, %v4039
      %v4041 = vmul.f32 %v4040, %v4040
      %v4042 = vsel %vm692, %v4041, 0.0
      %4043 = vadd.xlane.f32.xlu0 %v4042
      %v4044 = vpop.xlane.xlu0 %4043
      %v4045 = vmul.f32 %v4044, %v1635
      %v4046 = vadd.f32 %v4045, 1e-05
      %v4047 = vrsqrt.pop %v4046
      %v4048 = vmul.f32 %v4040, %v4047
      %v4050 = vlaneseq
      %v4051 = vshrl.u32 %v4050, 7
      %v4052 = vsub.s32 0, %v4051
      %v4053 = vrot.slane %v4033, %v4052
      %v4055 = vmul.f32 %v4048, %v4053
      %v4057 = vlaneseq
      %v4058 = vshrl.u32 %v4057, 7
      %v4059 = vsub.s32 0, %v4058
      %v4060 = vrot.slane %v4035, %v4059
      %v4062 = vadd.f32 %v4055, %v4060
      %v4063 = vld [vmem:[%s18] sm:$0xff]
      %v4064 = vld [vmem:[%s18 + $0x8] sm:$0xff]
      %v4065 = vld [vmem:[%s18 + $0x10] sm:$0xff]
      %v4066 = vld [vmem:[%s18 + $0x18] sm:$0xff]
      %v4067 = vld [vmem:[%s19] sm:$0x1]
      %v4069 = vlaneseq
      %v4070 = vshrl.u32 %v4069, 7
      %v4071 = vsub.s32 0, %v4070
      %v4072 = vrot.slane %v4067, %v4071
      %v4075 = vsel %vm692, %v4062, 0
      %4077 = vmatprep.subr.mxu0 0.0
      %4078 = vmatpush1.msra.mxu0 0.0
      %4079 = vmatprep.subr.mxu0 0.0
      %4080 = vmatpush1.msra.mxu0 0.0
      %4081 = vmatprep.subr.mxu0 0.0
      %4082 = vmatpush1.msra.mxu0 0.0
      %4083 = vmatprep.subr.mxu0 0.0
      %4084 = vmatpush1.msra.mxu0 0.0
      %4085 = vmatprep.subr.mxu0 0.0
      %4086 = vmatpush1.msra.mxu0 0.0
      %4087 = vmatprep.subr.mxu0 0.0
      %4088 = vmatpush1.msra.mxu0 0.0
      %4089 = vmatprep.subr.mxu0 0.0
      %4090 = vmatpush1.msra.mxu0 0.0
      %4091 = vmatprep.subr.mxu0 0.0
      %4092 = vmatpush1.msra.mxu0 0.0
      %4093 = vmatprep.subr.mxu0 0.0
      %4094 = vmatpush1.msra.mxu0 0.0
      %4095 = vmatprep.subr.mxu0 0.0
      %4096 = vmatpush1.msra.mxu0 0.0
      %4097 = vmatprep.subr.mxu0 0.0
      %4098 = vmatpush1.msra.mxu0 0.0
      %4099 = vmatprep.subr.mxu0 0.0
      %4100 = vmatpush1.msra.mxu0 0.0
      %4101 = vmatprep.subr.mxu0 0.0
      %4102 = vmatpush1.msra.mxu0 %v4066
      %4103 = vmatprep.subr.mxu0 0.0
      %4104 = vmatpush1.msra.mxu0 %v4065
      %4105 = vmatprep.subr.mxu0 0.0
      %4106 = vmatpush1.msra.mxu0 %v4064
      %4107 = vmatprep.subr.mxu0 0.0
      %4108 = vmatpush1.msra.mxu0 %v4063
      %4109 = vmatprep.subr.mxu0 0.0
      %4110 = vmatpush2.msra.mxu0 0.0
      %4111 = vmatprep.subr.mxu0 0.0
      %4112 = vmatpush2.msra.mxu0 0.0
      %4113 = vmatprep.subr.mxu0 0.0
      %4114 = vmatpush2.msra.mxu0 0.0
      %4115 = vmatprep.subr.mxu0 0.0
      %4116 = vmatpush2.msra.mxu0 0.0
      %4117 = vmatprep.subr.mxu0 0.0
      %4118 = vmatpush2.msra.mxu0 0.0
      %4119 = vmatprep.subr.mxu0 0.0
      %4120 = vmatpush2.msra.mxu0 0.0
      %4121 = vmatprep.subr.mxu0 0.0
      %4122 = vmatpush2.msra.mxu0 0.0
      %4123 = vmatprep.subr.mxu0 0.0
      %4124 = vmatpush2.msra.mxu0 0.0
      %4125 = vmatprep.subr.mxu0 0.0
      %4126 = vmatpush2.msra.mxu0 0.0
      %4127 = vmatprep.subr.mxu0 0.0
      %4128 = vmatpush2.msra.mxu0 0.0
      %4129 = vmatprep.subr.mxu0 0.0
      %4130 = vmatpush2.msra.mxu0 0.0
      %4131 = vmatprep.subr.mxu0 0.0
      %4132 = vmatpush2.msra.mxu0 0.0
      %4133 = vmatprep.subr.mxu0 0.0
      %4134 = vmatpush2.msra.mxu0 0.0
      %4135 = vmatprep.subr.mxu0 0.0
      %4136 = vmatpush2.msra.mxu0 0.0
      %4137 = vmatprep.subr.mxu0 0.0
      %4138 = vmatpush2.msra.mxu0 0.0
      %4139 = vmatprep.subr.mxu0 0.0
      %4140 = vmatpush2.msra.mxu0 0.0
      %4141 = vmatprep.mubr.f32.mxu0 0.0
      %4142 = vmatmul.mubr.f32.gmra.mxu0 %v4075
      %v4143 = vpop.f32.mrf.mxu0
      %v4144 = vadd.f32 %v4072, %v4143
      %v4145 = vpop.f32.mrf.mxu0
      %4146 = vdwg.mxu0
      %4147 = vst.msk [vmem:[%s675] sm:$0xff] %vm692, %v4144
      %v4148 = vsub.f32 %v4144, %v680
      %v4149 = vmul.f32 %v4148, %v4148
      %v4150 = vsel %vm692, %v4149, 0.0
      %4151 = vadd.xlane.f32.xlu0 %v4150
      %v4152 = vpop.xlane.xlu0 %4151
      %vm4153 = vcmask 7168
      %4154 = vst.msk [vmem:[%s679] sm:$0xff] %vm4153, %v4152
      %p4155 = scmp.lt.s32.totalorder %s33, 1
      %s4156 = scalar_select %p4155, %s33, 1
      %s4157 = smul.addr %s4156, 8
      %s4158 = scalar_lea.vmem %s20, %s4157
      %p4159 = scmp.lt.s32.totalorder %s33, 1
      %s4160 = scalar_select %p4159, %s33, 1
      %s4161 = smul.addr %s4160, 8
      %s4162 = scalar_lea.vmem %s21, %s4161
      // Predicated region
      $region101: #{neurobert_mae_forward.1} parent=99 // pred_check
        %p4163 = pneg %p481
      $region102: #{neurobert_mae_forward.1} parent=99 // pred_check_branch
        %4165 = sbr.rel (%p4163) target = $region104
      $region103: #{neurobert_mae_forward.1} parent=99 // pred_region
        _
      $region104: #{neurobert_mae_forward.1} parent=99 // pred_fallthru
        _
      // Predicated region
      $region105: #{neurobert_mae_forward.1} parent=99 // pred_check
        %p4166 = pneg %p507
      $region106: #{neurobert_mae_forward.1} parent=99 // pred_check_branch
        %4168 = sbr.rel (%p4166) target = $region108
      $region107: #{neurobert_mae_forward.1} parent=99 // pred_region
        _
      $region108: #{neurobert_mae_forward.1} parent=99 // pred_fallthru
        _
    $region100: #{neurobert_mae_forward.1} parent=5 // pred_fallthru
      _
    %p4169 = scmp.le.s32.totalorder 2, %s28
    // Predicated region
    $region109: #{neurobert_mae_forward.1} parent=5 // pred_check
      %p4170 = pneg %p4169
    $region110: #{neurobert_mae_forward.1} parent=5 // pred_check_branch
      %4172 = sbr.rel (%p4170) target = $region112
    $region111: #{neurobert_mae_forward.1} parent=5 // pred_region
      %s4173 = ssub.s32 %s28, 2
      // Predicated region
      $region113: #{neurobert_mae_forward.1} parent=111 // pred_check
        %p4174 = pneg %p487
      $region114: #{neurobert_mae_forward.1} parent=111 // pred_check_branch
        %4176 = sbr.rel (%p4174) target = $region116
      $region115: #{neurobert_mae_forward.1} parent=111 // pred_region
        %p4177 = scmp.lt.s32.totalorder %s34, 1
        %s4178 = scalar_select %p4177, %s34, 1
        %s4179 = smul.addr %s4178, 8
        %s4180 = scalar_lea.vmem %s20, %s4179
      $region116: #{neurobert_mae_forward.1} parent=111 // pred_fallthru
        _
      // Predicated region
      $region117: #{neurobert_mae_forward.1} parent=111 // pred_check
        %p4181 = pneg %p513
      $region118: #{neurobert_mae_forward.1} parent=111 // pred_check_branch
        %4183 = sbr.rel (%p4181) target = $region120
      $region119: #{neurobert_mae_forward.1} parent=111 // pred_region
        %p4184 = scmp.lt.s32.totalorder %s34, 1
        %s4185 = scalar_select %p4184, %s34, 1
        %s4186 = smul.addr %s4185, 8
        %s4187 = scalar_lea.vmem %s21, %s4186
      $region120: #{neurobert_mae_forward.1} parent=111 // pred_fallthru
        _
    $region112: #{neurobert_mae_forward.1} parent=5 // pred_fallthru
      _
  $region6: #{neurobert_mae_forward.1} parent=0 // loop_footer
    %s32 = sadd.s32 1, %s28
  $region7: #{neurobert_mae_forward.1} parent=0 // loop_footer_branch
    %27 = sbr.rel target = $region3
  $region8: #{neurobert_mae_forward.1} parent=0 // loop_exit
    _

</llo_original>
